<compile_context>
chip_gen: v7x
topology: tpu7x:2x2x1
jax: 0.10.0
libtpu: 0.0.40
codegen_flags: <defaults>
</compile_context>

<pallas_src>
import functools
import math

import jax
import jax.numpy as jnp
from jax import lax
from jax.experimental import pallas as pl
from jax.experimental.pallas import tpu as pltpu


def _round_up(n, m):
    return ((n + m - 1) // m) * m


def _layernorm(x, gamma, beta, eps=1e-5):
    mu = jnp.mean(x, axis=-1, keepdims=True)
    var = jnp.mean(jnp.square(x - mu), axis=-1, keepdims=True)
    return (x - mu) * lax.rsqrt(var + eps) * gamma + beta


# --------------------------------------------------------------------------------------
# Kernel
# --------------------------------------------------------------------------------------
def transformer_block_kernel(
    x_ref,
    ln1_g_ref, ln1_b_ref,
    wq_ref, bq_ref, wk_ref, bk_ref, wv_ref, bv_ref,
    wo_ref, bo_ref,
    ln2_g_ref, ln2_b_ref,
    w1_ref, b1_ref, w2_ref, b2_ref,
    o_ref,
    *, n_heads, d_key_pad, d_vhead_pad, d_model, seq_len, batch_block,
    mlp_chunk, mlp_hidden,
):
    bf16 = jnp.bfloat16
    f32 = jnp.float32
    M = batch_block * seq_len

    # Flatten the batch block so every matmul sees M = Bblk * S rows on the MXU.
    x = x_ref[...].reshape(M, d_model).astype(f32)

    # ---------------- attention branch: x + Wo(concat_h softmax(QK^T)V) ----------------
    h1 = _layernorm(x, ln1_g_ref[...], ln1_b_ref[...])          # f32 VPU math
    h1b = h1.astype(bf16)

    # Fused, lane-padded head projections (bf16 MXU operands, f32 accumulation).
    # 1/sqrt(d_key) is already folded into wq/bq by prepare_params().
    q = (jnp.dot(h1b, wq_ref[...], preferred_element_type=f32) + bq_ref[...]).astype(bf16)
    k = (jnp.dot(h1b, wk_ref[...], preferred_element_type=f32) + bk_ref[...]).astype(bf16)
    v = (jnp.dot(h1b, wv_ref[...], preferred_element_type=f32) + bv_ref[...]).astype(bf16)

    # Split back into per-sequence views so attention never mixes batch elements.
    q = q.reshape(batch_block, seq_len, n_heads * d_key_pad)
    k = k.reshape(batch_block, seq_len, n_heads * d_key_pad)
    v = v.reshape(batch_block, seq_len, n_heads * d_vhead_pad)

    attn_acc = jnp.zeros((M, d_model), f32)
    for h in range(n_heads):                                    # static, small
        # 128-aligned lane slices (padding done once in prepare_params) -> no relayout copies.
        q_h = q[:, :, h * d_key_pad:(h + 1) * d_key_pad]
        k_h = k[:, :, h * d_key_pad:(h + 1) * d_key_pad]
        v_h = v[:, :, h * d_vhead_pad:(h + 1) * d_vhead_pad]

        s = jnp.einsum('bqd,bkd->bqk', q_h, k_h,
                       preferred_element_type=f32)              # (Bblk, S, S) f32
        s = s - jnp.max(s, axis=-1, keepdims=True)
        p = jnp.exp(s)                                          # unnormalized, values <= 1
        inv = pl.reciprocal(jnp.sum(p, axis=-1, keepdims=True), approx=True)

        # Deferred normalization: scale the (S, d_v) output instead of the (S, S) matrix.
        z = jnp.einsum('bqk,bkd->bqd', p.astype(bf16), v_h,
                       preferred_element_type=f32) * inv
        z = z.reshape(M, d_vhead_pad).astype(bf16)

        # Fold this head straight through its Wo slab (no concat, no zcat scratch).
        attn_acc = attn_acc + jnp.dot(
            z, wo_ref[h * d_vhead_pad:(h + 1) * d_vhead_pad, :],
            preferred_element_type=f32)

    x2 = x + attn_acc + bo_ref[...]                             # first residual, f32

    # ---------------- MLP branch: x2 + W2 @ SiLU(W1 @ ln2(x2) + b1) + b2 ----------------
    h2 = _layernorm(x2, ln2_g_ref[...], ln2_b_ref[...])
    h2b = h2.astype(bf16)

    n_chunks = mlp_hidden // mlp_chunk

    if n_chunks == 1:
        m = jnp.dot(h2b, w1_ref[...], preferred_element_type=f32) + b1_ref[...]
        m = m * jax.nn.sigmoid(m)                               # SiLU (EUP sigmoid), f32
        mlp_acc = jnp.dot(m.astype(bf16), w2_ref[...], preferred_element_type=f32)
    else:
        def mlp_body(c, acc):
            c0 = pl.multiple_of(c * mlp_chunk, mlp_chunk)
            m = jnp.dot(h2b, w1_ref[:, pl.ds(c0, mlp_chunk)],
                        preferred_element_type=f32) + b1_ref[:, pl.ds(c0, mlp_chunk)]
            m = m * jax.nn.sigmoid(m)
            return acc + jnp.dot(m.astype(bf16), w2_ref[pl.ds(c0, mlp_chunk), :],
                                 preferred_element_type=f32)

        mlp_acc = lax.fori_loop(0, n_chunks, mlp_body,
                                jnp.zeros((M, d_model), f32),
                                unroll=n_chunks <= 8)

    out = x2 + mlp_acc + b2_ref[...]                            # second residual
    o_ref[...] = out.reshape(batch_block, seq_len, d_model).astype(o_ref.dtype)


# --------------------------------------------------------------------------------------
# One-time parameter preprocessing (concat / scale-fold / lane-pad / bf16 cast)
# --------------------------------------------------------------------------------------
def prepare_params(params, *, n_heads, d_key, mlp_chunk=512):
    (ln1_g, ln1_b, wq, bq, wk, bk, wv, bv, wo, bo,
     ln2_g, ln2_b, w1, b1, w2, b2) = params

    d_model = wq.shape[1]
    scale = 1.0 / math.sqrt(d_key)
    lane = 128
    dkp = _round_up(d_key, lane)       # per-head key width, lane aligned
    dvp = _round_up(d_model, lane)     # per-head value width, lane aligned
    H = w1.shape[1]

    def pad_cols(a, new):
        return jnp.pad(a, [(0, 0)] * (a.ndim - 1) + [(0, new - a.shape[-1])])

    # Fuse per-head projections into wide lane-dense matmuls; zero-pad each head to a
    # 128-lane boundary (pad columns of Q/K/V are exact zeros -> numerically inert).
    wq_f = jnp.concatenate([pad_cols(wq[h] * scale, dkp) for h in range(n_heads)], axis=-1)
    bq_f = jnp.concatenate([pad_cols(bq[h] * scale, dkp) for h in range(n_heads)], axis=-1)
    wk_f = jnp.concatenate([pad_cols(wk[h], dkp) for h in range(n_heads)], axis=-1)
    bk_f = jnp.concatenate([pad_cols(bk[h], dkp) for h in range(n_heads)], axis=-1)
    wv_f = jnp.concatenate([pad_cols(wv[h], dvp) for h in range(n_heads)], axis=-1)
    bv_f = jnp.concatenate([pad_cols(bv[h], dvp) for h in range(n_heads)], axis=-1)

    # Wo regrouped per head with zero rows matching the padded value width.
    wo_f = jnp.concatenate(
        [jnp.pad(wo[h * d_model:(h + 1) * d_model, :], ((0, dvp - d_model), (0, 0)))
         for h in range(n_heads)], axis=0)

    # MLP hidden dim padded to a multiple of a lane-aligned chunk size
    # (zero cols of W1 / zero rows of W2 contribute nothing through SiLU).
    Hp = _round_up(H, lane)
    chunk = min(_round_up(min(mlp_chunk, Hp), lane), Hp)
    Hp = _round_up(Hp, chunk)
    w1_p = pad_cols(w1, Hp)
    b1_p = pad_cols(b1, Hp)
    w2_p = jnp.pad(w2, ((0, Hp - H), (0, 0)))

    bf16 = jnp.bfloat16
    return dict(
        ln1_g=ln1_g, ln1_b=ln1_b,
        wq=wq_f.astype(bf16), bq=bq_f,
        wk=wk_f.astype(bf16), bk=bk_f,
        wv=wv_f.astype(bf16), bv=bv_f,
        wo=wo_f.astype(bf16), bo=bo,
        ln2_g=ln2_g, ln2_b=ln2_b,
        w1=w1_p.astype(bf16), b1=b1_p,
        w2=w2_p.astype(bf16), b2=b2,
        n_heads=n_heads, d_key_pad=dkp, d_vhead_pad=dvp, d_model=d_model,
        mlp_chunk=chunk, mlp_hidden=Hp,
    )


# --------------------------------------------------------------------------------------
# Wrapper
# --------------------------------------------------------------------------------------
def _pick_batch_block(B, S, target_rows=512):
    """Largest divisor of B with Bblk*S <= target_rows (feed the MXU a real M dim)."""
    best = 1
    for d in range(1, B + 1):
        if B % d == 0 and d * S <= max(S, target_rows):
            best = d
    return best


def _pick_vmem_limit():
    """Scoped VMEM budget: chip capacity minus headroom for compiler scratch / semaphores."""
    cap = 64 * 1024 * 1024  # conservative default (v7x per-TC capacity)
    try:
        info = pltpu.get_tpu_info()
        cap = int(getattr(info, "vmem_capacity_bytes", cap) or cap)
    except Exception:
        pass
    return max(32 * 1024 * 1024, cap - 16 * 1024 * 1024)


def transformer_block(x, prepared, *, batch_block=None):
    B, S, D = x.shape
    p = prepared
    assert D == p["d_model"]
    n_heads = p["n_heads"]
    dkp, dvp = p["d_key_pad"], p["d_vhead_pad"]
    chunk, Hp = p["mlp_chunk"], p["mlp_hidden"]

    b_blk = batch_block or _pick_batch_block(B, S)
    assert B % b_blk == 0

    weight_args = (p["ln1_g"], p["ln1_b"],
                   p["wq"], p["bq"], p["wk"], p["bk"], p["wv"], p["bv"],
                   p["wo"], p["bo"],
                   p["ln2_g"], p["ln2_b"],
                   p["w1"], p["b1"], p["w2"], p["b2"])

    kernel = functools.partial(
        transformer_block_kernel,
        n_heads=n_heads, d_key_pad=dkp, d_vhead_pad=dvp, d_model=D,
        seq_len=S, batch_block=b_blk, mlp_chunk=chunk, mlp_hidden=Hp)

    act_spec = pl.BlockSpec((b_blk, S, D), lambda b: (b, 0, 0))

    # Advisory cost estimate for XLA's scheduler.
    flops = 2 * B * S * (D * n_heads * (2 * dkp + dvp)     # Q/K/V projections
                         + n_heads * S * (dkp + dvp)       # scores + A@V
                         + n_heads * dvp * D               # per-head Wo
                         + 2 * D * Hp)                     # MLP
    transcendentals = B * n_heads * S * S + B * S * Hp
    bytes_accessed = (sum(int(a.size) * a.dtype.itemsize for a in weight_args)
                      + 2 * int(x.size) * x.dtype.itemsize)
    cost = pl.CostEstimate(flops=int(flops),
                           transcendentals=int(transcendentals),
                           bytes_accessed=int(bytes_accessed))

    def build(weight_pipeline_mode):
        def w_spec(arr):
            nd = arr.ndim
            if weight_pipeline_mode is None:
                return pl.BlockSpec(arr.shape, lambda b, _nd=nd: (0,) * _nd)
            return pl.BlockSpec(arr.shape, lambda b, _nd=nd: (0,) * _nd,
                                pipeline_mode=weight_pipeline_mode)

        return pl.pallas_call(
            kernel,
            out_shape=jax.ShapeDtypeStruct((B, S, D), x.dtype),
            grid_spec=pltpu.PrefetchScalarGridSpec(
                num_scalar_prefetch=0,
                grid=(B // b_blk,),
                in_specs=[act_spec] + [w_spec(a) for a in weight_args],
                out_specs=act_spec,
            ),
            compiler_params=pltpu.CompilerParams(
                # Batch blocks are independent -> shard across TensorCores. (On v7x each TC
                # holds its own resident-weight copy; acceptable after zcat removal.)
                dimension_semantics=("parallel",),
                vmem_limit_bytes=_pick_vmem_limit(),
            ),
            cost_estimate=cost,
        )

    args = (x,) + weight_args
    try:
        # Weights are grid-invariant: single-buffer them (halves their VMEM footprint).
        out = build(pl.Buffered(1))(*args)
        jax.block_until_ready(out)
        return out
    except Exception:
        # Fallback: this Pallas build does not honor pipeline_mode on pallas_call inputs.
        return build(None)(*args)


# --------------------------------------------------------------------------------------
# Pure-JAX f32 reference mirroring the PyTorch forward (exact softmax / reciprocal).
# --------------------------------------------------------------------------------------
def reference_transformer_block(x, params, *, n_heads, d_key):
    (ln1_g, ln1_b, wq, bq, wk, bk, wv, bv, wo, bo,
     ln2_g, ln2_b, w1, b1, w2, b2) = params

    def ln(x, g, b):
        mu = jnp.mean(x, axis=-1, keepdims=True)
        var = jnp.mean((x - mu) ** 2, axis=-1, keepdims=True)
        return (x - mu) / jnp.sqrt(var + 1e-5) * g + b

    h1 = ln(x, ln1_g, ln1_b)
    zs = []
    for hd in range(n_heads):
        q = h1 @ wq[hd] + bq[hd]
        k = h1 @ wk[hd] + bk[hd]
        v = h1 @ wv[hd] + bv[hd]
        a = jax.nn.softmax(q @ jnp.swapaxes(k, -2, -1) / math.sqrt(d_key), axis=-1)
        zs.append(a @ v)
    attn_out = jnp.concatenate(zs, axis=-1) @ wo + bo
    x = x + attn_out
    h2 = ln(x, ln2_g, ln2_b)
    m = h2 @ w1 + b1
    m = m * jax.nn.sigmoid(m)
    m = m @ w2 + b2
    return x + m


def make_params(key, d_model, d_key, n_heads, mlp_factor=4):
    H = mlp_factor * d_model
    ks = jax.random.split(key, 12)
    scale = 0.05

    def w(k, shape):
        return (scale * jax.random.normal(k, shape)).astype(jnp.float32)

    ln1_g = jnp.ones((1, d_model), jnp.float32)
    ln1_b = jnp.zeros((1, d_model), jnp.float32)
    ln2_g = jnp.ones((1, d_model), jnp.float32)
    ln2_b = jnp.zeros((1, d_model), jnp.float32)

    wq = w(ks[0], (n_heads, d_model, d_key))
    bq = w(ks[1], (n_heads, 1, d_key))
    wk = w(ks[2], (n_heads, d_model, d_key))
    bk = w(ks[3], (n_heads, 1, d_key))
    wv = w(ks[4], (n_heads, d_model, d_model))
    bv = w(ks[5], (n_heads, 1, d_model))
    wo = w(ks[6], (n_heads * d_model, d_model))
    bo = w(ks[7], (1, d_model))
    w1 = w(ks[8], (d_model, H))
    b1 = w(ks[9], (1, H))
    w2 = w(ks[10], (H, d_model))
    b2 = w(ks[11], (1, d_model))

    return (ln1_g, ln1_b, wq, bq, wk, bk, wv, bv, wo, bo,
            ln2_g, ln2_b, w1, b1, w2, b2)


if __name__ == "__main__":
    B, S, d_model, d_key, n_heads = 2, 8, 32, 16, 2

    key = jax.random.PRNGKey(0)
    kx, kp = jax.random.split(key)
    x = jax.random.normal(kx, (B, S, d_model), dtype=jnp.float32)
    params = make_params(kp, d_model, d_key, n_heads)

    prepared = prepare_params(params, n_heads=n_heads, d_key=d_key)   # one-time prep

    out = transformer_block(x, prepared)
    out = jax.block_until_ready(out)

    ref = reference_transformer_block(x, params, n_heads=n_heads, d_key=d_key)
    assert out.shape == (B, S, d_model)
    # bf16 MXU operands + approx EUP reciprocal -> loosened tolerance vs exact f32 reference
    max_err = float(jnp.max(jnp.abs(out - ref)))
    assert jnp.allclose(out, ref, atol=2e-2, rtol=2e-2), max_err

    print("KERNEL_OK")
</pallas_src>

<mosaic_0001>
module attributes {stable_mosaic.version = 11 : i64} {
  func.func @transformer_block_kernel(%arg0: i32, %arg1: memref<2x8x32xf32, #tpu.memory_space<vmem>>, %arg2: memref<1x32xf32, #tpu.memory_space<vmem>>, %arg3: memref<1x32xf32, #tpu.memory_space<vmem>>, %arg4: memref<32x256xbf16, #tpu.memory_space<vmem>>, %arg5: memref<1x256xf32, #tpu.memory_space<vmem>>, %arg6: memref<32x256xbf16, #tpu.memory_space<vmem>>, %arg7: memref<1x256xf32, #tpu.memory_space<vmem>>, %arg8: memref<32x256xbf16, #tpu.memory_space<vmem>>, %arg9: memref<1x256xf32, #tpu.memory_space<vmem>>, %arg10: memref<256x32xbf16, #tpu.memory_space<vmem>>, %arg11: memref<1x32xf32, #tpu.memory_space<vmem>>, %arg12: memref<1x32xf32, #tpu.memory_space<vmem>>, %arg13: memref<1x32xf32, #tpu.memory_space<vmem>>, %arg14: memref<32x128xbf16, #tpu.memory_space<vmem>>, %arg15: memref<1x128xf32, #tpu.memory_space<vmem>>, %arg16: memref<128x32xbf16, #tpu.memory_space<vmem>>, %arg17: memref<1x32xf32, #tpu.memory_space<vmem>>, %arg18: memref<2x8x32xf32, #tpu.memory_space<vmem>>) attributes {dimension_semantics = [#tpu.dimension_semantics<parallel>], iteration_bounds = array<i64: 1>, scalar_prefetch = 0 : i64, scratch_operands = 0 : i64, tpu.core_type = #tpu.core_type<tc>, window_params = [{transform_indices = @transform_0, window_bounds = array<i64: 2, 8, 32>}, {pipeline_mode = #tpu.pipeline_mode<synchronous>, transform_indices = @transform_1, window_bounds = array<i64: 1, 32>}, {pipeline_mode = #tpu.pipeline_mode<synchronous>, transform_indices = @transform_2, window_bounds = array<i64: 1, 32>}, {pipeline_mode = #tpu.pipeline_mode<synchronous>, transform_indices = @transform_3, window_bounds = array<i64: 32, 256>}, {pipeline_mode = #tpu.pipeline_mode<synchronous>, transform_indices = @transform_4, window_bounds = array<i64: 1, 256>}, {pipeline_mode = #tpu.pipeline_mode<synchronous>, transform_indices = @transform_5, window_bounds = array<i64: 32, 256>}, {pipeline_mode = #tpu.pipeline_mode<synchronous>, transform_indices = @transform_6, window_bounds = array<i64: 1, 256>}, {pipeline_mode = #tpu.pipeline_mode<synchronous>, transform_indices = @transform_7, window_bounds = array<i64: 32, 256>}, {pipeline_mode = #tpu.pipeline_mode<synchronous>, transform_indices = @transform_8, window_bounds = array<i64: 1, 256>}, {pipeline_mode = #tpu.pipeline_mode<synchronous>, transform_indices = @transform_9, window_bounds = array<i64: 256, 32>}, {pipeline_mode = #tpu.pipeline_mode<synchronous>, transform_indices = @transform_10, window_bounds = array<i64: 1, 32>}, {pipeline_mode = #tpu.pipeline_mode<synchronous>, transform_indices = @transform_11, window_bounds = array<i64: 1, 32>}, {pipeline_mode = #tpu.pipeline_mode<synchronous>, transform_indices = @transform_12, window_bounds = array<i64: 1, 32>}, {pipeline_mode = #tpu.pipeline_mode<synchronous>, transform_indices = @transform_13, window_bounds = array<i64: 32, 128>}, {pipeline_mode = #tpu.pipeline_mode<synchronous>, transform_indices = @transform_14, window_bounds = array<i64: 1, 128>}, {pipeline_mode = #tpu.pipeline_mode<synchronous>, transform_indices = @transform_15, window_bounds = array<i64: 128, 32>}, {pipeline_mode = #tpu.pipeline_mode<synchronous>, transform_indices = @transform_16, window_bounds = array<i64: 1, 32>}, {transform_indices = @transform_17, window_bounds = array<i64: 2, 8, 32>}]} {
    %c0 = arith.constant 0 : index
    %c0_0 = arith.constant 0 : index
    %c0_1 = arith.constant 0 : index
    %0 = vector.load %arg1[%c0, %c0_0, %c0_1] : memref<2x8x32xf32, #tpu.memory_space<vmem>>, vector<2x8x32xf32>
    %1 = vector.shape_cast %0 : vector<2x8x32xf32> to vector<16x32xf32>
    %c0_2 = arith.constant 0 : index
    %c0_3 = arith.constant 0 : index
    %2 = vector.load %arg2[%c0_2, %c0_3] : memref<1x32xf32, #tpu.memory_space<vmem>>, vector<1x32xf32>
    %c0_4 = arith.constant 0 : index
    %c0_5 = arith.constant 0 : index
    %3 = vector.load %arg3[%c0_4, %c0_5] : memref<1x32xf32, #tpu.memory_space<vmem>>, vector<1x32xf32>
    %cst = arith.constant dense<0.000000e+00> : vector<16xf32>
    %4 = vector.multi_reduction <add>, %1, %cst [1] : vector<16x32xf32> to vector<16xf32>
    %5 = vector.shape_cast %4 : vector<16xf32> to vector<16x1xf32>
    %cst_6 = arith.constant 3.200000e+01 : f32
    %6 = vector.broadcast %cst_6 : f32 to vector<16x1xf32>
    %7 = arith.divf %5, %6 : vector<16x1xf32>
    %8 = vector.broadcast %7 : vector<16x1xf32> to vector<16x32xf32>
    %9 = arith.subf %1, %8 : vector<16x32xf32>
    %10 = arith.mulf %9, %9 : vector<16x32xf32>
    %cst_7 = arith.constant dense<0.000000e+00> : vector<16xf32>
    %11 = vector.multi_reduction <add>, %10, %cst_7 [1] : vector<16x32xf32> to vector<16xf32>
    %12 = vector.shape_cast %11 : vector<16xf32> to vector<16x1xf32>
    %cst_8 = arith.constant 3.200000e+01 : f32
    %13 = vector.broadcast %cst_8 : f32 to vector<16x1xf32>
    %14 = arith.divf %12, %13 : vector<16x1xf32>
    %15 = vector.broadcast %7 : vector<16x1xf32> to vector<16x32xf32>
    %16 = arith.subf %1, %15 : vector<16x32xf32>
    %cst_9 = arith.constant 9.99999974E-6 : f32
    %17 = vector.broadcast %cst_9 : f32 to vector<16x1xf32>
    %18 = arith.addf %14, %17 : vector<16x1xf32>
    %19 = math.rsqrt %18 : vector<16x1xf32>
    %20 = vector.broadcast %19 : vector<16x1xf32> to vector<16x32xf32>
    %21 = arith.mulf %16, %20 : vector<16x32xf32>
    %22 = vector.broadcast %2 : vector<1x32xf32> to vector<16x32xf32>
    %23 = arith.mulf %21, %22 : vector<16x32xf32>
    %24 = vector.broadcast %3 : vector<1x32xf32> to vector<16x32xf32>
    %25 = arith.addf %23, %24 : vector<16x32xf32>
    %26 = arith.truncf %25 : vector<16x32xf32> to vector<16x32xbf16>
    %c0_10 = arith.constant 0 : index
    %c0_11 = arith.constant 0 : index
    %27 = vector.load %arg4[%c0_10, %c0_11] : memref<32x256xbf16, #tpu.memory_space<vmem>>, vector<32x256xbf16>
    %cst_12 = arith.constant dense<0.000000e+00> : vector<16x256xf32>
    %28 = tpu.matmul %26, %27, %cst_12 {dimension_numbers = #tpu.dot_dimension_numbers<[1], [0], [0], [1], [0, 0, 1, 1], [], []>} : vector<16x32xbf16>, vector<32x256xbf16>, vector<16x256xf32> -> vector<16x256xf32>
    %c0_13 = arith.constant 0 : index
    %c0_14 = arith.constant 0 : index
    %29 = vector.load %arg5[%c0_13, %c0_14] : memref<1x256xf32, #tpu.memory_space<vmem>>, vector<1x256xf32>
    %30 = vector.broadcast %29 : vector<1x256xf32> to vector<16x256xf32>
    %31 = arith.addf %28, %30 : vector<16x256xf32>
    %32 = arith.truncf %31 : vector<16x256xf32> to vector<16x256xbf16>
    %c0_15 = arith.constant 0 : index
    %c0_16 = arith.constant 0 : index
    %33 = vector.load %arg6[%c0_15, %c0_16] : memref<32x256xbf16, #tpu.memory_space<vmem>>, vector<32x256xbf16>
    %cst_17 = arith.constant dense<0.000000e+00> : vector<16x256xf32>
    %34 = tpu.matmul %26, %33, %cst_17 {dimension_numbers = #tpu.dot_dimension_numbers<[1], [0], [0], [1], [0, 0, 1, 1], [], []>} : vector<16x32xbf16>, vector<32x256xbf16>, vector<16x256xf32> -> vector<16x256xf32>
    %c0_18 = arith.constant 0 : index
    %c0_19 = arith.constant 0 : index
    %35 = vector.load %arg7[%c0_18, %c0_19] : memref<1x256xf32, #tpu.memory_space<vmem>>, vector<1x256xf32>
    %36 = vector.broadcast %35 : vector<1x256xf32> to vector<16x256xf32>
    %37 = arith.addf %34, %36 : vector<16x256xf32>
    %38 = arith.truncf %37 : vector<16x256xf32> to vector<16x256xbf16>
    %c0_20 = arith.constant 0 : index
    %c0_21 = arith.constant 0 : index
    %39 = vector.load %arg8[%c0_20, %c0_21] : memref<32x256xbf16, #tpu.memory_space<vmem>>, vector<32x256xbf16>
    %cst_22 = arith.constant dense<0.000000e+00> : vector<16x256xf32>
    %40 = tpu.matmul %26, %39, %cst_22 {dimension_numbers = #tpu.dot_dimension_numbers<[1], [0], [0], [1], [0, 0, 1, 1], [], []>} : vector<16x32xbf16>, vector<32x256xbf16>, vector<16x256xf32> -> vector<16x256xf32>
    %c0_23 = arith.constant 0 : index
    %c0_24 = arith.constant 0 : index
    %41 = vector.load %arg9[%c0_23, %c0_24] : memref<1x256xf32, #tpu.memory_space<vmem>>, vector<1x256xf32>
    %42 = vector.broadcast %41 : vector<1x256xf32> to vector<16x256xf32>
    %43 = arith.addf %40, %42 : vector<16x256xf32>
    %44 = arith.truncf %43 : vector<16x256xf32> to vector<16x256xbf16>
    %45 = vector.shape_cast %32 : vector<16x256xbf16> to vector<2x8x256xbf16>
    %46 = vector.shape_cast %38 : vector<16x256xbf16> to vector<2x8x256xbf16>
    %47 = vector.shape_cast %44 : vector<16x256xbf16> to vector<2x8x256xbf16>
    %cst_25 = arith.constant 0.000000e+00 : f32
    %48 = vector.broadcast %cst_25 : f32 to vector<16x32xf32>
    %49 = vector.extract_strided_slice %45 {offsets = [0, 0, 0], sizes = [2, 8, 128], strides = [1, 1, 1]} : vector<2x8x256xbf16> to vector<2x8x128xbf16>
    %50 = vector.extract_strided_slice %46 {offsets = [0, 0, 0], sizes = [2, 8, 128], strides = [1, 1, 1]} : vector<2x8x256xbf16> to vector<2x8x128xbf16>
    %51 = vector.extract_strided_slice %47 {offsets = [0, 0, 0], sizes = [2, 8, 128], strides = [1, 1, 1]} : vector<2x8x256xbf16> to vector<2x8x128xbf16>
    "tpu.trace_start"() <{level = 10 : i32, message = "bqd,bkd->bqk"}> : () -> ()
    %cst_26 = arith.constant dense<0.000000e+00> : vector<2x8x8xf32>
    %52 = tpu.matmul %49, %50, %cst_26 {dimension_numbers = #tpu.dot_dimension_numbers<[2], [2], [1], [1], [0, 0, 0, 1, 1, 1], [0], [0]>} : vector<2x8x128xbf16>, vector<2x8x128xbf16>, vector<2x8x8xf32> -> vector<2x8x8xf32>
    "tpu.trace_stop"() : () -> ()
    %cst_27 = arith.constant dense<0xFF800000> : vector<2x8xf32>
    %53 = vector.multi_reduction <maximumf>, %52, %cst_27 [2] : vector<2x8x8xf32> to vector<2x8xf32>
    %54 = vector.shape_cast %53 : vector<2x8xf32> to vector<2x8x1xf32>
    %55 = vector.broadcast %54 : vector<2x8x1xf32> to vector<2x8x8xf32>
    %56 = arith.subf %52, %55 : vector<2x8x8xf32>
    %57 = math.exp %56 : vector<2x8x8xf32>
    %cst_28 = arith.constant dense<0.000000e+00> : vector<2x8xf32>
    %58 = vector.multi_reduction <add>, %57, %cst_28 [2] : vector<2x8x8xf32> to vector<2x8xf32>
    %59 = vector.shape_cast %58 : vector<2x8xf32> to vector<2x8x1xf32>
    %60 = tpu.reciprocal %59 {approx = true} : vector<2x8x1xf32> -> vector<2x8x1xf32>
    %61 = arith.truncf %57 : vector<2x8x8xf32> to vector<2x8x8xbf16>
    "tpu.trace_start"() <{level = 10 : i32, message = "bqk,bkd->bqd"}> : () -> ()
    %cst_29 = arith.constant dense<0.000000e+00> : vector<2x8x128xf32>
    %62 = tpu.matmul %61, %51, %cst_29 {dimension_numbers = #tpu.dot_dimension_numbers<[2], [1], [1], [2], [0, 0, 0, 1, 1, 2], [0], [0]>} : vector<2x8x8xbf16>, vector<2x8x128xbf16>, vector<2x8x128xf32> -> vector<2x8x128xf32>
    "tpu.trace_stop"() : () -> ()
    %63 = vector.broadcast %60 : vector<2x8x1xf32> to vector<2x8x128xf32>
    %64 = arith.mulf %62, %63 : vector<2x8x128xf32>
    %65 = vector.shape_cast %64 : vector<2x8x128xf32> to vector<16x128xf32>
    %66 = arith.truncf %65 : vector<16x128xf32> to vector<16x128xbf16>
    %c0_30 = arith.constant 0 : index
    %c0_31 = arith.constant 0 : index
    %67 = vector.load %arg10[%c0_30, %c0_31] : memref<256x32xbf16, #tpu.memory_space<vmem>>, vector<128x32xbf16>
    %cst_32 = arith.constant dense<0.000000e+00> : vector<16x32xf32>
    %68 = tpu.matmul %66, %67, %cst_32 {dimension_numbers = #tpu.dot_dimension_numbers<[1], [0], [0], [1], [0, 0, 1, 1], [], []>} : vector<16x128xbf16>, vector<128x32xbf16>, vector<16x32xf32> -> vector<16x32xf32>
    %69 = arith.addf %48, %68 : vector<16x32xf32>
    %70 = vector.extract_strided_slice %45 {offsets = [0, 0, 128], sizes = [2, 8, 128], strides = [1, 1, 1]} : vector<2x8x256xbf16> to vector<2x8x128xbf16>
    %71 = vector.extract_strided_slice %46 {offsets = [0, 0, 128], sizes = [2, 8, 128], strides = [1, 1, 1]} : vector<2x8x256xbf16> to vector<2x8x128xbf16>
    %72 = vector.extract_strided_slice %47 {offsets = [0, 0, 128], sizes = [2, 8, 128], strides = [1, 1, 1]} : vector<2x8x256xbf16> to vector<2x8x128xbf16>
    "tpu.trace_start"() <{level = 10 : i32, message = "bqd,bkd->bqk"}> : () -> ()
    %cst_33 = arith.constant dense<0.000000e+00> : vector<2x8x8xf32>
    %73 = tpu.matmul %70, %71, %cst_33 {dimension_numbers = #tpu.dot_dimension_numbers<[2], [2], [1], [1], [0, 0, 0, 1, 1, 1], [0], [0]>} : vector<2x8x128xbf16>, vector<2x8x128xbf16>, vector<2x8x8xf32> -> vector<2x8x8xf32>
    "tpu.trace_stop"() : () -> ()
    %cst_34 = arith.constant dense<0xFF800000> : vector<2x8xf32>
    %74 = vector.multi_reduction <maximumf>, %73, %cst_34 [2] : vector<2x8x8xf32> to vector<2x8xf32>
    %75 = vector.shape_cast %74 : vector<2x8xf32> to vector<2x8x1xf32>
    %76 = vector.broadcast %75 : vector<2x8x1xf32> to vector<2x8x8xf32>
    %77 = arith.subf %73, %76 : vector<2x8x8xf32>
    %78 = math.exp %77 : vector<2x8x8xf32>
    %cst_35 = arith.constant dense<0.000000e+00> : vector<2x8xf32>
    %79 = vector.multi_reduction <add>, %78, %cst_35 [2] : vector<2x8x8xf32> to vector<2x8xf32>
    %80 = vector.shape_cast %79 : vector<2x8xf32> to vector<2x8x1xf32>
    %81 = tpu.reciprocal %80 {approx = true} : vector<2x8x1xf32> -> vector<2x8x1xf32>
    %82 = arith.truncf %78 : vector<2x8x8xf32> to vector<2x8x8xbf16>
    "tpu.trace_start"() <{level = 10 : i32, message = "bqk,bkd->bqd"}> : () -> ()
    %cst_36 = arith.constant dense<0.000000e+00> : vector<2x8x128xf32>
    %83 = tpu.matmul %82, %72, %cst_36 {dimension_numbers = #tpu.dot_dimension_numbers<[2], [1], [1], [2], [0, 0, 0, 1, 1, 2], [0], [0]>} : vector<2x8x8xbf16>, vector<2x8x128xbf16>, vector<2x8x128xf32> -> vector<2x8x128xf32>
    "tpu.trace_stop"() : () -> ()
    %84 = vector.broadcast %81 : vector<2x8x1xf32> to vector<2x8x128xf32>
    %85 = arith.mulf %83, %84 : vector<2x8x128xf32>
    %86 = vector.shape_cast %85 : vector<2x8x128xf32> to vector<16x128xf32>
    %87 = arith.truncf %86 : vector<16x128xf32> to vector<16x128xbf16>
    %c128 = arith.constant 128 : index
    %c0_37 = arith.constant 0 : index
    %88 = vector.load %arg10[%c128, %c0_37] : memref<256x32xbf16, #tpu.memory_space<vmem>>, vector<128x32xbf16>
    %cst_38 = arith.constant dense<0.000000e+00> : vector<16x32xf32>
    %89 = tpu.matmul %87, %88, %cst_38 {dimension_numbers = #tpu.dot_dimension_numbers<[1], [0], [0], [1], [0, 0, 1, 1], [], []>} : vector<16x128xbf16>, vector<128x32xbf16>, vector<16x32xf32> -> vector<16x32xf32>
    %90 = arith.addf %69, %89 : vector<16x32xf32>
    %91 = arith.addf %1, %90 : vector<16x32xf32>
    %c0_39 = arith.constant 0 : index
    %c0_40 = arith.constant 0 : index
    %92 = vector.load %arg11[%c0_39, %c0_40] : memref<1x32xf32, #tpu.memory_space<vmem>>, vector<1x32xf32>
    %93 = vector.broadcast %92 : vector<1x32xf32> to vector<16x32xf32>
    %94 = arith.addf %91, %93 : vector<16x32xf32>
    %c0_41 = arith.constant 0 : index
    %c0_42 = arith.constant 0 : index
    %95 = vector.load %arg12[%c0_41, %c0_42] : memref<1x32xf32, #tpu.memory_space<vmem>>, vector<1x32xf32>
    %c0_43 = arith.constant 0 : index
    %c0_44 = arith.constant 0 : index
    %96 = vector.load %arg13[%c0_43, %c0_44] : memref<1x32xf32, #tpu.memory_space<vmem>>, vector<1x32xf32>
    %cst_45 = arith.constant dense<0.000000e+00> : vector<16xf32>
    %97 = vector.multi_reduction <add>, %94, %cst_45 [1] : vector<16x32xf32> to vector<16xf32>
    %98 = vector.shape_cast %97 : vector<16xf32> to vector<16x1xf32>
    %cst_46 = arith.constant 3.200000e+01 : f32
    %99 = vector.broadcast %cst_46 : f32 to vector<16x1xf32>
    %100 = arith.divf %98, %99 : vector<16x1xf32>
    %101 = vector.broadcast %100 : vector<16x1xf32> to vector<16x32xf32>
    %102 = arith.subf %94, %101 : vector<16x32xf32>
    %103 = arith.mulf %102, %102 : vector<16x32xf32>
    %cst_47 = arith.constant dense<0.000000e+00> : vector<16xf32>
    %104 = vector.multi_reduction <add>, %103, %cst_47 [1] : vector<16x32xf32> to vector<16xf32>
    %105 = vector.shape_cast %104 : vector<16xf32> to vector<16x1xf32>
    %cst_48 = arith.constant 3.200000e+01 : f32
    %106 = vector.broadcast %cst_48 : f32 to vector<16x1xf32>
    %107 = arith.divf %105, %106 : vector<16x1xf32>
    %108 = vector.broadcast %100 : vector<16x1xf32> to vector<16x32xf32>
    %109 = arith.subf %94, %108 : vector<16x32xf32>
    %cst_49 = arith.constant 9.99999974E-6 : f32
    %110 = vector.broadcast %cst_49 : f32 to vector<16x1xf32>
    %111 = arith.addf %107, %110 : vector<16x1xf32>
    %112 = math.rsqrt %111 : vector<16x1xf32>
    %113 = vector.broadcast %112 : vector<16x1xf32> to vector<16x32xf32>
    %114 = arith.mulf %109, %113 : vector<16x32xf32>
    %115 = vector.broadcast %95 : vector<1x32xf32> to vector<16x32xf32>
    %116 = arith.mulf %114, %115 : vector<16x32xf32>
    %117 = vector.broadcast %96 : vector<1x32xf32> to vector<16x32xf32>
    %118 = arith.addf %116, %117 : vector<16x32xf32>
    %119 = arith.truncf %118 : vector<16x32xf32> to vector<16x32xbf16>
    %c0_50 = arith.constant 0 : index
    %c0_51 = arith.constant 0 : index
    %120 = vector.load %arg14[%c0_50, %c0_51] : memref<32x128xbf16, #tpu.memory_space<vmem>>, vector<32x128xbf16>
    %cst_52 = arith.constant dense<0.000000e+00> : vector<16x128xf32>
    %121 = tpu.matmul %119, %120, %cst_52 {dimension_numbers = #tpu.dot_dimension_numbers<[1], [0], [0], [1], [0, 0, 1, 1], [], []>} : vector<16x32xbf16>, vector<32x128xbf16>, vector<16x128xf32> -> vector<16x128xf32>
    %c0_53 = arith.constant 0 : index
    %c0_54 = arith.constant 0 : index
    %122 = vector.load %arg15[%c0_53, %c0_54] : memref<1x128xf32, #tpu.memory_space<vmem>>, vector<1x128xf32>
    %123 = vector.broadcast %122 : vector<1x128xf32> to vector<16x128xf32>
    %124 = arith.addf %121, %123 : vector<16x128xf32>
    %125 = arith.negf %124 : vector<16x128xf32>
    %126 = math.exp %125 : vector<16x128xf32>
    %cst_55 = arith.constant 1.000000e+00 : f32
    %127 = vector.broadcast %cst_55 : f32 to vector<16x128xf32>
    %128 = arith.addf %127, %126 : vector<16x128xf32>
    %129 = arith.divf %127, %128 : vector<16x128xf32>
    %130 = arith.mulf %124, %129 : vector<16x128xf32>
    %131 = arith.truncf %130 : vector<16x128xf32> to vector<16x128xbf16>
    %c0_56 = arith.constant 0 : index
    %c0_57 = arith.constant 0 : index
    %132 = vector.load %arg16[%c0_56, %c0_57] : memref<128x32xbf16, #tpu.memory_space<vmem>>, vector<128x32xbf16>
    %cst_58 = arith.constant dense<0.000000e+00> : vector<16x32xf32>
    %133 = tpu.matmul %131, %132, %cst_58 {dimension_numbers = #tpu.dot_dimension_numbers<[1], [0], [0], [1], [0, 0, 1, 1], [], []>} : vector<16x128xbf16>, vector<128x32xbf16>, vector<16x32xf32> -> vector<16x32xf32>
    %134 = arith.addf %94, %133 : vector<16x32xf32>
    %c0_59 = arith.constant 0 : index
    %c0_60 = arith.constant 0 : index
    %135 = vector.load %arg17[%c0_59, %c0_60] : memref<1x32xf32, #tpu.memory_space<vmem>>, vector<1x32xf32>
    %136 = vector.broadcast %135 : vector<1x32xf32> to vector<16x32xf32>
    %137 = arith.addf %134, %136 : vector<16x32xf32>
    %138 = vector.shape_cast %137 : vector<16x32xf32> to vector<2x8x32xf32>
    %c0_61 = arith.constant 0 : index
    %c0_62 = arith.constant 0 : index
    %c0_63 = arith.constant 0 : index
    %139 = vector.load %arg18[%c0_61, %c0_62, %c0_63] : memref<2x8x32xf32, #tpu.memory_space<vmem>>, vector<2x8x32xf32>
    tpu.vector_store %arg18[%c0_61, %c0_62, %c0_63], %138 {strides = array<i32>} : memref<2x8x32xf32, #tpu.memory_space<vmem>>, vector<2x8x32xf32>,
    return
  }
  func.func @transform_0(%arg0: i32) -> (i32, i32, i32) {
    %c0_i32 = arith.constant 0 : i32
    %c0_i32_0 = arith.constant 0 : i32
    %c0_i32_1 = arith.constant 0 : i32
    return %arg0, %c0_i32, %c0_i32_0 : i32, i32, i32
  }
  func.func @transform_1(%arg0: i32) -> (i32, i32) {
    %c0_i32 = arith.constant 0 : i32
    %c0_i32_0 = arith.constant 0 : i32
    %c0_i32_1 = arith.constant 0 : i32
    return %c0_i32, %c0_i32_0 : i32, i32
  }
  func.func @transform_2(%arg0: i32) -> (i32, i32) {
    %c0_i32 = arith.constant 0 : i32
    %c0_i32_0 = arith.constant 0 : i32
    %c0_i32_1 = arith.constant 0 : i32
    return %c0_i32, %c0_i32_0 : i32, i32
  }
  func.func @transform_3(%arg0: i32) -> (i32, i32) {
    %c0_i32 = arith.constant 0 : i32
    %c0_i32_0 = arith.constant 0 : i32
    %c0_i32_1 = arith.constant 0 : i32
    return %c0_i32, %c0_i32_0 : i32, i32
  }
  func.func @transform_4(%arg0: i32) -> (i32, i32) {
    %c0_i32 = arith.constant 0 : i32
    %c0_i32_0 = arith.constant 0 : i32
    %c0_i32_1 = arith.constant 0 : i32
    return %c0_i32, %c0_i32_0 : i32, i32
  }
  func.func @transform_5(%arg0: i32) -> (i32, i32) {
    %c0_i32 = arith.constant 0 : i32
    %c0_i32_0 = arith.constant 0 : i32
    %c0_i32_1 = arith.constant 0 : i32
    return %c0_i32, %c0_i32_0 : i32, i32
  }
  func.func @transform_6(%arg0: i32) -> (i32, i32) {
    %c0_i32 = arith.constant 0 : i32
    %c0_i32_0 = arith.constant 0 : i32
    %c0_i32_1 = arith.constant 0 : i32
    return %c0_i32, %c0_i32_0 : i32, i32
  }
  func.func @transform_7(%arg0: i32) -> (i32, i32) {
    %c0_i32 = arith.constant 0 : i32
    %c0_i32_0 = arith.constant 0 : i32
    %c0_i32_1 = arith.constant 0 : i32
    return %c0_i32, %c0_i32_0 : i32, i32
  }
  func.func @transform_8(%arg0: i32) -> (i32, i32) {
    %c0_i32 = arith.constant 0 : i32
    %c0_i32_0 = arith.constant 0 : i32
    %c0_i32_1 = arith.constant 0 : i32
    return %c0_i32, %c0_i32_0 : i32, i32
  }
  func.func @transform_9(%arg0: i32) -> (i32, i32) {
    %c0_i32 = arith.constant 0 : i32
    %c0_i32_0 = arith.constant 0 : i32
    %c0_i32_1 = arith.constant 0 : i32
    return %c0_i32, %c0_i32_0 : i32, i32
  }
  func.func @transform_10(%arg0: i32) -> (i32, i32) {
    %c0_i32 = arith.constant 0 : i32
    %c0_i32_0 = arith.constant 0 : i32
    %c0_i32_1 = arith.constant 0 : i32
    return %c0_i32, %c0_i32_0 : i32, i32
  }
  func.func @transform_11(%arg0: i32) -> (i32, i32) {
    %c0_i32 = arith.constant 0 : i32
    %c0_i32_0 = arith.constant 0 : i32
    %c0_i32_1 = arith.constant 0 : i32
    return %c0_i32, %c0_i32_0 : i32, i32
  }
  func.func @transform_12(%arg0: i32) -> (i32, i32) {
    %c0_i32 = arith.constant 0 : i32
    %c0_i32_0 = arith.constant 0 : i32
    %c0_i32_1 = arith.constant 0 : i32
    return %c0_i32, %c0_i32_0 : i32, i32
  }
  func.func @transform_13(%arg0: i32) -> (i32, i32) {
    %c0_i32 = arith.constant 0 : i32
    %c0_i32_0 = arith.constant 0 : i32
    %c0_i32_1 = arith.constant 0 : i32
    return %c0_i32, %c0_i32_0 : i32, i32
  }
  func.func @transform_14(%arg0: i32) -> (i32, i32) {
    %c0_i32 = arith.constant 0 : i32
    %c0_i32_0 = arith.constant 0 : i32
    %c0_i32_1 = arith.constant 0 : i32
    return %c0_i32, %c0_i32_0 : i32, i32
  }
  func.func @transform_15(%arg0: i32) -> (i32, i32) {
    %c0_i32 = arith.constant 0 : i32
    %c0_i32_0 = arith.constant 0 : i32
    %c0_i32_1 = arith.constant 0 : i32
    return %c0_i32, %c0_i32_0 : i32, i32
  }
  func.func @transform_16(%arg0: i32) -> (i32, i32) {
    %c0_i32 = arith.constant 0 : i32
    %c0_i32_0 = arith.constant 0 : i32
    %c0_i32_1 = arith.constant 0 : i32
    return %c0_i32, %c0_i32_0 : i32, i32
  }
  func.func @transform_17(%arg0: i32) -> (i32, i32, i32) {
    %c0_i32 = arith.constant 0 : i32
    %c0_i32_0 = arith.constant 0 : i32
    %c0_i32_1 = arith.constant 0 : i32
    return %arg0, %c0_i32, %c0_i32_0 : i32, i32, i32
  }
}

module attributes {stable_mosaic.version = 11 : i64} {
  func.func @transformer_block_kernel(%arg0: i32, %arg1: memref<2x8x32xf32, #tpu.memory_space<vmem>>, %arg2: memref<1x32xf32, #tpu.memory_space<vmem>>, %arg3: memref<1x32xf32, #tpu.memory_space<vmem>>, %arg4: memref<32x256xbf16, #tpu.memory_space<vmem>>, %arg5: memref<1x256xf32, #tpu.memory_space<vmem>>, %arg6: memref<32x256xbf16, #tpu.memory_space<vmem>>, %arg7: memref<1x256xf32, #tpu.memory_space<vmem>>, %arg8: memref<32x256xbf16, #tpu.memory_space<vmem>>, %arg9: memref<1x256xf32, #tpu.memory_space<vmem>>, %arg10: memref<256x32xbf16, #tpu.memory_space<vmem>>, %arg11: memref<1x32xf32, #tpu.memory_space<vmem>>, %arg12: memref<1x32xf32, #tpu.memory_space<vmem>>, %arg13: memref<1x32xf32, #tpu.memory_space<vmem>>, %arg14: memref<32x128xbf16, #tpu.memory_space<vmem>>, %arg15: memref<1x128xf32, #tpu.memory_space<vmem>>, %arg16: memref<128x32xbf16, #tpu.memory_space<vmem>>, %arg17: memref<1x32xf32, #tpu.memory_space<vmem>>, %arg18: memref<2x8x32xf32, #tpu.memory_space<vmem>>) attributes {dimension_semantics = [#tpu.dimension_semantics<parallel>], iteration_bounds = array<i64: 1>, scalar_prefetch = 0 : i64, scratch_operands = 0 : i64, tpu.core_type = #tpu.core_type<tc>, window_params = [{transform_indices = @transform_0, window_bounds = array<i64: 2, 8, 32>}, {pipeline_mode = #tpu.pipeline_mode<synchronous>, transform_indices = @transform_1, window_bounds = array<i64: 1, 32>}, {pipeline_mode = #tpu.pipeline_mode<synchronous>, transform_indices = @transform_2, window_bounds = array<i64: 1, 32>}, {pipeline_mode = #tpu.pipeline_mode<synchronous>, transform_indices = @transform_3, window_bounds = array<i64: 32, 256>}, {pipeline_mode = #tpu.pipeline_mode<synchronous>, transform_indices = @transform_4, window_bounds = array<i64: 1, 256>}, {pipeline_mode = #tpu.pipeline_mode<synchronous>, transform_indices = @transform_5, window_bounds = array<i64: 32, 256>}, {pipeline_mode = #tpu.pipeline_mode<synchronous>, transform_indices = @transform_6, window_bounds = array<i64: 1, 256>}, {pipeline_mode = #tpu.pipeline_mode<synchronous>, transform_indices = @transform_7, window_bounds = array<i64: 32, 256>}, {pipeline_mode = #tpu.pipeline_mode<synchronous>, transform_indices = @transform_8, window_bounds = array<i64: 1, 256>}, {pipeline_mode = #tpu.pipeline_mode<synchronous>, transform_indices = @transform_9, window_bounds = array<i64: 256, 32>}, {pipeline_mode = #tpu.pipeline_mode<synchronous>, transform_indices = @transform_10, window_bounds = array<i64: 1, 32>}, {pipeline_mode = #tpu.pipeline_mode<synchronous>, transform_indices = @transform_11, window_bounds = array<i64: 1, 32>}, {pipeline_mode = #tpu.pipeline_mode<synchronous>, transform_indices = @transform_12, window_bounds = array<i64: 1, 32>}, {pipeline_mode = #tpu.pipeline_mode<synchronous>, transform_indices = @transform_13, window_bounds = array<i64: 32, 128>}, {pipeline_mode = #tpu.pipeline_mode<synchronous>, transform_indices = @transform_14, window_bounds = array<i64: 1, 128>}, {pipeline_mode = #tpu.pipeline_mode<synchronous>, transform_indices = @transform_15, window_bounds = array<i64: 128, 32>}, {pipeline_mode = #tpu.pipeline_mode<synchronous>, transform_indices = @transform_16, window_bounds = array<i64: 1, 32>}, {transform_indices = @transform_17, window_bounds = array<i64: 2, 8, 32>}]} {
    %c0 = arith.constant 0 : index
    %c0_0 = arith.constant 0 : index
    %c0_1 = arith.constant 0 : index
    %0 = vector.load %arg1[%c0, %c0_0, %c0_1] : memref<2x8x32xf32, #tpu.memory_space<vmem>>, vector<2x8x32xf32>
    %1 = vector.shape_cast %0 : vector<2x8x32xf32> to vector<16x32xf32>
    %c0_2 = arith.constant 0 : index
    %c0_3 = arith.constant 0 : index
    %2 = vector.load %arg2[%c0_2, %c0_3] : memref<1x32xf32, #tpu.memory_space<vmem>>, vector<1x32xf32>
    %c0_4 = arith.constant 0 : index
    %c0_5 = arith.constant 0 : index
    %3 = vector.load %arg3[%c0_4, %c0_5] : memref<1x32xf32, #tpu.memory_space<vmem>>, vector<1x32xf32>
    %cst = arith.constant dense<0.000000e+00> : vector<16xf32>
    %4 = vector.multi_reduction <add>, %1, %cst [1] : vector<16x32xf32> to vector<16xf32>
    %5 = vector.shape_cast %4 : vector<16xf32> to vector<16x1xf32>
    %cst_6 = arith.constant 3.200000e+01 : f32
    %6 = vector.broadcast %cst_6 : f32 to vector<16x1xf32>
    %7 = arith.divf %5, %6 : vector<16x1xf32>
    %8 = vector.broadcast %7 : vector<16x1xf32> to vector<16x32xf32>
    %9 = arith.subf %1, %8 : vector<16x32xf32>
    %10 = arith.mulf %9, %9 : vector<16x32xf32>
    %cst_7 = arith.constant dense<0.000000e+00> : vector<16xf32>
    %11 = vector.multi_reduction <add>, %10, %cst_7 [1] : vector<16x32xf32> to vector<16xf32>
    %12 = vector.shape_cast %11 : vector<16xf32> to vector<16x1xf32>
    %cst_8 = arith.constant 3.200000e+01 : f32
    %13 = vector.broadcast %cst_8 : f32 to vector<16x1xf32>
    %14 = arith.divf %12, %13 : vector<16x1xf32>
    %15 = vector.broadcast %7 : vector<16x1xf32> to vector<16x32xf32>
    %16 = arith.subf %1, %15 : vector<16x32xf32>
    %cst_9 = arith.constant 9.99999974E-6 : f32
    %17 = vector.broadcast %cst_9 : f32 to vector<16x1xf32>
    %18 = arith.addf %14, %17 : vector<16x1xf32>
    %19 = math.rsqrt %18 : vector<16x1xf32>
    %20 = vector.broadcast %19 : vector<16x1xf32> to vector<16x32xf32>
    %21 = arith.mulf %16, %20 : vector<16x32xf32>
    %22 = vector.broadcast %2 : vector<1x32xf32> to vector<16x32xf32>
    %23 = arith.mulf %21, %22 : vector<16x32xf32>
    %24 = vector.broadcast %3 : vector<1x32xf32> to vector<16x32xf32>
    %25 = arith.addf %23, %24 : vector<16x32xf32>
    %26 = arith.truncf %25 : vector<16x32xf32> to vector<16x32xbf16>
    %c0_10 = arith.constant 0 : index
    %c0_11 = arith.constant 0 : index
    %27 = vector.load %arg4[%c0_10, %c0_11] : memref<32x256xbf16, #tpu.memory_space<vmem>>, vector<32x256xbf16>
    %cst_12 = arith.constant dense<0.000000e+00> : vector<16x256xf32>
    %28 = tpu.matmul %26, %27, %cst_12 {dimension_numbers = #tpu.dot_dimension_numbers<[1], [0], [0], [1], [0, 0, 1, 1], [], []>} : vector<16x32xbf16>, vector<32x256xbf16>, vector<16x256xf32> -> vector<16x256xf32>
    %c0_13 = arith.constant 0 : index
    %c0_14 = arith.constant 0 : index
    %29 = vector.load %arg5[%c0_13, %c0_14] : memref<1x256xf32, #tpu.memory_space<vmem>>, vector<1x256xf32>
    %30 = vector.broadcast %29 : vector<1x256xf32> to vector<16x256xf32>
    %31 = arith.addf %28, %30 : vector<16x256xf32>
    %32 = arith.truncf %31 : vector<16x256xf32> to vector<16x256xbf16>
    %c0_15 = arith.constant 0 : index
    %c0_16 = arith.constant 0 : index
    %33 = vector.load %arg6[%c0_15, %c0_16] : memref<32x256xbf16, #tpu.memory_space<vmem>>, vector<32x256xbf16>
    %cst_17 = arith.constant dense<0.000000e+00> : vector<16x256xf32>
    %34 = tpu.matmul %26, %33, %cst_17 {dimension_numbers = #tpu.dot_dimension_numbers<[1], [0], [0], [1], [0, 0, 1, 1], [], []>} : vector<16x32xbf16>, vector<32x256xbf16>, vector<16x256xf32> -> vector<16x256xf32>
    %c0_18 = arith.constant 0 : index
    %c0_19 = arith.constant 0 : index
    %35 = vector.load %arg7[%c0_18, %c0_19] : memref<1x256xf32, #tpu.memory_space<vmem>>, vector<1x256xf32>
    %36 = vector.broadcast %35 : vector<1x256xf32> to vector<16x256xf32>
    %37 = arith.addf %34, %36 : vector<16x256xf32>
    %38 = arith.truncf %37 : vector<16x256xf32> to vector<16x256xbf16>
    %c0_20 = arith.constant 0 : index
    %c0_21 = arith.constant 0 : index
    %39 = vector.load %arg8[%c0_20, %c0_21] : memref<32x256xbf16, #tpu.memory_space<vmem>>, vector<32x256xbf16>
    %cst_22 = arith.constant dense<0.000000e+00> : vector<16x256xf32>
    %40 = tpu.matmul %26, %39, %cst_22 {dimension_numbers = #tpu.dot_dimension_numbers<[1], [0], [0], [1], [0, 0, 1, 1], [], []>} : vector<16x32xbf16>, vector<32x256xbf16>, vector<16x256xf32> -> vector<16x256xf32>
    %c0_23 = arith.constant 0 : index
    %c0_24 = arith.constant 0 : index
    %41 = vector.load %arg9[%c0_23, %c0_24] : memref<1x256xf32, #tpu.memory_space<vmem>>, vector<1x256xf32>
    %42 = vector.broadcast %41 : vector<1x256xf32> to vector<16x256xf32>
    %43 = arith.addf %40, %42 : vector<16x256xf32>
    %44 = arith.truncf %43 : vector<16x256xf32> to vector<16x256xbf16>
    %45 = vector.shape_cast %32 : vector<16x256xbf16> to vector<2x8x256xbf16>
    %46 = vector.shape_cast %38 : vector<16x256xbf16> to vector<2x8x256xbf16>
    %47 = vector.shape_cast %44 : vector<16x256xbf16> to vector<2x8x256xbf16>
    %cst_25 = arith.constant 0.000000e+00 : f32
    %48 = vector.broadcast %cst_25 : f32 to vector<16x32xf32>
    %49 = vector.extract_strided_slice %45 {offsets = [0, 0, 0], sizes = [2, 8, 128], strides = [1, 1, 1]} : vector<2x8x256xbf16> to vector<2x8x128xbf16>
    %50 = vector.extract_strided_slice %46 {offsets = [0, 0, 0], sizes = [2, 8, 128], strides = [1, 1, 1]} : vector<2x8x256xbf16> to vector<2x8x128xbf16>
    %51 = vector.extract_strided_slice %47 {offsets = [0, 0, 0], sizes = [2, 8, 128], strides = [1, 1, 1]} : vector<2x8x256xbf16> to vector<2x8x128xbf16>
    "tpu.trace_start"() <{level = 10 : i32, message = "bqd,bkd->bqk"}> : () -> ()
    %cst_26 = arith.constant dense<0.000000e+00> : vector<2x8x8xf32>
    %52 = tpu.matmul %49, %50, %cst_26 {dimension_numbers = #tpu.dot_dimension_numbers<[2], [2], [1], [1], [0, 0, 0, 1, 1, 1], [0], [0]>} : vector<2x8x128xbf16>, vector<2x8x128xbf16>, vector<2x8x8xf32> -> vector<2x8x8xf32>
    "tpu.trace_stop"() : () -> ()
    %cst_27 = arith.constant dense<0xFF800000> : vector<2x8xf32>
    %53 = vector.multi_reduction <maximumf>, %52, %cst_27 [2] : vector<2x8x8xf32> to vector<2x8xf32>
    %54 = vector.shape_cast %53 : vector<2x8xf32> to vector<2x8x1xf32>
    %55 = vector.broadcast %54 : vector<2x8x1xf32> to vector<2x8x8xf32>
    %56 = arith.subf %52, %55 : vector<2x8x8xf32>
    %57 = math.exp %56 : vector<2x8x8xf32>
    %cst_28 = arith.constant dense<0.000000e+00> : vector<2x8xf32>
    %58 = vector.multi_reduction <add>, %57, %cst_28 [2] : vector<2x8x8xf32> to vector<2x8xf32>
    %59 = vector.shape_cast %58 : vector<2x8xf32> to vector<2x8x1xf32>
    %60 = tpu.reciprocal %59 {approx = true} : vector<2x8x1xf32> -> vector<2x8x1xf32>
    %61 = arith.truncf %57 : vector<2x8x8xf32> to vector<2x8x8xbf16>
    "tpu.trace_start"() <{level = 10 : i32, message = "bqk,bkd->bqd"}> : () -> ()
    %cst_29 = arith.constant dense<0.000000e+00> : vector<2x8x128xf32>
    %62 = tpu.matmul %61, %51, %cst_29 {dimension_numbers = #tpu.dot_dimension_numbers<[2], [1], [1], [2], [0, 0, 0, 1, 1, 2], [0], [0]>} : vector<2x8x8xbf16>, vector<2x8x128xbf16>, vector<2x8x128xf32> -> vector<2x8x128xf32>
    "tpu.trace_stop"() : () -> ()
    %63 = vector.broadcast %60 : vector<2x8x1xf32> to vector<2x8x128xf32>
    %64 = arith.mulf %62, %63 : vector<2x8x128xf32>
    %65 = vector.shape_cast %64 : vector<2x8x128xf32> to vector<16x128xf32>
    %66 = arith.truncf %65 : vector<16x128xf32> to vector<16x128xbf16>
    %c0_30 = arith.constant 0 : index
    %c0_31 = arith.constant 0 : index
    %67 = vector.load %arg10[%c0_30, %c0_31] : memref<256x32xbf16, #tpu.memory_space<vmem>>, vector<128x32xbf16>
    %cst_32 = arith.constant dense<0.000000e+00> : vector<16x32xf32>
    %68 = tpu.matmul %66, %67, %cst_32 {dimension_numbers = #tpu.dot_dimension_numbers<[1], [0], [0], [1], [0, 0, 1, 1], [], []>} : vector<16x128xbf16>, vector<128x32xbf16>, vector<16x32xf32> -> vector<16x32xf32>
    %69 = arith.addf %48, %68 : vector<16x32xf32>
    %70 = vector.extract_strided_slice %45 {offsets = [0, 0, 128], sizes = [2, 8, 128], strides = [1, 1, 1]} : vector<2x8x256xbf16> to vector<2x8x128xbf16>
    %71 = vector.extract_strided_slice %46 {offsets = [0, 0, 128], sizes = [2, 8, 128], strides = [1, 1, 1]} : vector<2x8x256xbf16> to vector<2x8x128xbf16>
    %72 = vector.extract_strided_slice %47 {offsets = [0, 0, 128], sizes = [2, 8, 128], strides = [1, 1, 1]} : vector<2x8x256xbf16> to vector<2x8x128xbf16>
    "tpu.trace_start"() <{level = 10 : i32, message = "bqd,bkd->bqk"}> : () -> ()
    %cst_33 = arith.constant dense<0.000000e+00> : vector<2x8x8xf32>
    %73 = tpu.matmul %70, %71, %cst_33 {dimension_numbers = #tpu.dot_dimension_numbers<[2], [2], [1], [1], [0, 0, 0, 1, 1, 1], [0], [0]>} : vector<2x8x128xbf16>, vector<2x8x128xbf16>, vector<2x8x8xf32> -> vector<2x8x8xf32>
    "tpu.trace_stop"() : () -> ()
    %cst_34 = arith.constant dense<0xFF800000> : vector<2x8xf32>
    %74 = vector.multi_reduction <maximumf>, %73, %cst_34 [2] : vector<2x8x8xf32> to vector<2x8xf32>
    %75 = vector.shape_cast %74 : vector<2x8xf32> to vector<2x8x1xf32>
    %76 = vector.broadcast %75 : vector<2x8x1xf32> to vector<2x8x8xf32>
    %77 = arith.subf %73, %76 : vector<2x8x8xf32>
    %78 = math.exp %77 : vector<2x8x8xf32>
    %cst_35 = arith.constant dense<0.000000e+00> : vector<2x8xf32>
    %79 = vector.multi_reduction <add>, %78, %cst_35 [2] : vector<2x8x8xf32> to vector<2x8xf32>
    %80 = vector.shape_cast %79 : vector<2x8xf32> to vector<2x8x1xf32>
    %81 = tpu.reciprocal %80 {approx = true} : vector<2x8x1xf32> -> vector<2x8x1xf32>
    %82 = arith.truncf %78 : vector<2x8x8xf32> to vector<2x8x8xbf16>
    "tpu.trace_start"() <{level = 10 : i32, message = "bqk,bkd->bqd"}> : () -> ()
    %cst_36 = arith.constant dense<0.000000e+00> : vector<2x8x128xf32>
    %83 = tpu.matmul %82, %72, %cst_36 {dimension_numbers = #tpu.dot_dimension_numbers<[2], [1], [1], [2], [0, 0, 0, 1, 1, 2], [0], [0]>} : vector<2x8x8xbf16>, vector<2x8x128xbf16>, vector<2x8x128xf32> -> vector<2x8x128xf32>
    "tpu.trace_stop"() : () -> ()
    %84 = vector.broadcast %81 : vector<2x8x1xf32> to vector<2x8x128xf32>
    %85 = arith.mulf %83, %84 : vector<2x8x128xf32>
    %86 = vector.shape_cast %85 : vector<2x8x128xf32> to vector<16x128xf32>
    %87 = arith.truncf %86 : vector<16x128xf32> to vector<16x128xbf16>
    %c128 = arith.constant 128 : index
    %c0_37 = arith.constant 0 : index
    %88 = vector.load %arg10[%c128, %c0_37] : memref<256x32xbf16, #tpu.memory_space<vmem>>, vector<128x32xbf16>
    %cst_38 = arith.constant dense<0.000000e+00> : vector<16x32xf32>
    %89 = tpu.matmul %87, %88, %cst_38 {dimension_numbers = #tpu.dot_dimension_numbers<[1], [0], [0], [1], [0, 0, 1, 1], [], []>} : vector<16x128xbf16>, vector<128x32xbf16>, vector<16x32xf32> -> vector<16x32xf32>
    %90 = arith.addf %69, %89 : vector<16x32xf32>
    %91 = arith.addf %1, %90 : vector<16x32xf32>
    %c0_39 = arith.constant 0 : index
    %c0_40 = arith.constant 0 : index
    %92 = vector.load %arg11[%c0_39, %c0_40] : memref<1x32xf32, #tpu.memory_space<vmem>>, vector<1x32xf32>
    %93 = vector.broadcast %92 : vector<1x32xf32> to vector<16x32xf32>
    %94 = arith.addf %91, %93 : vector<16x32xf32>
    %c0_41 = arith.constant 0 : index
    %c0_42 = arith.constant 0 : index
    %95 = vector.load %arg12[%c0_41, %c0_42] : memref<1x32xf32, #tpu.memory_space<vmem>>, vector<1x32xf32>
    %c0_43 = arith.constant 0 : index
    %c0_44 = arith.constant 0 : index
    %96 = vector.load %arg13[%c0_43, %c0_44] : memref<1x32xf32, #tpu.memory_space<vmem>>, vector<1x32xf32>
    %cst_45 = arith.constant dense<0.000000e+00> : vector<16xf32>
    %97 = vector.multi_reduction <add>, %94, %cst_45 [1] : vector<16x32xf32> to vector<16xf32>
    %98 = vector.shape_cast %97 : vector<16xf32> to vector<16x1xf32>
    %cst_46 = arith.constant 3.200000e+01 : f32
    %99 = vector.broadcast %cst_46 : f32 to vector<16x1xf32>
    %100 = arith.divf %98, %99 : vector<16x1xf32>
    %101 = vector.broadcast %100 : vector<16x1xf32> to vector<16x32xf32>
    %102 = arith.subf %94, %101 : vector<16x32xf32>
    %103 = arith.mulf %102, %102 : vector<16x32xf32>
    %cst_47 = arith.constant dense<0.000000e+00> : vector<16xf32>
    %104 = vector.multi_reduction <add>, %103, %cst_47 [1] : vector<16x32xf32> to vector<16xf32>
    %105 = vector.shape_cast %104 : vector<16xf32> to vector<16x1xf32>
    %cst_48 = arith.constant 3.200000e+01 : f32
    %106 = vector.broadcast %cst_48 : f32 to vector<16x1xf32>
    %107 = arith.divf %105, %106 : vector<16x1xf32>
    %108 = vector.broadcast %100 : vector<16x1xf32> to vector<16x32xf32>
    %109 = arith.subf %94, %108 : vector<16x32xf32>
    %cst_49 = arith.constant 9.99999974E-6 : f32
    %110 = vector.broadcast %cst_49 : f32 to vector<16x1xf32>
    %111 = arith.addf %107, %110 : vector<16x1xf32>
    %112 = math.rsqrt %111 : vector<16x1xf32>
    %113 = vector.broadcast %112 : vector<16x1xf32> to vector<16x32xf32>
    %114 = arith.mulf %109, %113 : vector<16x32xf32>
    %115 = vector.broadcast %95 : vector<1x32xf32> to vector<16x32xf32>
    %116 = arith.mulf %114, %115 : vector<16x32xf32>
    %117 = vector.broadcast %96 : vector<1x32xf32> to vector<16x32xf32>
    %118 = arith.addf %116, %117 : vector<16x32xf32>
    %119 = arith.truncf %118 : vector<16x32xf32> to vector<16x32xbf16>
    %c0_50 = arith.constant 0 : index
    %c0_51 = arith.constant 0 : index
    %120 = vector.load %arg14[%c0_50, %c0_51] : memref<32x128xbf16, #tpu.memory_space<vmem>>, vector<32x128xbf16>
    %cst_52 = arith.constant dense<0.000000e+00> : vector<16x128xf32>
    %121 = tpu.matmul %119, %120, %cst_52 {dimension_numbers = #tpu.dot_dimension_numbers<[1], [0], [0], [1], [0, 0, 1, 1], [], []>} : vector<16x32xbf16>, vector<32x128xbf16>, vector<16x128xf32> -> vector<16x128xf32>
    %c0_53 = arith.constant 0 : index
    %c0_54 = arith.constant 0 : index
    %122 = vector.load %arg15[%c0_53, %c0_54] : memref<1x128xf32, #tpu.memory_space<vmem>>, vector<1x128xf32>
    %123 = vector.broadcast %122 : vector<1x128xf32> to vector<16x128xf32>
    %124 = arith.addf %121, %123 : vector<16x128xf32>
    %125 = arith.negf %124 : vector<16x128xf32>
    %126 = math.exp %125 : vector<16x128xf32>
    %cst_55 = arith.constant 1.000000e+00 : f32
    %127 = vector.broadcast %cst_55 : f32 to vector<16x128xf32>
    %128 = arith.addf %127, %126 : vector<16x128xf32>
    %129 = arith.divf %127, %128 : vector<16x128xf32>
    %130 = arith.mulf %124, %129 : vector<16x128xf32>
    %131 = arith.truncf %130 : vector<16x128xf32> to vector<16x128xbf16>
    %c0_56 = arith.constant 0 : index
    %c0_57 = arith.constant 0 : index
    %132 = vector.load %arg16[%c0_56, %c0_57] : memref<128x32xbf16, #tpu.memory_space<vmem>>, vector<128x32xbf16>
    %cst_58 = arith.constant dense<0.000000e+00> : vector<16x32xf32>
    %133 = tpu.matmul %131, %132, %cst_58 {dimension_numbers = #tpu.dot_dimension_numbers<[1], [0], [0], [1], [0, 0, 1, 1], [], []>} : vector<16x128xbf16>, vector<128x32xbf16>, vector<16x32xf32> -> vector<16x32xf32>
    %134 = arith.addf %94, %133 : vector<16x32xf32>
    %c0_59 = arith.constant 0 : index
    %c0_60 = arith.constant 0 : index
    %135 = vector.load %arg17[%c0_59, %c0_60] : memref<1x32xf32, #tpu.memory_space<vmem>>, vector<1x32xf32>
    %136 = vector.broadcast %135 : vector<1x32xf32> to vector<16x32xf32>
    %137 = arith.addf %134, %136 : vector<16x32xf32>
    %138 = vector.shape_cast %137 : vector<16x32xf32> to vector<2x8x32xf32>
    %c0_61 = arith.constant 0 : index
    %c0_62 = arith.constant 0 : index
    %c0_63 = arith.constant 0 : index
    %139 = vector.load %arg18[%c0_61, %c0_62, %c0_63] : memref<2x8x32xf32, #tpu.memory_space<vmem>>, vector<2x8x32xf32>
    tpu.vector_store %arg18[%c0_61, %c0_62, %c0_63], %138 {strides = array<i32>} : memref<2x8x32xf32, #tpu.memory_space<vmem>>, vector<2x8x32xf32>,
    return
  }
  func.func @transform_0(%arg0: i32) -> (i32, i32, i32) {
    %c0_i32 = arith.constant 0 : i32
    %c0_i32_0 = arith.constant 0 : i32
    %c0_i32_1 = arith.constant 0 : i32
    return %arg0, %c0_i32, %c0_i32_0 : i32, i32, i32
  }
  func.func @transform_1(%arg0: i32) -> (i32, i32) {
    %c0_i32 = arith.constant 0 : i32
    %c0_i32_0 = arith.constant 0 : i32
    %c0_i32_1 = arith.constant 0 : i32
    return %c0_i32, %c0_i32_0 : i32, i32
  }
  func.func @transform_2(%arg0: i32) -> (i32, i32) {
    %c0_i32 = arith.constant 0 : i32
    %c0_i32_0 = arith.constant 0 : i32
    %c0_i32_1 = arith.constant 0 : i32
    return %c0_i32, %c0_i32_0 : i32, i32
  }
  func.func @transform_3(%arg0: i32) -> (i32, i32) {
    %c0_i32 = arith.constant 0 : i32
    %c0_i32_0 = arith.constant 0 : i32
    %c0_i32_1 = arith.constant 0 : i32
    return %c0_i32, %c0_i32_0 : i32, i32
  }
  func.func @transform_4(%arg0: i32) -> (i32, i32) {
    %c0_i32 = arith.constant 0 : i32
    %c0_i32_0 = arith.constant 0 : i32
    %c0_i32_1 = arith.constant 0 : i32
    return %c0_i32, %c0_i32_0 : i32, i32
  }
  func.func @transform_5(%arg0: i32) -> (i32, i32) {
    %c0_i32 = arith.constant 0 : i32
    %c0_i32_0 = arith.constant 0 : i32
    %c0_i32_1 = arith.constant 0 : i32
    return %c0_i32, %c0_i32_0 : i32, i32
  }
  func.func @transform_6(%arg0: i32) -> (i32, i32) {
    %c0_i32 = arith.constant 0 : i32
    %c0_i32_0 = arith.constant 0 : i32
    %c0_i32_1 = arith.constant 0 : i32
    return %c0_i32, %c0_i32_0 : i32, i32
  }
  func.func @transform_7(%arg0: i32) -> (i32, i32) {
    %c0_i32 = arith.constant 0 : i32
    %c0_i32_0 = arith.constant 0 : i32
    %c0_i32_1 = arith.constant 0 : i32
    return %c0_i32, %c0_i32_0 : i32, i32
  }
  func.func @transform_8(%arg0: i32) -> (i32, i32) {
    %c0_i32 = arith.constant 0 : i32
    %c0_i32_0 = arith.constant 0 : i32
    %c0_i32_1 = arith.constant 0 : i32
    return %c0_i32, %c0_i32_0 : i32, i32
  }
  func.func @transform_9(%arg0: i32) -> (i32, i32) {
    %c0_i32 = arith.constant 0 : i32
    %c0_i32_0 = arith.constant 0 : i32
    %c0_i32_1 = arith.constant 0 : i32
    return %c0_i32, %c0_i32_0 : i32, i32
  }
  func.func @transform_10(%arg0: i32) -> (i32, i32) {
    %c0_i32 = arith.constant 0 : i32
    %c0_i32_0 = arith.constant 0 : i32
    %c0_i32_1 = arith.constant 0 : i32
    return %c0_i32, %c0_i32_0 : i32, i32
  }
  func.func @transform_11(%arg0: i32) -> (i32, i32) {
    %c0_i32 = arith.constant 0 : i32
    %c0_i32_0 = arith.constant 0 : i32
    %c0_i32_1 = arith.constant 0 : i32
    return %c0_i32, %c0_i32_0 : i32, i32
  }
  func.func @transform_12(%arg0: i32) -> (i32, i32) {
    %c0_i32 = arith.constant 0 : i32
    %c0_i32_0 = arith.constant 0 : i32
    %c0_i32_1 = arith.constant 0 : i32
    return %c0_i32, %c0_i32_0 : i32, i32
  }
  func.func @transform_13(%arg0: i32) -> (i32, i32) {
    %c0_i32 = arith.constant 0 : i32
    %c0_i32_0 = arith.constant 0 : i32
    %c0_i32_1 = arith.constant 0 : i32
    return %c0_i32, %c0_i32_0 : i32, i32
  }
  func.func @transform_14(%arg0: i32) -> (i32, i32) {
    %c0_i32 = arith.constant 0 : i32
    %c0_i32_0 = arith.constant 0 : i32
    %c0_i32_1 = arith.constant 0 : i32
    return %c0_i32, %c0_i32_0 : i32, i32
  }
  func.func @transform_15(%arg0: i32) -> (i32, i32) {
    %c0_i32 = arith.constant 0 : i32
    %c0_i32_0 = arith.constant 0 : i32
    %c0_i32_1 = arith.constant 0 : i32
    return %c0_i32, %c0_i32_0 : i32, i32
  }
  func.func @transform_16(%arg0: i32) -> (i32, i32) {
    %c0_i32 = arith.constant 0 : i32
    %c0_i32_0 = arith.constant 0 : i32
    %c0_i32_1 = arith.constant 0 : i32
    return %c0_i32, %c0_i32_0 : i32, i32
  }
  func.func @transform_17(%arg0: i32) -> (i32, i32, i32) {
    %c0_i32 = arith.constant 0 : i32
    %c0_i32_0 = arith.constant 0 : i32
    %c0_i32_1 = arith.constant 0 : i32
    return %arg0, %c0_i32, %c0_i32_0 : i32, i32, i32
  }
}

</mosaic_0001>

<llo_original>
// kernel: tpu_custom_call.1
$region0: #{tpu_custom_call.1}
  #allocation0 [shape = 'u32[]', space=smem, size = 0x4, offset = 0x4, fixed_abs, tag = 'smem constant byte address 0x4 - core index']
  #allocation1 [shape = 'u32[144,128]{1,0:T(1,128)}', space=vmem, size = 0x12000, scoped, tag = 'internal scratch']
  %s0 = inlined_call_operand.vmem [shape: f32[2,8,32], index: 0, kind: input, shape index: {}]
  %s1 = inlined_call_operand.vmem [shape: f32[1,32], index: 1, kind: input, shape index: {}]
  %s2 = inlined_call_operand.vmem [shape: f32[1,32], index: 2, kind: input, shape index: {}]
  %s3 = inlined_call_operand.vmem [shape: bf16[32,256], index: 3, kind: input, shape index: {}]
  %s4 = inlined_call_operand.vmem [shape: f32[1,256], index: 4, kind: input, shape index: {}]
  %s5 = inlined_call_operand.vmem [shape: bf16[32,256], index: 5, kind: input, shape index: {}]
  %s6 = inlined_call_operand.vmem [shape: f32[1,256], index: 6, kind: input, shape index: {}]
  %s7 = inlined_call_operand.vmem [shape: bf16[32,256], index: 7, kind: input, shape index: {}]
  %s8 = inlined_call_operand.vmem [shape: f32[1,256], index: 8, kind: input, shape index: {}]
  %s9 = inlined_call_operand.vmem [shape: bf16[256,32], index: 9, kind: input, shape index: {}]
  %s10 = inlined_call_operand.vmem [shape: f32[1,32], index: 10, kind: input, shape index: {}]
  %s11 = inlined_call_operand.vmem [shape: f32[1,32], index: 11, kind: input, shape index: {}]
  %s12 = inlined_call_operand.vmem [shape: f32[1,32], index: 12, kind: input, shape index: {}]
  %s13 = inlined_call_operand.vmem [shape: bf16[32,128], index: 13, kind: input, shape index: {}]
  %s14 = inlined_call_operand.vmem [shape: f32[1,128], index: 14, kind: input, shape index: {}]
  %s15 = inlined_call_operand.vmem [shape: bf16[128,32], index: 15, kind: input, shape index: {}]
  %s16 = inlined_call_operand.vmem [shape: f32[1,32], index: 16, kind: input, shape index: {}]
  %s17 = inlined_call_operand.hbm [shape: f32[2,8,32], index: 17, kind: output, shape index: {}]
  %s18 = sld [smem:[#allocation0]]
  $region78: #{tpu_custom_call.1} parent=0
    _
  %s20 = ssub.s32 1, %s18
  %s21 = scalar_select 0, %s20, %s18
  $region1: #{tpu_custom_call.1} parent=0
    #allocation2 [shape = 'u8[8192]{0}', space=vmem, size = 0x2000, scoped, tag = 'output window, operand 0, single buffered']
    #allocation3 [shape = 's32[1]{0}', space=sflag, size = 0x4, scoped, tag = 'scoped memory for tpu_custom_call.1']
    %22 = vsyncpa [#allocation3], 0
    // Predicated region
    $region2: #{tpu_custom_call.1} parent=1 // pred_check
      _
    $region3: #{tpu_custom_call.1} parent=1 // pred_check_branch
      %24 = sbr.rel (0) target = $region5
    $region4: #{tpu_custom_call.1} parent=1 // pred_region
      _
    $region5: #{tpu_custom_call.1} parent=1 // pred_fallthru
      _
    // Predicated region
    $region6: #{tpu_custom_call.1} parent=1 // pred_check
      _
    $region7: #{tpu_custom_call.1} parent=1 // pred_check_branch
      %26 = sbr.rel (0) target = $region9
    $region8: #{tpu_custom_call.1} parent=1 // pred_region
      _
    $region9: #{tpu_custom_call.1} parent=1 // pred_fallthru
      _
    // Predicated region
    $region10: #{tpu_custom_call.1} parent=1 // pred_check
      _
    $region11: #{tpu_custom_call.1} parent=1 // pred_check_branch
      %28 = sbr.rel (0) target = $region13
    $region12: #{tpu_custom_call.1} parent=1 // pred_region
      _
    $region13: #{tpu_custom_call.1} parent=1 // pred_fallthru
      _
    // Predicated region
    $region14: #{tpu_custom_call.1} parent=1 // pred_check
      _
    $region15: #{tpu_custom_call.1} parent=1 // pred_check_branch
      %30 = sbr.rel (0) target = $region17
    $region16: #{tpu_custom_call.1} parent=1 // pred_region
      _
    $region17: #{tpu_custom_call.1} parent=1 // pred_fallthru
      _
    // Predicated region
    $region18: #{tpu_custom_call.1} parent=1 // pred_check
      _
    $region19: #{tpu_custom_call.1} parent=1 // pred_check_branch
      %32 = sbr.rel (0) target = $region21
    $region20: #{tpu_custom_call.1} parent=1 // pred_region
      _
    $region21: #{tpu_custom_call.1} parent=1 // pred_fallthru
      _
    // Predicated region
    $region22: #{tpu_custom_call.1} parent=1 // pred_check
      _
    $region23: #{tpu_custom_call.1} parent=1 // pred_check_branch
      %34 = sbr.rel (0) target = $region25
    $region24: #{tpu_custom_call.1} parent=1 // pred_region
      _
    $region25: #{tpu_custom_call.1} parent=1 // pred_fallthru
      _
    // Predicated region
    $region26: #{tpu_custom_call.1} parent=1 // pred_check
      _
    $region27: #{tpu_custom_call.1} parent=1 // pred_check_branch
      %36 = sbr.rel (0) target = $region29
    $region28: #{tpu_custom_call.1} parent=1 // pred_region
      _
    $region29: #{tpu_custom_call.1} parent=1 // pred_fallthru
      _
    // Predicated region
    $region30: #{tpu_custom_call.1} parent=1 // pred_check
      _
    $region31: #{tpu_custom_call.1} parent=1 // pred_check_branch
      %38 = sbr.rel (0) target = $region33
    $region32: #{tpu_custom_call.1} parent=1 // pred_region
      _
    $region33: #{tpu_custom_call.1} parent=1 // pred_fallthru
      _
    // Predicated region
    $region34: #{tpu_custom_call.1} parent=1 // pred_check
      _
    $region35: #{tpu_custom_call.1} parent=1 // pred_check_branch
      %40 = sbr.rel (0) target = $region37
    $region36: #{tpu_custom_call.1} parent=1 // pred_region
      _
    $region37: #{tpu_custom_call.1} parent=1 // pred_fallthru
      _
    // Predicated region
    $region38: #{tpu_custom_call.1} parent=1 // pred_check
      _
    $region39: #{tpu_custom_call.1} parent=1 // pred_check_branch
      %42 = sbr.rel (0) target = $region41
    $region40: #{tpu_custom_call.1} parent=1 // pred_region
      _
    $region41: #{tpu_custom_call.1} parent=1 // pred_fallthru
      _
    // Predicated region
    $region42: #{tpu_custom_call.1} parent=1 // pred_check
      _
    $region43: #{tpu_custom_call.1} parent=1 // pred_check_branch
      %44 = sbr.rel (0) target = $region45
    $region44: #{tpu_custom_call.1} parent=1 // pred_region
      _
    $region45: #{tpu_custom_call.1} parent=1 // pred_fallthru
      _
    // Predicated region
    $region46: #{tpu_custom_call.1} parent=1 // pred_check
      _
    $region47: #{tpu_custom_call.1} parent=1 // pred_check_branch
      %46 = sbr.rel (0) target = $region49
    $region48: #{tpu_custom_call.1} parent=1 // pred_region
      _
    $region49: #{tpu_custom_call.1} parent=1 // pred_fallthru
      _
    // Predicated region
    $region50: #{tpu_custom_call.1} parent=1 // pred_check
      _
    $region51: #{tpu_custom_call.1} parent=1 // pred_check_branch
      %48 = sbr.rel (0) target = $region53
    $region52: #{tpu_custom_call.1} parent=1 // pred_region
      _
    $region53: #{tpu_custom_call.1} parent=1 // pred_fallthru
      _
    // Predicated region
    $region54: #{tpu_custom_call.1} parent=1 // pred_check
      _
    $region55: #{tpu_custom_call.1} parent=1 // pred_check_branch
      %50 = sbr.rel (0) target = $region57
    $region56: #{tpu_custom_call.1} parent=1 // pred_region
      _
    $region57: #{tpu_custom_call.1} parent=1 // pred_fallthru
      _
    // Predicated region
    $region58: #{tpu_custom_call.1} parent=1 // pred_check
      _
    $region59: #{tpu_custom_call.1} parent=1 // pred_check_branch
      %52 = sbr.rel (0) target = $region61
    $region60: #{tpu_custom_call.1} parent=1 // pred_region
      _
    $region61: #{tpu_custom_call.1} parent=1 // pred_fallthru
      _
    // Predicated region
    $region62: #{tpu_custom_call.1} parent=1 // pred_check
      _
    $region63: #{tpu_custom_call.1} parent=1 // pred_check_branch
      %54 = sbr.rel (0) target = $region65
    $region64: #{tpu_custom_call.1} parent=1 // pred_region
      _
    $region65: #{tpu_custom_call.1} parent=1 // pred_fallthru
      _
    // Predicated region
    $region66: #{tpu_custom_call.1} parent=1 // pred_check
      _
    $region67: #{tpu_custom_call.1} parent=1 // pred_check_branch
      %56 = sbr.rel (0) target = $region69
    $region68: #{tpu_custom_call.1} parent=1 // pred_region
      _
    $region69: #{tpu_custom_call.1} parent=1 // pred_fallthru
      _
    %v58 = vld [vmem:[%s0] sm:$0xff]
    %v59 = vld [vmem:[%s0 + $0x8] sm:$0xff]
    %v60 = vld [vmem:[%s1] sm:$0x1]
    %v61 = vld [vmem:[%s2] sm:$0x1]
    %vm62 = vcmask 261120
    %v63 = vsel %vm62, %v58, 0.0
    %64 = vadd.xlane.f32.xlu0 %v63
    %v65 = vpop.xlane.xlu0 %64
    %v66 = vsel %vm62, %v59, 0.0
    %67 = vadd.xlane.f32.xlu0 %v66
    %v68 = vpop.xlane.xlu0 %67
    %v69 = vrcp.pop 32.0
    %v70 = vmul.f32 %v65, %v69
    %v71 = vmul.f32 %v68, %v69
    %v72 = vsub.f32 %v58, %v70
    %v73 = vsub.f32 %v59, %v71
    %v74 = vmul.f32 %v72, %v72
    %v75 = vmul.f32 %v73, %v73
    %v76 = vsel %vm62, %v74, 0.0
    %77 = vadd.xlane.f32.xlu0 %v76
    %v78 = vpop.xlane.xlu0 %77
    %v79 = vsel %vm62, %v75, 0.0
    %80 = vadd.xlane.f32.xlu0 %v79
    %v81 = vpop.xlane.xlu0 %80
    %v82 = vmul.f32 %v78, %v69
    %v83 = vmul.f32 %v81, %v69
    %v84 = vadd.f32 %v82, 1e-05
    %v85 = vadd.f32 %v83, 1e-05
    %v86 = vrsqrt.pop %v84
    %v87 = vrsqrt.pop %v85
    %v88 = vmul.f32 %v72, %v86
    %v89 = vmul.f32 %v73, %v87
    %v91 = vlaneseq
    %v92 = vshrl.u32 %v91, 7
    %v93 = vsub.s32 0, %v92
    %v94 = vrot.slane %v60, %v93
    %v96 = vmul.f32 %v88, %v94
    %v97 = vmul.f32 %v89, %v94
    %v99 = vlaneseq
    %v100 = vshrl.u32 %v99, 7
    %v101 = vsub.s32 0, %v100
    %v102 = vrot.slane %v61, %v101
    %v104 = vadd.f32 %v96, %v102
    %v105 = vadd.f32 %v97, %v102
    %v106 = vpack.c.bf16 %v105, %v104
    %v107 = vld [vmem:[%s3] sm:$0xff]
    %v108 = vld [vmem:[%s3 + $0x8] sm:$0xff]
    %v109 = vld [vmem:[%s3 + $0x10] sm:$0xff]
    %v110 = vld [vmem:[%s3 + $0x18] sm:$0xff]
    %v111 = vld [vmem:[%s4] sm:$0x3]
    %v113 = vlaneseq
    %v114 = vshrl.u32 %v113, 7
    %v115 = vsub.s32 0, %v114
    %v116 = vrot.slane %v111, %v115
    %v117 = vlaneseq
    %v118 = vshrl.u32 %v117, 7
    %v119 = vsub.s32 1, %v118
    %v120 = vrot.slane %v111, %v119
    %v127 = vunpack.c.l.b16 %v107
    %v128 = vunpack.c.h.b16 %v107
    %v129 = vunpack.c.l.b16 %v108
    %v130 = vunpack.c.h.b16 %v108
    %v131 = vunpack.c.l.b16 %v109
    %v132 = vunpack.c.h.b16 %v109
    %v133 = vunpack.c.l.b16 %v110
    %v134 = vunpack.c.h.b16 %v110
    %v135 = vpack.c.b16 %v129, %v127
    %v136 = vpack.c.b16 %v130, %v128
    %v137 = vpack.c.b16 %v133, %v131
    %v138 = vpack.c.b16 %v134, %v132
    %v144 = vsel %vm62, %v106, 0
    %146 = vmatprep.subr.bf16.mxu0 %v136
    %147 = vmatpush1.bf16.msra.mxu0 %v135
    %148 = vmatprep.subr.bf16.mxu0 %v138
    %149 = vmatpush1.bf16.msra.mxu0 %v137
    %150 = vmatprep.subr.bf16.mxu0 0
    %151 = vmatpush1.bf16.msra.mxu0 0
    %152 = vmatprep.subr.bf16.mxu0 0
    %153 = vmatpush1.bf16.msra.mxu0 0
    %154 = vmatprep.subr.bf16.mxu0 0
    %155 = vmatpush1.bf16.msra.mxu0 0
    %156 = vmatprep.subr.bf16.mxu0 0
    %157 = vmatpush1.bf16.msra.mxu0 0
    %158 = vmatprep.subr.bf16.mxu0 0
    %159 = vmatpush1.bf16.msra.mxu0 0
    %160 = vmatprep.subr.bf16.mxu0 0
    %161 = vmatpush1.bf16.msra.mxu0 0
    %162 = vmatprep.subr.bf16.mxu0 0
    %163 = vmatpush1.bf16.msra.mxu0 0
    %164 = vmatprep.subr.bf16.mxu0 0
    %165 = vmatpush1.bf16.msra.mxu0 0
    %166 = vmatprep.subr.bf16.mxu0 0
    %167 = vmatpush1.bf16.msra.mxu0 0
    %168 = vmatprep.subr.bf16.mxu0 0
    %169 = vmatpush1.bf16.msra.mxu0 0
    %170 = vmatprep.subr.bf16.mxu0 0
    %171 = vmatpush1.bf16.msra.mxu0 0
    %172 = vmatprep.subr.bf16.mxu0 0
    %173 = vmatpush1.bf16.msra.mxu0 0
    %174 = vmatprep.subr.bf16.mxu0 0
    %175 = vmatpush1.bf16.msra.mxu0 0
    %176 = vmatprep.subr.bf16.mxu0 0
    %177 = vmatpush1.bf16.msra.mxu0 0
    %178 = vmatprep.mubr.bf16.mxu0 0
    %179 = vmatmul.mubr.bf16.gmra.mrb[0].mxu0 %v144
    %v180 = vpop.f32.mrb[0].mxu0
    %v181 = vadd.f32 %v116, %v180
    %v182 = vpop.f32.mrb[0].mxu0
    %v183 = vadd.f32 %v120, %v182
    %v184 = vpop.f32.mrb[0].mxu0
    %v185 = vadd.f32 %v116, %v184
    %v186 = vpop.f32.mrb[0].mxu0
    %v187 = vadd.f32 %v120, %v186
    %188 = vdwg.mxu0
    %v189 = vpack.c.bf16 %v185, %v181
    %v190 = vpack.c.bf16 %v187, %v183
    %v191 = vld [vmem:[%s5] sm:$0xff]
    %v192 = vld [vmem:[%s5 + $0x8] sm:$0xff]
    %v193 = vld [vmem:[%s5 + $0x10] sm:$0xff]
    %v194 = vld [vmem:[%s5 + $0x18] sm:$0xff]
    %v195 = vld [vmem:[%s6] sm:$0x3]
    %v197 = vlaneseq
    %v198 = vshrl.u32 %v197, 7
    %v199 = vsub.s32 0, %v198
    %v200 = vrot.slane %v195, %v199
    %v201 = vlaneseq
    %v202 = vshrl.u32 %v201, 7
    %v203 = vsub.s32 1, %v202
    %v204 = vrot.slane %v195, %v203
    %v211 = vunpack.c.l.b16 %v191
    %v212 = vunpack.c.h.b16 %v191
    %v213 = vunpack.c.l.b16 %v192
    %v214 = vunpack.c.h.b16 %v192
    %v215 = vunpack.c.l.b16 %v193
    %v216 = vunpack.c.h.b16 %v193
    %v217 = vunpack.c.l.b16 %v194
    %v218 = vunpack.c.h.b16 %v194
    %v219 = vpack.c.b16 %v213, %v211
    %v220 = vpack.c.b16 %v214, %v212
    %v221 = vpack.c.b16 %v217, %v215
    %v222 = vpack.c.b16 %v218, %v216
    %227 = vmatprep.subr.bf16.mxu0 %v220
    %228 = vmatpush1.bf16.msra.mxu0 %v219
    %229 = vmatprep.subr.bf16.mxu0 %v222
    %230 = vmatpush1.bf16.msra.mxu0 %v221
    %231 = vmatprep.subr.bf16.mxu0 0
    %232 = vmatpush1.bf16.msra.mxu0 0
    %233 = vmatprep.subr.bf16.mxu0 0
    %234 = vmatpush1.bf16.msra.mxu0 0
    %235 = vmatprep.subr.bf16.mxu0 0
    %236 = vmatpush1.bf16.msra.mxu0 0
    %237 = vmatprep.subr.bf16.mxu0 0
    %238 = vmatpush1.bf16.msra.mxu0 0
    %239 = vmatprep.subr.bf16.mxu0 0
    %240 = vmatpush1.bf16.msra.mxu0 0
    %241 = vmatprep.subr.bf16.mxu0 0
    %242 = vmatpush1.bf16.msra.mxu0 0
    %243 = vmatprep.subr.bf16.mxu0 0
    %244 = vmatpush1.bf16.msra.mxu0 0
    %245 = vmatprep.subr.bf16.mxu0 0
    %246 = vmatpush1.bf16.msra.mxu0 0
    %247 = vmatprep.subr.bf16.mxu0 0
    %248 = vmatpush1.bf16.msra.mxu0 0
    %249 = vmatprep.subr.bf16.mxu0 0
    %250 = vmatpush1.bf16.msra.mxu0 0
    %251 = vmatprep.subr.bf16.mxu0 0
    %252 = vmatpush1.bf16.msra.mxu0 0
    %253 = vmatprep.subr.bf16.mxu0 0
    %254 = vmatpush1.bf16.msra.mxu0 0
    %255 = vmatprep.subr.bf16.mxu0 0
    %256 = vmatpush1.bf16.msra.mxu0 0
    %257 = vmatprep.subr.bf16.mxu0 0
    %258 = vmatpush1.bf16.msra.mxu0 0
    %259 = vmatprep.mubr.bf16.mxu0 0
    %260 = vmatmul.mubr.bf16.gmra.mrb[0].mxu0 %v144
    %v261 = vpop.f32.mrb[0].mxu0
    %v262 = vadd.f32 %v200, %v261
    %v263 = vpop.f32.mrb[0].mxu0
    %v264 = vadd.f32 %v204, %v263
    %v265 = vpop.f32.mrb[0].mxu0
    %v266 = vadd.f32 %v200, %v265
    %v267 = vpop.f32.mrb[0].mxu0
    %v268 = vadd.f32 %v204, %v267
    %269 = vdwg.mxu0
    %v270 = vpack.c.bf16 %v266, %v262
    %v271 = vpack.c.bf16 %v268, %v264
    %v272 = vld [vmem:[%s7] sm:$0xff]
    %v273 = vld [vmem:[%s7 + $0x8] sm:$0xff]
    %v274 = vld [vmem:[%s7 + $0x10] sm:$0xff]
    %v275 = vld [vmem:[%s7 + $0x18] sm:$0xff]
    %v276 = vld [vmem:[%s8] sm:$0x3]
    %v278 = vlaneseq
    %v279 = vshrl.u32 %v278, 7
    %v280 = vsub.s32 0, %v279
    %v281 = vrot.slane %v276, %v280
    %v282 = vlaneseq
    %v283 = vshrl.u32 %v282, 7
    %v284 = vsub.s32 1, %v283
    %v285 = vrot.slane %v276, %v284
    %v292 = vunpack.c.l.b16 %v272
    %v293 = vunpack.c.h.b16 %v272
    %v294 = vunpack.c.l.b16 %v273
    %v295 = vunpack.c.h.b16 %v273
    %v296 = vunpack.c.l.b16 %v274
    %v297 = vunpack.c.h.b16 %v274
    %v298 = vunpack.c.l.b16 %v275
    %v299 = vunpack.c.h.b16 %v275
    %v300 = vpack.c.b16 %v294, %v292
    %v301 = vpack.c.b16 %v295, %v293
    %v302 = vpack.c.b16 %v298, %v296
    %v303 = vpack.c.b16 %v299, %v297
    %308 = vmatprep.subr.bf16.mxu0 %v301
    %309 = vmatpush1.bf16.msra.mxu0 %v300
    %310 = vmatprep.subr.bf16.mxu0 %v303
    %311 = vmatpush1.bf16.msra.mxu0 %v302
    %312 = vmatprep.subr.bf16.mxu0 0
    %313 = vmatpush1.bf16.msra.mxu0 0
    %314 = vmatprep.subr.bf16.mxu0 0
    %315 = vmatpush1.bf16.msra.mxu0 0
    %316 = vmatprep.subr.bf16.mxu0 0
    %317 = vmatpush1.bf16.msra.mxu0 0
    %318 = vmatprep.subr.bf16.mxu0 0
    %319 = vmatpush1.bf16.msra.mxu0 0
    %320 = vmatprep.subr.bf16.mxu0 0
    %321 = vmatpush1.bf16.msra.mxu0 0
    %322 = vmatprep.subr.bf16.mxu0 0
    %323 = vmatpush1.bf16.msra.mxu0 0
    %324 = vmatprep.subr.bf16.mxu0 0
    %325 = vmatpush1.bf16.msra.mxu0 0
    %326 = vmatprep.subr.bf16.mxu0 0
    %327 = vmatpush1.bf16.msra.mxu0 0
    %328 = vmatprep.subr.bf16.mxu0 0
    %329 = vmatpush1.bf16.msra.mxu0 0
    %330 = vmatprep.subr.bf16.mxu0 0
    %331 = vmatpush1.bf16.msra.mxu0 0
    %332 = vmatprep.subr.bf16.mxu0 0
    %333 = vmatpush1.bf16.msra.mxu0 0
    %334 = vmatprep.subr.bf16.mxu0 0
    %335 = vmatpush1.bf16.msra.mxu0 0
    %336 = vmatprep.subr.bf16.mxu0 0
    %337 = vmatpush1.bf16.msra.mxu0 0
    %338 = vmatprep.subr.bf16.mxu0 0
    %339 = vmatpush1.bf16.msra.mxu0 0
    %340 = vmatprep.mubr.bf16.mxu0 0
    %341 = vmatmul.mubr.bf16.gmra.mrb[0].mxu0 %v144
    %v342 = vpop.f32.mrb[0].mxu0
    %v343 = vadd.f32 %v281, %v342
    %v344 = vpop.f32.mrb[0].mxu0
    %v345 = vadd.f32 %v285, %v344
    %v346 = vpop.f32.mrb[0].mxu0
    %v347 = vadd.f32 %v281, %v346
    %v348 = vpop.f32.mrb[0].mxu0
    %v349 = vadd.f32 %v285, %v348
    %350 = vdwg.mxu0
    %v351 = vpack.c.bf16 %v347, %v343
    %v352 = vpack.c.bf16 %v349, %v345
    %v355 = vunpack.c.l.b16 %v189
    %v356 = vunpack.c.l.b16 %v190
    %v357 = vunpack.c.h.b16 %v189
    %v358 = vunpack.c.h.b16 %v190
    %v359 = vpack.c.b16 %v356, %v355
    %v360 = vpack.c.b16 %v358, %v357
    %v365 = vunpack.c.l.b16 %v270
    %v366 = vunpack.c.l.b16 %v271
    %v367 = vunpack.c.h.b16 %v270
    %v368 = vunpack.c.h.b16 %v271
    %v369 = vpack.c.b16 %v366, %v365
    %v370 = vpack.c.b16 %v368, %v367
    %v375 = vunpack.c.l.b16 %v351
    %v376 = vunpack.c.l.b16 %v352
    %v377 = vunpack.c.h.b16 %v351
    %v378 = vunpack.c.h.b16 %v352
    %v379 = vpack.c.b16 %v376, %v375
    %v380 = vpack.c.b16 %v378, %v377
    %381 = vmatprep.subr.bf16.mxu0 0
    %382 = vmatpush1.bf16.xpose.msra.mxu0 %v369
    %383 = vmatprep.subr.bf16.mxu0 0
    %384 = vmatpush1.bf16.xpose.msra.mxu0 0
    %385 = vmatprep.subr.bf16.mxu0 0
    %386 = vmatpush1.bf16.xpose.msra.mxu0 0
    %387 = vmatprep.subr.bf16.mxu0 0
    %388 = vmatpush1.bf16.xpose.msra.mxu0 0
    %389 = vmatprep.subr.bf16.mxu0 0
    %390 = vmatpush1.bf16.xpose.msra.mxu0 0
    %391 = vmatprep.subr.bf16.mxu0 0
    %392 = vmatpush1.bf16.xpose.msra.mxu0 0
    %393 = vmatprep.subr.bf16.mxu0 0
    %394 = vmatpush1.bf16.xpose.msra.mxu0 0
    %395 = vmatprep.subr.bf16.mxu0 0
    %396 = vmatpush1.bf16.xpose.msra.mxu0 0
    %397 = vmatprep.subr.bf16.mxu0 0
    %398 = vmatpush1.bf16.xpose.msra.mxu0 0
    %399 = vmatprep.subr.bf16.mxu0 0
    %400 = vmatpush1.bf16.xpose.msra.mxu0 0
    %401 = vmatprep.subr.bf16.mxu0 0
    %402 = vmatpush1.bf16.xpose.msra.mxu0 0
    %403 = vmatprep.subr.bf16.mxu0 0
    %404 = vmatpush1.bf16.xpose.msra.mxu0 0
    %405 = vmatprep.subr.bf16.mxu0 0
    %406 = vmatpush1.bf16.xpose.msra.mxu0 0
    %407 = vmatprep.subr.bf16.mxu0 0
    %408 = vmatpush1.bf16.xpose.msra.mxu0 0
    %409 = vmatprep.subr.bf16.mxu0 0
    %410 = vmatpush1.bf16.xpose.msra.mxu0 0
    %411 = vmatprep.subr.bf16.mxu0 0
    %412 = vmatpush1.bf16.xpose.msra.mxu0 0
    %413 = vmatprep.mubr.bf16.mxu0 0
    %414 = vmatmul.mubr.bf16.gmra.mrb[0].mxu0 %v359
    %v415 = vpop.f32.mrb[0].mxu0
    %v416 = vadd.f32 0.0, %v415
    %v417 = vpop.f32.mrb[0].mxu0
    %v418 = vpop.f32.mrb[0].mxu0
    %v419 = vpop.f32.mrb[0].mxu0
    %420 = vdwg.mxu0
    %421 = vmatprep.subr.bf16.mxu0 0
    %422 = vmatpush1.bf16.xpose.msra.mxu0 %v370
    %423 = vmatprep.subr.bf16.mxu0 0
    %424 = vmatpush1.bf16.xpose.msra.mxu0 0
    %425 = vmatprep.subr.bf16.mxu0 0
    %426 = vmatpush1.bf16.xpose.msra.mxu0 0
    %427 = vmatprep.subr.bf16.mxu0 0
    %428 = vmatpush1.bf16.xpose.msra.mxu0 0
    %429 = vmatprep.subr.bf16.mxu0 0
    %430 = vmatpush1.bf16.xpose.msra.mxu0 0
    %431 = vmatprep.subr.bf16.mxu0 0
    %432 = vmatpush1.bf16.xpose.msra.mxu0 0
    %433 = vmatprep.subr.bf16.mxu0 0
    %434 = vmatpush1.bf16.xpose.msra.mxu0 0
    %435 = vmatprep.subr.bf16.mxu0 0
    %436 = vmatpush1.bf16.xpose.msra.mxu0 0
    %437 = vmatprep.subr.bf16.mxu0 0
    %438 = vmatpush1.bf16.xpose.msra.mxu0 0
    %439 = vmatprep.subr.bf16.mxu0 0
    %440 = vmatpush1.bf16.xpose.msra.mxu0 0
    %441 = vmatprep.subr.bf16.mxu0 0
    %442 = vmatpush1.bf16.xpose.msra.mxu0 0
    %443 = vmatprep.subr.bf16.mxu0 0
    %444 = vmatpush1.bf16.xpose.msra.mxu0 0
    %445 = vmatprep.subr.bf16.mxu0 0
    %446 = vmatpush1.bf16.xpose.msra.mxu0 0
    %447 = vmatprep.subr.bf16.mxu0 0
    %448 = vmatpush1.bf16.xpose.msra.mxu0 0
    %449 = vmatprep.subr.bf16.mxu0 0
    %450 = vmatpush1.bf16.xpose.msra.mxu0 0
    %451 = vmatprep.subr.bf16.mxu0 0
    %452 = vmatpush1.bf16.xpose.msra.mxu0 0
    %453 = vmatprep.mubr.bf16.mxu0 0
    %454 = vmatmul.mubr.bf16.gmra.mrb[0].mxu0 %v360
    %v455 = vpop.f32.mrb[0].mxu0
    %v456 = vadd.f32 0.0, %v455
    %v457 = vpop.f32.mrb[0].mxu0
    %v458 = vpop.f32.mrb[0].mxu0
    %v459 = vpop.f32.mrb[0].mxu0
    %460 = vdwg.mxu0
    %vm461 = vcmask 64512
    %v462 = vsel %vm461, %v416, -inf
    %463 = vmax.xlane.f32.xlu0 %v462
    %v464 = vpop.xlane.xlu0 %463
    %v465 = vsel %vm461, %v456, -inf
    %466 = vmax.xlane.f32.xlu0 %v465
    %v467 = vpop.xlane.xlu0 %466
    %v468 = vsub.f32 %v416, %v464
    %v469 = vsub.f32 %v456, %v467
    %v470 = vmul.f32 %v468, 1.442695
    %v471 = vpow.pop %v470
    %v472 = vmul.f32 %v469, 1.442695
    %v473 = vpow.pop %v472
    %v474 = vsel %vm461, %v471, 0.0
    %475 = vadd.xlane.f32.xlu0 %v474
    %v476 = vpop.xlane.xlu0 %475
    %v477 = vsel %vm461, %v473, 0.0
    %478 = vadd.xlane.f32.xlu0 %v477
    %v479 = vpop.xlane.xlu0 %478
    %v480 = vrcp.pop %v476
    %v481 = vrcp.pop %v479
    %v482 = vpack.c.bf16 %v471, %v471
    %v483 = vpack.c.bf16 %v473, %v473
    %v485 = vsel %vm461, %v482, 0
    %vm487 = vcmask 1043456
    %v489 = vsel %vm487, %v379, 0
    %491 = vmatprep.subr.bf16.mxu0 0
    %492 = vmatpush1.bf16.msra.mxu0 %v489
    %493 = vmatprep.subr.bf16.mxu0 0
    %494 = vmatpush1.bf16.msra.mxu0 0
    %495 = vmatprep.subr.bf16.mxu0 0
    %496 = vmatpush1.bf16.msra.mxu0 0
    %497 = vmatprep.subr.bf16.mxu0 0
    %498 = vmatpush1.bf16.msra.mxu0 0
    %499 = vmatprep.subr.bf16.mxu0 0
    %500 = vmatpush1.bf16.msra.mxu0 0
    %501 = vmatprep.subr.bf16.mxu0 0
    %502 = vmatpush1.bf16.msra.mxu0 0
    %503 = vmatprep.subr.bf16.mxu0 0
    %504 = vmatpush1.bf16.msra.mxu0 0
    %505 = vmatprep.subr.bf16.mxu0 0
    %506 = vmatpush1.bf16.msra.mxu0 0
    %507 = vmatprep.subr.bf16.mxu0 0
    %508 = vmatpush1.bf16.msra.mxu0 0
    %509 = vmatprep.subr.bf16.mxu0 0
    %510 = vmatpush1.bf16.msra.mxu0 0
    %511 = vmatprep.subr.bf16.mxu0 0
    %512 = vmatpush1.bf16.msra.mxu0 0
    %513 = vmatprep.subr.bf16.mxu0 0
    %514 = vmatpush1.bf16.msra.mxu0 0
    %515 = vmatprep.subr.bf16.mxu0 0
    %516 = vmatpush1.bf16.msra.mxu0 0
    %517 = vmatprep.subr.bf16.mxu0 0
    %518 = vmatpush1.bf16.msra.mxu0 0
    %519 = vmatprep.subr.bf16.mxu0 0
    %520 = vmatpush1.bf16.msra.mxu0 0
    %521 = vmatprep.subr.bf16.mxu0 0
    %522 = vmatpush1.bf16.msra.mxu0 0
    %523 = vmatprep.mubr.bf16.mxu0 0
    %524 = vmatmul.mubr.bf16.gmra.mrb[0].mxu0 %v485
    %v525 = vpop.f32.mrb[0].mxu0
    %v526 = vadd.f32 0.0, %v525
    %v527 = vpop.f32.mrb[0].mxu0
    %v528 = vpop.f32.mrb[0].mxu0
    %v529 = vpop.f32.mrb[0].mxu0
    %530 = vdwg.mxu0
    %v532 = vsel %vm461, %v483, 0
    %v535 = vsel %vm487, %v380, 0
    %537 = vmatprep.subr.bf16.mxu0 0
    %538 = vmatpush1.bf16.msra.mxu0 %v535
    %539 = vmatprep.subr.bf16.mxu0 0
    %540 = vmatpush1.bf16.msra.mxu0 0
    %541 = vmatprep.subr.bf16.mxu0 0
    %542 = vmatpush1.bf16.msra.mxu0 0
    %543 = vmatprep.subr.bf16.mxu0 0
    %544 = vmatpush1.bf16.msra.mxu0 0
    %545 = vmatprep.subr.bf16.mxu0 0
    %546 = vmatpush1.bf16.msra.mxu0 0
    %547 = vmatprep.subr.bf16.mxu0 0
    %548 = vmatpush1.bf16.msra.mxu0 0
    %549 = vmatprep.subr.bf16.mxu0 0
    %550 = vmatpush1.bf16.msra.mxu0 0
    %551 = vmatprep.subr.bf16.mxu0 0
    %552 = vmatpush1.bf16.msra.mxu0 0
    %553 = vmatprep.subr.bf16.mxu0 0
    %554 = vmatpush1.bf16.msra.mxu0 0
    %555 = vmatprep.subr.bf16.mxu0 0
    %556 = vmatpush1.bf16.msra.mxu0 0
    %557 = vmatprep.subr.bf16.mxu0 0
    %558 = vmatpush1.bf16.msra.mxu0 0
    %559 = vmatprep.subr.bf16.mxu0 0
    %560 = vmatpush1.bf16.msra.mxu0 0
    %561 = vmatprep.subr.bf16.mxu0 0
    %562 = vmatpush1.bf16.msra.mxu0 0
    %563 = vmatprep.subr.bf16.mxu0 0
    %564 = vmatpush1.bf16.msra.mxu0 0
    %565 = vmatprep.subr.bf16.mxu0 0
    %566 = vmatpush1.bf16.msra.mxu0 0
    %567 = vmatprep.subr.bf16.mxu0 0
    %568 = vmatpush1.bf16.msra.mxu0 0
    %569 = vmatprep.mubr.bf16.mxu0 0
    %570 = vmatmul.mubr.bf16.gmra.mrb[0].mxu0 %v532
    %v571 = vpop.f32.mrb[0].mxu0
    %v572 = vadd.f32 0.0, %v571
    %v573 = vpop.f32.mrb[0].mxu0
    %v574 = vpop.f32.mrb[0].mxu0
    %v575 = vpop.f32.mrb[0].mxu0
    %576 = vdwg.mxu0
    %v577 = vmul.f32 %v526, %v480
    %v578 = vmul.f32 %v572, %v481
    %v579 = vpack.c.bf16 %v578, %v577
    %v580 = vld [vmem:[%s9] sm:$0xf]
    %v581 = vld [vmem:[%s9 + $0x4] sm:$0xf]
    %v582 = vld [vmem:[%s9 + $0x8] sm:$0xf]
    %v583 = vld [vmem:[%s9 + $0xc] sm:$0xf]
    %v584 = vld [vmem:[%s9 + $0x10] sm:$0xf]
    %v585 = vld [vmem:[%s9 + $0x14] sm:$0xf]
    %v586 = vld [vmem:[%s9 + $0x18] sm:$0xf]
    %v587 = vld [vmem:[%s9 + $0x1c] sm:$0xf]
    %v588 = vld [vmem:[%s9 + $0x20] sm:$0xf]
    %v589 = vld [vmem:[%s9 + $0x24] sm:$0xf]
    %v590 = vld [vmem:[%s9 + $0x28] sm:$0xf]
    %v591 = vld [vmem:[%s9 + $0x2c] sm:$0xf]
    %v592 = vld [vmem:[%s9 + $0x30] sm:$0xf]
    %v593 = vld [vmem:[%s9 + $0x34] sm:$0xf]
    %v594 = vld [vmem:[%s9 + $0x38] sm:$0xf]
    %v595 = vld [vmem:[%s9 + $0x3c] sm:$0xf]
    %v596 = vrot.slane %v359, 4
    %v598 = vrot.slane %v369, 4
    %600 = vmatprep.subr.bf16.mxu0 0
    %601 = vmatpush1.bf16.xpose.msra.mxu0 %v598
    %602 = vmatprep.subr.bf16.mxu0 0
    %603 = vmatpush1.bf16.xpose.msra.mxu0 0
    %604 = vmatprep.subr.bf16.mxu0 0
    %605 = vmatpush1.bf16.xpose.msra.mxu0 0
    %606 = vmatprep.subr.bf16.mxu0 0
    %607 = vmatpush1.bf16.xpose.msra.mxu0 0
    %608 = vmatprep.subr.bf16.mxu0 0
    %609 = vmatpush1.bf16.xpose.msra.mxu0 0
    %610 = vmatprep.subr.bf16.mxu0 0
    %611 = vmatpush1.bf16.xpose.msra.mxu0 0
    %612 = vmatprep.subr.bf16.mxu0 0
    %613 = vmatpush1.bf16.xpose.msra.mxu0 0
    %614 = vmatprep.subr.bf16.mxu0 0
    %615 = vmatpush1.bf16.xpose.msra.mxu0 0
    %616 = vmatprep.subr.bf16.mxu0 0
    %617 = vmatpush1.bf16.xpose.msra.mxu0 0
    %618 = vmatprep.subr.bf16.mxu0 0
    %619 = vmatpush1.bf16.xpose.msra.mxu0 0
    %620 = vmatprep.subr.bf16.mxu0 0
    %621 = vmatpush1.bf16.xpose.msra.mxu0 0
    %622 = vmatprep.subr.bf16.mxu0 0
    %623 = vmatpush1.bf16.xpose.msra.mxu0 0
    %624 = vmatprep.subr.bf16.mxu0 0
    %625 = vmatpush1.bf16.xpose.msra.mxu0 0
    %626 = vmatprep.subr.bf16.mxu0 0
    %627 = vmatpush1.bf16.xpose.msra.mxu0 0
    %628 = vmatprep.subr.bf16.mxu0 0
    %629 = vmatpush1.bf16.xpose.msra.mxu0 0
    %630 = vmatprep.subr.bf16.mxu0 0
    %631 = vmatpush1.bf16.xpose.msra.mxu0 0
    %632 = vmatprep.mubr.bf16.mxu0 0
    %633 = vmatmul.mubr.bf16.gmra.mrb[0].mxu0 %v596
    %v634 = vpop.f32.mrb[0].mxu0
    %v635 = vadd.f32 0.0, %v634
    %v636 = vpop.f32.mrb[0].mxu0
    %v637 = vpop.f32.mrb[0].mxu0
    %v638 = vpop.f32.mrb[0].mxu0
    %639 = vdwg.mxu0
    %v640 = vrot.slane %v360, 4
    %v642 = vrot.slane %v370, 4
    %644 = vmatprep.subr.bf16.mxu0 0
    %645 = vmatpush1.bf16.xpose.msra.mxu0 %v642
    %646 = vmatprep.subr.bf16.mxu0 0
    %647 = vmatpush1.bf16.xpose.msra.mxu0 0
    %648 = vmatprep.subr.bf16.mxu0 0
    %649 = vmatpush1.bf16.xpose.msra.mxu0 0
    %650 = vmatprep.subr.bf16.mxu0 0
    %651 = vmatpush1.bf16.xpose.msra.mxu0 0
    %652 = vmatprep.subr.bf16.mxu0 0
    %653 = vmatpush1.bf16.xpose.msra.mxu0 0
    %654 = vmatprep.subr.bf16.mxu0 0
    %655 = vmatpush1.bf16.xpose.msra.mxu0 0
    %656 = vmatprep.subr.bf16.mxu0 0
    %657 = vmatpush1.bf16.xpose.msra.mxu0 0
    %658 = vmatprep.subr.bf16.mxu0 0
    %659 = vmatpush1.bf16.xpose.msra.mxu0 0
    %660 = vmatprep.subr.bf16.mxu0 0
    %661 = vmatpush1.bf16.xpose.msra.mxu0 0
    %662 = vmatprep.subr.bf16.mxu0 0
    %663 = vmatpush1.bf16.xpose.msra.mxu0 0
    %664 = vmatprep.subr.bf16.mxu0 0
    %665 = vmatpush1.bf16.xpose.msra.mxu0 0
    %666 = vmatprep.subr.bf16.mxu0 0
    %667 = vmatpush1.bf16.xpose.msra.mxu0 0
    %668 = vmatprep.subr.bf16.mxu0 0
    %669 = vmatpush1.bf16.xpose.msra.mxu0 0
    %670 = vmatprep.subr.bf16.mxu0 0
    %671 = vmatpush1.bf16.xpose.msra.mxu0 0
    %672 = vmatprep.subr.bf16.mxu0 0
    %673 = vmatpush1.bf16.xpose.msra.mxu0 0
    %674 = vmatprep.subr.bf16.mxu0 0
    %675 = vmatpush1.bf16.xpose.msra.mxu0 0
    %676 = vmatprep.mubr.bf16.mxu0 0
    %677 = vmatmul.mubr.bf16.gmra.mrb[0].mxu0 %v640
    %v678 = vpop.f32.mrb[0].mxu0
    %v679 = vadd.f32 0.0, %v678
    %v680 = vpop.f32.mrb[0].mxu0
    %v681 = vpop.f32.mrb[0].mxu0
    %v682 = vpop.f32.mrb[0].mxu0
    %683 = vdwg.mxu0
    %v684 = vsel %vm461, %v635, -inf
    %685 = vmax.xlane.f32.xlu0 %v684
    %v686 = vpop.xlane.xlu0 %685
    %v687 = vsel %vm461, %v679, -inf
    %688 = vmax.xlane.f32.xlu0 %v687
    %v689 = vpop.xlane.xlu0 %688
    %v690 = vsub.f32 %v635, %v686
    %v691 = vsub.f32 %v679, %v689
    %v692 = vmul.f32 %v690, 1.442695
    %v693 = vpow.pop %v692
    %v694 = vmul.f32 %v691, 1.442695
    %v695 = vpow.pop %v694
    %v696 = vsel %vm461, %v693, 0.0
    %697 = vadd.xlane.f32.xlu0 %v696
    %v698 = vpop.xlane.xlu0 %697
    %v699 = vsel %vm461, %v695, 0.0
    %700 = vadd.xlane.f32.xlu0 %v699
    %v701 = vpop.xlane.xlu0 %700
    %v702 = vrcp.pop %v698
    %v703 = vrcp.pop %v701
    %v704 = vpack.c.bf16 %v693, %v693
    %v705 = vpack.c.bf16 %v695, %v695
    %v706 = vrot.slane %v379, 4
    %v708 = vsel %vm461, %v704, 0
    %v711 = vsel %vm487, %v706, 0
    %713 = vmatprep.subr.bf16.mxu0 0
    %714 = vmatpush1.bf16.msra.mxu0 %v711
    %715 = vmatprep.subr.bf16.mxu0 0
    %716 = vmatpush1.bf16.msra.mxu0 0
    %717 = vmatprep.subr.bf16.mxu0 0
    %718 = vmatpush1.bf16.msra.mxu0 0
    %719 = vmatprep.subr.bf16.mxu0 0
    %720 = vmatpush1.bf16.msra.mxu0 0
    %721 = vmatprep.subr.bf16.mxu0 0
    %722 = vmatpush1.bf16.msra.mxu0 0
    %723 = vmatprep.subr.bf16.mxu0 0
    %724 = vmatpush1.bf16.msra.mxu0 0
    %725 = vmatprep.subr.bf16.mxu0 0
    %726 = vmatpush1.bf16.msra.mxu0 0
    %727 = vmatprep.subr.bf16.mxu0 0
    %728 = vmatpush1.bf16.msra.mxu0 0
    %729 = vmatprep.subr.bf16.mxu0 0
    %730 = vmatpush1.bf16.msra.mxu0 0
    %731 = vmatprep.subr.bf16.mxu0 0
    %732 = vmatpush1.bf16.msra.mxu0 0
    %733 = vmatprep.subr.bf16.mxu0 0
    %734 = vmatpush1.bf16.msra.mxu0 0
    %735 = vmatprep.subr.bf16.mxu0 0
    %736 = vmatpush1.bf16.msra.mxu0 0
    %737 = vmatprep.subr.bf16.mxu0 0
    %738 = vmatpush1.bf16.msra.mxu0 0
    %739 = vmatprep.subr.bf16.mxu0 0
    %740 = vmatpush1.bf16.msra.mxu0 0
    %741 = vmatprep.subr.bf16.mxu0 0
    %742 = vmatpush1.bf16.msra.mxu0 0
    %743 = vmatprep.subr.bf16.mxu0 0
    %744 = vmatpush1.bf16.msra.mxu0 0
    %745 = vmatprep.mubr.bf16.mxu0 0
    %746 = vmatmul.mubr.bf16.gmra.mrb[0].mxu0 %v708
    %v747 = vpop.f32.mrb[0].mxu0
    %v748 = vadd.f32 0.0, %v747
    %v749 = vpop.f32.mrb[0].mxu0
    %v750 = vpop.f32.mrb[0].mxu0
    %v751 = vpop.f32.mrb[0].mxu0
    %752 = vdwg.mxu0
    %v753 = vrot.slane %v380, 4
    %v755 = vsel %vm461, %v705, 0
    %v758 = vsel %vm487, %v753, 0
    %760 = vmatprep.subr.bf16.mxu0 0
    %761 = vmatpush1.bf16.msra.mxu0 %v758
    %762 = vmatprep.subr.bf16.mxu0 0
    %763 = vmatpush1.bf16.msra.mxu0 0
    %764 = vmatprep.subr.bf16.mxu0 0
    %765 = vmatpush1.bf16.msra.mxu0 0
    %766 = vmatprep.subr.bf16.mxu0 0
    %767 = vmatpush1.bf16.msra.mxu0 0
    %768 = vmatprep.subr.bf16.mxu0 0
    %769 = vmatpush1.bf16.msra.mxu0 0
    %770 = vmatprep.subr.bf16.mxu0 0
    %771 = vmatpush1.bf16.msra.mxu0 0
    %772 = vmatprep.subr.bf16.mxu0 0
    %773 = vmatpush1.bf16.msra.mxu0 0
    %774 = vmatprep.subr.bf16.mxu0 0
    %775 = vmatpush1.bf16.msra.mxu0 0
    %776 = vmatprep.subr.bf16.mxu0 0
    %777 = vmatpush1.bf16.msra.mxu0 0
    %778 = vmatprep.subr.bf16.mxu0 0
    %779 = vmatpush1.bf16.msra.mxu0 0
    %780 = vmatprep.subr.bf16.mxu0 0
    %781 = vmatpush1.bf16.msra.mxu0 0
    %782 = vmatprep.subr.bf16.mxu0 0
    %783 = vmatpush1.bf16.msra.mxu0 0
    %784 = vmatprep.subr.bf16.mxu0 0
    %785 = vmatpush1.bf16.msra.mxu0 0
    %786 = vmatprep.subr.bf16.mxu0 0
    %787 = vmatpush1.bf16.msra.mxu0 0
    %788 = vmatprep.subr.bf16.mxu0 0
    %789 = vmatpush1.bf16.msra.mxu0 0
    %790 = vmatprep.subr.bf16.mxu0 0
    %791 = vmatpush1.bf16.msra.mxu0 0
    %792 = vmatprep.mubr.bf16.mxu0 0
    %793 = vmatmul.mubr.bf16.gmra.mrb[0].mxu0 %v755
    %v794 = vpop.f32.mrb[0].mxu0
    %v795 = vadd.f32 0.0, %v794
    %v796 = vpop.f32.mrb[0].mxu0
    %v797 = vpop.f32.mrb[0].mxu0
    %v798 = vpop.f32.mrb[0].mxu0
    %799 = vdwg.mxu0
    %v800 = vmul.f32 %v748, %v702
    %v801 = vmul.f32 %v795, %v703
    %v802 = vpack.c.bf16 %v801, %v800
    %v803 = vld [vmem:[%s9 + $0x40] sm:$0xf]
    %v804 = vld [vmem:[%s9 + $0x44] sm:$0xf]
    %v805 = vld [vmem:[%s9 + $0x48] sm:$0xf]
    %v806 = vld [vmem:[%s9 + $0x4c] sm:$0xf]
    %v807 = vld [vmem:[%s9 + $0x50] sm:$0xf]
    %v808 = vld [vmem:[%s9 + $0x54] sm:$0xf]
    %v809 = vld [vmem:[%s9 + $0x58] sm:$0xf]
    %v810 = vld [vmem:[%s9 + $0x5c] sm:$0xf]
    %v811 = vld [vmem:[%s9 + $0x60] sm:$0xf]
    %v812 = vld [vmem:[%s9 + $0x64] sm:$0xf]
    %v813 = vld [vmem:[%s9 + $0x68] sm:$0xf]
    %v814 = vld [vmem:[%s9 + $0x6c] sm:$0xf]
    %v815 = vld [vmem:[%s9 + $0x70] sm:$0xf]
    %v816 = vld [vmem:[%s9 + $0x74] sm:$0xf]
    %v817 = vld [vmem:[%s9 + $0x78] sm:$0xf]
    %v818 = vld [vmem:[%s9 + $0x7c] sm:$0xf]
    %v835 = vunpack.c.l.b16 %v803
    %v836 = vunpack.c.l.b16 %v804
    %v837 = vunpack.c.l.b16 %v805
    %v838 = vunpack.c.l.b16 %v806
    %v839 = vunpack.c.l.b16 %v807
    %v840 = vunpack.c.l.b16 %v808
    %v841 = vunpack.c.l.b16 %v809
    %v842 = vunpack.c.l.b16 %v810
    %v843 = vunpack.c.l.b16 %v811
    %v844 = vunpack.c.l.b16 %v812
    %v845 = vunpack.c.l.b16 %v813
    %v846 = vunpack.c.l.b16 %v814
    %v847 = vunpack.c.l.b16 %v815
    %v848 = vunpack.c.l.b16 %v816
    %v849 = vunpack.c.l.b16 %v817
    %v850 = vunpack.c.l.b16 %v818
    %v851 = vpack.c.b16 %v836, %v835
    %v852 = vpack.c.b16 %v838, %v837
    %v853 = vpack.c.b16 %v840, %v839
    %v854 = vpack.c.b16 %v842, %v841
    %v855 = vpack.c.b16 %v844, %v843
    %v856 = vpack.c.b16 %v846, %v845
    %v857 = vpack.c.b16 %v848, %v847
    %v858 = vpack.c.b16 %v850, %v849
    %867 = vmatprep.subr.bf16.mxu0 0
    %868 = vmatpush1.bf16.msra.mxu0 %v851
    %869 = vmatprep.subr.bf16.mxu0 0
    %870 = vmatpush1.bf16.msra.mxu0 %v852
    %871 = vmatprep.subr.bf16.mxu0 0
    %872 = vmatpush1.bf16.msra.mxu0 %v853
    %873 = vmatprep.subr.bf16.mxu0 0
    %874 = vmatpush1.bf16.msra.mxu0 %v854
    %875 = vmatprep.subr.bf16.mxu0 0
    %876 = vmatpush1.bf16.msra.mxu0 %v855
    %877 = vmatprep.subr.bf16.mxu0 0
    %878 = vmatpush1.bf16.msra.mxu0 %v856
    %879 = vmatprep.subr.bf16.mxu0 0
    %880 = vmatpush1.bf16.msra.mxu0 %v857
    %881 = vmatprep.subr.bf16.mxu0 0
    %882 = vmatpush1.bf16.msra.mxu0 %v858
    %883 = vmatprep.subr.bf16.mxu0 0
    %884 = vmatpush1.bf16.msra.mxu0 0
    %885 = vmatprep.subr.bf16.mxu0 0
    %886 = vmatpush1.bf16.msra.mxu0 0
    %887 = vmatprep.subr.bf16.mxu0 0
    %888 = vmatpush1.bf16.msra.mxu0 0
    %889 = vmatprep.subr.bf16.mxu0 0
    %890 = vmatpush1.bf16.msra.mxu0 0
    %891 = vmatprep.subr.bf16.mxu0 0
    %892 = vmatpush1.bf16.msra.mxu0 0
    %893 = vmatprep.subr.bf16.mxu0 0
    %894 = vmatpush1.bf16.msra.mxu0 0
    %895 = vmatprep.subr.bf16.mxu0 0
    %896 = vmatpush1.bf16.msra.mxu0 0
    %897 = vmatprep.subr.bf16.mxu0 0
    %898 = vmatpush1.bf16.msra.mxu0 0
    %899 = vmatprep.mubr.bf16.mxu0 0
    %900 = vmatmul.mubr.bf16.gmra.mrb[0].mxu0 %v802
    %v901 = vpop.f32.mrb[0].mxu0
    %v902 = vadd.f32 0.0, %v901
    %v903 = vpop.f32.mrb[0].mxu0
    %v904 = vpop.f32.mrb[0].mxu0
    %v905 = vadd.f32 0.0, %v904
    %v906 = vpop.f32.mrb[0].mxu0
    %907 = vdwg.mxu0
    %v924 = vunpack.c.l.b16 %v580
    %v925 = vunpack.c.l.b16 %v581
    %v926 = vunpack.c.l.b16 %v582
    %v927 = vunpack.c.l.b16 %v583
    %v928 = vunpack.c.l.b16 %v584
    %v929 = vunpack.c.l.b16 %v585
    %v930 = vunpack.c.l.b16 %v586
    %v931 = vunpack.c.l.b16 %v587
    %v932 = vunpack.c.l.b16 %v588
    %v933 = vunpack.c.l.b16 %v589
    %v934 = vunpack.c.l.b16 %v590
    %v935 = vunpack.c.l.b16 %v591
    %v936 = vunpack.c.l.b16 %v592
    %v937 = vunpack.c.l.b16 %v593
    %v938 = vunpack.c.l.b16 %v594
    %v939 = vunpack.c.l.b16 %v595
    %v940 = vpack.c.b16 %v925, %v924
    %v941 = vpack.c.b16 %v927, %v926
    %v942 = vpack.c.b16 %v929, %v928
    %v943 = vpack.c.b16 %v931, %v930
    %v944 = vpack.c.b16 %v933, %v932
    %v945 = vpack.c.b16 %v935, %v934
    %v946 = vpack.c.b16 %v937, %v936
    %v947 = vpack.c.b16 %v939, %v938
    %956 = vmatprep.subr.bf16.mxu0 0
    %957 = vmatpush1.bf16.msra.mxu0 %v940
    %958 = vmatprep.subr.bf16.mxu0 0
    %959 = vmatpush1.bf16.msra.mxu0 %v941
    %960 = vmatprep.subr.bf16.mxu0 0
    %961 = vmatpush1.bf16.msra.mxu0 %v942
    %962 = vmatprep.subr.bf16.mxu0 0
    %963 = vmatpush1.bf16.msra.mxu0 %v943
    %964 = vmatprep.subr.bf16.mxu0 0
    %965 = vmatpush1.bf16.msra.mxu0 %v944
    %966 = vmatprep.subr.bf16.mxu0 0
    %967 = vmatpush1.bf16.msra.mxu0 %v945
    %968 = vmatprep.subr.bf16.mxu0 0
    %969 = vmatpush1.bf16.msra.mxu0 %v946
    %970 = vmatprep.subr.bf16.mxu0 0
    %971 = vmatpush1.bf16.msra.mxu0 %v947
    %972 = vmatprep.subr.bf16.mxu0 0
    %973 = vmatpush1.bf16.msra.mxu0 0
    %974 = vmatprep.subr.bf16.mxu0 0
    %975 = vmatpush1.bf16.msra.mxu0 0
    %976 = vmatprep.subr.bf16.mxu0 0
    %977 = vmatpush1.bf16.msra.mxu0 0
    %978 = vmatprep.subr.bf16.mxu0 0
    %979 = vmatpush1.bf16.msra.mxu0 0
    %980 = vmatprep.subr.bf16.mxu0 0
    %981 = vmatpush1.bf16.msra.mxu0 0
    %982 = vmatprep.subr.bf16.mxu0 0
    %983 = vmatpush1.bf16.msra.mxu0 0
    %984 = vmatprep.subr.bf16.mxu0 0
    %985 = vmatpush1.bf16.msra.mxu0 0
    %986 = vmatprep.subr.bf16.mxu0 0
    %987 = vmatpush1.bf16.msra.mxu0 0
    %988 = vmatprep.mubr.bf16.mxu0 0
    %989 = vmatmul.mubr.bf16.gmra.mrb[0].mxu0 %v579
    %v990 = vpop.f32.mrb[0].mxu0
    %v991 = vadd.f32 %v902, %v990
    %v992 = vpop.f32.mrb[0].mxu0
    %v993 = vpop.f32.mrb[0].mxu0
    %v994 = vadd.f32 %v905, %v993
    %v995 = vpop.f32.mrb[0].mxu0
    %996 = vdwg.mxu0
    %v997 = vadd.f32 %v58, %v991
    %v998 = vadd.f32 %v59, %v994
    %v999 = vld [vmem:[%s10] sm:$0x1]
    %v1001 = vlaneseq
    %v1002 = vshrl.u32 %v1001, 7
    %v1003 = vsub.s32 0, %v1002
    %v1004 = vrot.slane %v999, %v1003
    %v1006 = vadd.f32 %v997, %v1004
    %v1007 = vadd.f32 %v998, %v1004
    %v1008 = vld [vmem:[%s11] sm:$0x1]
    %v1009 = vld [vmem:[%s12] sm:$0x1]
    %v1010 = vsel %vm62, %v1006, 0.0
    %1011 = vadd.xlane.f32.xlu0 %v1010
    %v1012 = vpop.xlane.xlu0 %1011
    %v1013 = vsel %vm62, %v1007, 0.0
    %1014 = vadd.xlane.f32.xlu0 %v1013
    %v1015 = vpop.xlane.xlu0 %1014
    %v1016 = vmul.f32 %v1012, %v69
    %v1017 = vmul.f32 %v1015, %v69
    %v1018 = vsub.f32 %v1006, %v1016
    %v1019 = vsub.f32 %v1007, %v1017
    %v1020 = vmul.f32 %v1018, %v1018
    %v1021 = vmul.f32 %v1019, %v1019
    %v1022 = vsel %vm62, %v1020, 0.0
    %1023 = vadd.xlane.f32.xlu0 %v1022
    %v1024 = vpop.xlane.xlu0 %1023
    %v1025 = vsel %vm62, %v1021, 0.0
    %1026 = vadd.xlane.f32.xlu0 %v1025
    %v1027 = vpop.xlane.xlu0 %1026
    %v1028 = vmul.f32 %v1024, %v69
    %v1029 = vmul.f32 %v1027, %v69
    %v1030 = vadd.f32 %v1028, 1e-05
    %v1031 = vadd.f32 %v1029, 1e-05
    %v1032 = vrsqrt.pop %v1030
    %v1033 = vrsqrt.pop %v1031
    %v1034 = vmul.f32 %v1018, %v1032
    %v1035 = vmul.f32 %v1019, %v1033
    %v1037 = vlaneseq
    %v1038 = vshrl.u32 %v1037, 7
    %v1039 = vsub.s32 0, %v1038
    %v1040 = vrot.slane %v1008, %v1039
    %v1042 = vmul.f32 %v1034, %v1040
    %v1043 = vmul.f32 %v1035, %v1040
    %v1045 = vlaneseq
    %v1046 = vshrl.u32 %v1045, 7
    %v1047 = vsub.s32 0, %v1046
    %v1048 = vrot.slane %v1009, %v1047
    %v1050 = vadd.f32 %v1042, %v1048
    %v1051 = vadd.f32 %v1043, %v1048
    %v1052 = vpack.c.bf16 %v1051, %v1050
    %v1053 = vld [vmem:[%s13] sm:$0xf]
    %v1054 = vld [vmem:[%s13 + $0x4] sm:$0xf]
    %v1055 = vld [vmem:[%s13 + $0x8] sm:$0xf]
    %v1056 = vld [vmem:[%s13 + $0xc] sm:$0xf]
    %v1057 = vld [vmem:[%s14] sm:$0x1]
    %v1059 = vlaneseq
    %v1060 = vshrl.u32 %v1059, 7
    %v1061 = vsub.s32 0, %v1060
    %v1062 = vrot.slane %v1057, %v1061
    %v1068 = vunpack.c.l.b16 %v1053
    %v1069 = vunpack.c.l.b16 %v1054
    %v1070 = vunpack.c.l.b16 %v1055
    %v1071 = vunpack.c.l.b16 %v1056
    %v1072 = vpack.c.b16 %v1069, %v1068
    %v1073 = vpack.c.b16 %v1071, %v1070
    %v1077 = vsel %vm62, %v1052, 0
    %1079 = vmatprep.subr.bf16.mxu0 0
    %1080 = vmatpush1.bf16.msra.mxu0 %v1072
    %1081 = vmatprep.subr.bf16.mxu0 0
    %1082 = vmatpush1.bf16.msra.mxu0 %v1073
    %1083 = vmatprep.subr.bf16.mxu0 0
    %1084 = vmatpush1.bf16.msra.mxu0 0
    %1085 = vmatprep.subr.bf16.mxu0 0
    %1086 = vmatpush1.bf16.msra.mxu0 0
    %1087 = vmatprep.subr.bf16.mxu0 0
    %1088 = vmatpush1.bf16.msra.mxu0 0
    %1089 = vmatprep.subr.bf16.mxu0 0
    %1090 = vmatpush1.bf16.msra.mxu0 0
    %1091 = vmatprep.subr.bf16.mxu0 0
    %1092 = vmatpush1.bf16.msra.mxu0 0
    %1093 = vmatprep.subr.bf16.mxu0 0
    %1094 = vmatpush1.bf16.msra.mxu0 0
    %1095 = vmatprep.subr.bf16.mxu0 0
    %1096 = vmatpush1.bf16.msra.mxu0 0
    %1097 = vmatprep.subr.bf16.mxu0 0
    %1098 = vmatpush1.bf16.msra.mxu0 0
    %1099 = vmatprep.subr.bf16.mxu0 0
    %1100 = vmatpush1.bf16.msra.mxu0 0
    %1101 = vmatprep.subr.bf16.mxu0 0
    %1102 = vmatpush1.bf16.msra.mxu0 0
    %1103 = vmatprep.subr.bf16.mxu0 0
    %1104 = vmatpush1.bf16.msra.mxu0 0
    %1105 = vmatprep.subr.bf16.mxu0 0
    %1106 = vmatpush1.bf16.msra.mxu0 0
    %1107 = vmatprep.subr.bf16.mxu0 0
    %1108 = vmatpush1.bf16.msra.mxu0 0
    %1109 = vmatprep.subr.bf16.mxu0 0
    %1110 = vmatpush1.bf16.msra.mxu0 0
    %1111 = vmatprep.mubr.bf16.mxu0 0
    %1112 = vmatmul.mubr.bf16.gmra.mrb[0].mxu0 %v1077
    %v1113 = vpop.f32.mrb[0].mxu0
    %v1114 = vadd.f32 %v1062, %v1113
    %v1115 = vpop.f32.mrb[0].mxu0
    %v1116 = vpop.f32.mrb[0].mxu0
    %v1117 = vadd.f32 %v1062, %v1116
    %v1118 = vpop.f32.mrb[0].mxu0
    %1119 = vdwg.mxu0
    %v1120 = vxor.u32 %v1114, 2147483648
    %v1121 = vxor.u32 %v1117, 2147483648
    %v1122 = vmul.f32 %v1120, 1.442695
    %v1123 = vpow.pop %v1122
    %v1124 = vmul.f32 %v1121, 1.442695
    %v1125 = vpow.pop %v1124
    %v1126 = vadd.f32 %v1123, 1.0
    %v1127 = vadd.f32 %v1125, 1.0
    %v1128 = vrcp.pop %v1126
    %v1129 = vmul.f32 1.0, %v1128
    %v1130 = vrcp.pop %v1127
    %v1131 = vmul.f32 1.0, %v1130
    %v1132 = vmul.f32 %v1114, %v1129
    %v1133 = vmul.f32 %v1117, %v1131
    %v1134 = vpack.c.bf16 %v1133, %v1132
    %v1135 = vld [vmem:[%s15] sm:$0xf]
    %v1136 = vld [vmem:[%s15 + $0x4] sm:$0xf]
    %v1137 = vld [vmem:[%s15 + $0x8] sm:$0xf]
    %v1138 = vld [vmem:[%s15 + $0xc] sm:$0xf]
    %v1139 = vld [vmem:[%s15 + $0x10] sm:$0xf]
    %v1140 = vld [vmem:[%s15 + $0x14] sm:$0xf]
    %v1141 = vld [vmem:[%s15 + $0x18] sm:$0xf]
    %v1142 = vld [vmem:[%s15 + $0x1c] sm:$0xf]
    %v1143 = vld [vmem:[%s15 + $0x20] sm:$0xf]
    %v1144 = vld [vmem:[%s15 + $0x24] sm:$0xf]
    %v1145 = vld [vmem:[%s15 + $0x28] sm:$0xf]
    %v1146 = vld [vmem:[%s15 + $0x2c] sm:$0xf]
    %v1147 = vld [vmem:[%s15 + $0x30] sm:$0xf]
    %v1148 = vld [vmem:[%s15 + $0x34] sm:$0xf]
    %v1149 = vld [vmem:[%s15 + $0x38] sm:$0xf]
    %v1150 = vld [vmem:[%s15 + $0x3c] sm:$0xf]
    %v1167 = vunpack.c.l.b16 %v1135
    %v1168 = vunpack.c.l.b16 %v1136
    %v1169 = vunpack.c.l.b16 %v1137
    %v1170 = vunpack.c.l.b16 %v1138
    %v1171 = vunpack.c.l.b16 %v1139
    %v1172 = vunpack.c.l.b16 %v1140
    %v1173 = vunpack.c.l.b16 %v1141
    %v1174 = vunpack.c.l.b16 %v1142
    %v1175 = vunpack.c.l.b16 %v1143
    %v1176 = vunpack.c.l.b16 %v1144
    %v1177 = vunpack.c.l.b16 %v1145
    %v1178 = vunpack.c.l.b16 %v1146
    %v1179 = vunpack.c.l.b16 %v1147
    %v1180 = vunpack.c.l.b16 %v1148
    %v1181 = vunpack.c.l.b16 %v1149
    %v1182 = vunpack.c.l.b16 %v1150
    %v1183 = vpack.c.b16 %v1168, %v1167
    %v1184 = vpack.c.b16 %v1170, %v1169
    %v1185 = vpack.c.b16 %v1172, %v1171
    %v1186 = vpack.c.b16 %v1174, %v1173
    %v1187 = vpack.c.b16 %v1176, %v1175
    %v1188 = vpack.c.b16 %v1178, %v1177
    %v1189 = vpack.c.b16 %v1180, %v1179
    %v1190 = vpack.c.b16 %v1182, %v1181
    %1199 = vmatprep.subr.bf16.mxu0 0
    %1200 = vmatpush1.bf16.msra.mxu0 %v1183
    %1201 = vmatprep.subr.bf16.mxu0 0
    %1202 = vmatpush1.bf16.msra.mxu0 %v1184
    %1203 = vmatprep.subr.bf16.mxu0 0
    %1204 = vmatpush1.bf16.msra.mxu0 %v1185
    %1205 = vmatprep.subr.bf16.mxu0 0
    %1206 = vmatpush1.bf16.msra.mxu0 %v1186
    %1207 = vmatprep.subr.bf16.mxu0 0
    %1208 = vmatpush1.bf16.msra.mxu0 %v1187
    %1209 = vmatprep.subr.bf16.mxu0 0
    %1210 = vmatpush1.bf16.msra.mxu0 %v1188
    %1211 = vmatprep.subr.bf16.mxu0 0
    %1212 = vmatpush1.bf16.msra.mxu0 %v1189
    %1213 = vmatprep.subr.bf16.mxu0 0
    %1214 = vmatpush1.bf16.msra.mxu0 %v1190
    %1215 = vmatprep.subr.bf16.mxu0 0
    %1216 = vmatpush1.bf16.msra.mxu0 0
    %1217 = vmatprep.subr.bf16.mxu0 0
    %1218 = vmatpush1.bf16.msra.mxu0 0
    %1219 = vmatprep.subr.bf16.mxu0 0
    %1220 = vmatpush1.bf16.msra.mxu0 0
    %1221 = vmatprep.subr.bf16.mxu0 0
    %1222 = vmatpush1.bf16.msra.mxu0 0
    %1223 = vmatprep.subr.bf16.mxu0 0
    %1224 = vmatpush1.bf16.msra.mxu0 0
    %1225 = vmatprep.subr.bf16.mxu0 0
    %1226 = vmatpush1.bf16.msra.mxu0 0
    %1227 = vmatprep.subr.bf16.mxu0 0
    %1228 = vmatpush1.bf16.msra.mxu0 0
    %1229 = vmatprep.subr.bf16.mxu0 0
    %1230 = vmatpush1.bf16.msra.mxu0 0
    %1231 = vmatprep.mubr.bf16.mxu0 0
    %1232 = vmatmul.mubr.bf16.gmra.mrb[0].mxu0 %v1134
    %v1233 = vpop.f32.mrb[0].mxu0
    %v1234 = vadd.f32 0.0, %v1233
    %v1235 = vpop.f32.mrb[0].mxu0
    %v1236 = vpop.f32.mrb[0].mxu0
    %v1237 = vadd.f32 0.0, %v1236
    %v1238 = vpop.f32.mrb[0].mxu0
    %1239 = vdwg.mxu0
    %v1240 = vadd.f32 %v1006, %v1234
    %v1241 = vadd.f32 %v1007, %v1237
    %v1242 = vld [vmem:[%s16] sm:$0x1]
    %v1244 = vlaneseq
    %v1245 = vshrl.u32 %v1244, 7
    %v1246 = vsub.s32 0, %v1245
    %v1247 = vrot.slane %v1242, %v1246
    %v1249 = vadd.f32 %v1240, %v1247
    %v1250 = vadd.f32 %v1241, %v1247
    %1251 = vst.msk [vmem:[#allocation2] sm:$0xff] %vm62, %v1249
    %1252 = vst.msk [vmem:[#allocation2 + $0x8] sm:$0xff] %vm62, %v1250
    // Predicated region
    $region70: #{tpu_custom_call.1} parent=1 // pred_check
      _
    $region71: #{tpu_custom_call.1} parent=1 // pred_check_branch
      %1254 = sbr.rel (0) target = $region73
    $region72: #{tpu_custom_call.1} parent=1 // pred_region
      %s1256 = ssub.s32 256, 256
      %1257 = vsyncadd [#allocation3], %s1256
      %s1258 = sshll.u32 [#allocation2], 4
      %s1259 = int_to_ptr.vmem [resolvable:$true] %s1258
      %1264 = dma.vmem_to_hbm [thread:$0]  %s1259, 256, %s17, [#allocation3], 128, 128, 8
    $region73: #{tpu_custom_call.1} parent=1 // pred_fallthru
      _
    // Predicated region
    $region74: #{tpu_custom_call.1} parent=1 // pred_check
      _
    $region75: #{tpu_custom_call.1} parent=1 // pred_check_branch
      %1266 = sbr.rel (0) target = $region77
    $region76: #{tpu_custom_call.1} parent=1 // pred_region
      %1267 = dma.done [#allocation3], 256
    $region77: #{tpu_custom_call.1} parent=1 // pred_fallthru
      _
    %1268 = vsyncpa [#allocation3], 1

// kernel: tpu_custom_call.1
$region0: #{tpu_custom_call.1}
  #allocation0 [shape = 'u32[]', space=smem, size = 0x4, offset = 0x4, fixed_abs, tag = 'smem constant byte address 0x4 - core index']
  #allocation1 [shape = 'u32[144,128]{1,0:T(1,128)}', space=vmem, size = 0x12000, scoped, tag = 'internal scratch']
  %s0 = inlined_call_operand.vmem [shape: f32[2,8,32], index: 0, kind: input, shape index: {}]
  %s1 = inlined_call_operand.vmem [shape: f32[1,32], index: 1, kind: input, shape index: {}]
  %s2 = inlined_call_operand.vmem [shape: f32[1,32], index: 2, kind: input, shape index: {}]
  %s3 = inlined_call_operand.vmem [shape: bf16[32,256], index: 3, kind: input, shape index: {}]
  %s4 = inlined_call_operand.vmem [shape: f32[1,256], index: 4, kind: input, shape index: {}]
  %s5 = inlined_call_operand.vmem [shape: bf16[32,256], index: 5, kind: input, shape index: {}]
  %s6 = inlined_call_operand.vmem [shape: f32[1,256], index: 6, kind: input, shape index: {}]
  %s7 = inlined_call_operand.vmem [shape: bf16[32,256], index: 7, kind: input, shape index: {}]
  %s8 = inlined_call_operand.vmem [shape: f32[1,256], index: 8, kind: input, shape index: {}]
  %s9 = inlined_call_operand.vmem [shape: bf16[256,32], index: 9, kind: input, shape index: {}]
  %s10 = inlined_call_operand.vmem [shape: f32[1,32], index: 10, kind: input, shape index: {}]
  %s11 = inlined_call_operand.vmem [shape: f32[1,32], index: 11, kind: input, shape index: {}]
  %s12 = inlined_call_operand.vmem [shape: f32[1,32], index: 12, kind: input, shape index: {}]
  %s13 = inlined_call_operand.vmem [shape: bf16[32,128], index: 13, kind: input, shape index: {}]
  %s14 = inlined_call_operand.vmem [shape: f32[1,128], index: 14, kind: input, shape index: {}]
  %s15 = inlined_call_operand.vmem [shape: bf16[128,32], index: 15, kind: input, shape index: {}]
  %s16 = inlined_call_operand.vmem [shape: f32[1,32], index: 16, kind: input, shape index: {}]
  %s17 = inlined_call_operand.hbm [shape: f32[2,8,32], index: 17, kind: output, shape index: {}]
  %s18 = sld [smem:[#allocation0]]
  $region78: #{tpu_custom_call.1} parent=0
    _
  %s20 = ssub.s32 1, %s18
  %s21 = scalar_select 0, %s20, %s18
  $region1: #{tpu_custom_call.1} parent=0
    #allocation2 [shape = 'u8[8192]{0}', space=vmem, size = 0x2000, scoped, tag = 'output window, operand 0, single buffered']
    #allocation3 [shape = 's32[1]{0}', space=sflag, size = 0x4, scoped, tag = 'scoped memory for tpu_custom_call.1']
    %22 = vsyncpa [#allocation3], 0
    // Predicated region
    $region2: #{tpu_custom_call.1} parent=1 // pred_check
      _
    $region3: #{tpu_custom_call.1} parent=1 // pred_check_branch
      %24 = sbr.rel (0) target = $region5
    $region4: #{tpu_custom_call.1} parent=1 // pred_region
      _
    $region5: #{tpu_custom_call.1} parent=1 // pred_fallthru
      _
    // Predicated region
    $region6: #{tpu_custom_call.1} parent=1 // pred_check
      _
    $region7: #{tpu_custom_call.1} parent=1 // pred_check_branch
      %26 = sbr.rel (0) target = $region9
    $region8: #{tpu_custom_call.1} parent=1 // pred_region
      _
    $region9: #{tpu_custom_call.1} parent=1 // pred_fallthru
      _
    // Predicated region
    $region10: #{tpu_custom_call.1} parent=1 // pred_check
      _
    $region11: #{tpu_custom_call.1} parent=1 // pred_check_branch
      %28 = sbr.rel (0) target = $region13
    $region12: #{tpu_custom_call.1} parent=1 // pred_region
      _
    $region13: #{tpu_custom_call.1} parent=1 // pred_fallthru
      _
    // Predicated region
    $region14: #{tpu_custom_call.1} parent=1 // pred_check
      _
    $region15: #{tpu_custom_call.1} parent=1 // pred_check_branch
      %30 = sbr.rel (0) target = $region17
    $region16: #{tpu_custom_call.1} parent=1 // pred_region
      _
    $region17: #{tpu_custom_call.1} parent=1 // pred_fallthru
      _
    // Predicated region
    $region18: #{tpu_custom_call.1} parent=1 // pred_check
      _
    $region19: #{tpu_custom_call.1} parent=1 // pred_check_branch
      %32 = sbr.rel (0) target = $region21
    $region20: #{tpu_custom_call.1} parent=1 // pred_region
      _
    $region21: #{tpu_custom_call.1} parent=1 // pred_fallthru
      _
    // Predicated region
    $region22: #{tpu_custom_call.1} parent=1 // pred_check
      _
    $region23: #{tpu_custom_call.1} parent=1 // pred_check_branch
      %34 = sbr.rel (0) target = $region25
    $region24: #{tpu_custom_call.1} parent=1 // pred_region
      _
    $region25: #{tpu_custom_call.1} parent=1 // pred_fallthru
      _
    // Predicated region
    $region26: #{tpu_custom_call.1} parent=1 // pred_check
      _
    $region27: #{tpu_custom_call.1} parent=1 // pred_check_branch
      %36 = sbr.rel (0) target = $region29
    $region28: #{tpu_custom_call.1} parent=1 // pred_region
      _
    $region29: #{tpu_custom_call.1} parent=1 // pred_fallthru
      _
    // Predicated region
    $region30: #{tpu_custom_call.1} parent=1 // pred_check
      _
    $region31: #{tpu_custom_call.1} parent=1 // pred_check_branch
      %38 = sbr.rel (0) target = $region33
    $region32: #{tpu_custom_call.1} parent=1 // pred_region
      _
    $region33: #{tpu_custom_call.1} parent=1 // pred_fallthru
      _
    // Predicated region
    $region34: #{tpu_custom_call.1} parent=1 // pred_check
      _
    $region35: #{tpu_custom_call.1} parent=1 // pred_check_branch
      %40 = sbr.rel (0) target = $region37
    $region36: #{tpu_custom_call.1} parent=1 // pred_region
      _
    $region37: #{tpu_custom_call.1} parent=1 // pred_fallthru
      _
    // Predicated region
    $region38: #{tpu_custom_call.1} parent=1 // pred_check
      _
    $region39: #{tpu_custom_call.1} parent=1 // pred_check_branch
      %42 = sbr.rel (0) target = $region41
    $region40: #{tpu_custom_call.1} parent=1 // pred_region
      _
    $region41: #{tpu_custom_call.1} parent=1 // pred_fallthru
      _
    // Predicated region
    $region42: #{tpu_custom_call.1} parent=1 // pred_check
      _
    $region43: #{tpu_custom_call.1} parent=1 // pred_check_branch
      %44 = sbr.rel (0) target = $region45
    $region44: #{tpu_custom_call.1} parent=1 // pred_region
      _
    $region45: #{tpu_custom_call.1} parent=1 // pred_fallthru
      _
    // Predicated region
    $region46: #{tpu_custom_call.1} parent=1 // pred_check
      _
    $region47: #{tpu_custom_call.1} parent=1 // pred_check_branch
      %46 = sbr.rel (0) target = $region49
    $region48: #{tpu_custom_call.1} parent=1 // pred_region
      _
    $region49: #{tpu_custom_call.1} parent=1 // pred_fallthru
      _
    // Predicated region
    $region50: #{tpu_custom_call.1} parent=1 // pred_check
      _
    $region51: #{tpu_custom_call.1} parent=1 // pred_check_branch
      %48 = sbr.rel (0) target = $region53
    $region52: #{tpu_custom_call.1} parent=1 // pred_region
      _
    $region53: #{tpu_custom_call.1} parent=1 // pred_fallthru
      _
    // Predicated region
    $region54: #{tpu_custom_call.1} parent=1 // pred_check
      _
    $region55: #{tpu_custom_call.1} parent=1 // pred_check_branch
      %50 = sbr.rel (0) target = $region57
    $region56: #{tpu_custom_call.1} parent=1 // pred_region
      _
    $region57: #{tpu_custom_call.1} parent=1 // pred_fallthru
      _
    // Predicated region
    $region58: #{tpu_custom_call.1} parent=1 // pred_check
      _
    $region59: #{tpu_custom_call.1} parent=1 // pred_check_branch
      %52 = sbr.rel (0) target = $region61
    $region60: #{tpu_custom_call.1} parent=1 // pred_region
      _
    $region61: #{tpu_custom_call.1} parent=1 // pred_fallthru
      _
    // Predicated region
    $region62: #{tpu_custom_call.1} parent=1 // pred_check
      _
    $region63: #{tpu_custom_call.1} parent=1 // pred_check_branch
      %54 = sbr.rel (0) target = $region65
    $region64: #{tpu_custom_call.1} parent=1 // pred_region
      _
    $region65: #{tpu_custom_call.1} parent=1 // pred_fallthru
      _
    // Predicated region
    $region66: #{tpu_custom_call.1} parent=1 // pred_check
      _
    $region67: #{tpu_custom_call.1} parent=1 // pred_check_branch
      %56 = sbr.rel (0) target = $region69
    $region68: #{tpu_custom_call.1} parent=1 // pred_region
      _
    $region69: #{tpu_custom_call.1} parent=1 // pred_fallthru
      _
    %v58 = vld [vmem:[%s0] sm:$0xff]
    %v59 = vld [vmem:[%s0 + $0x8] sm:$0xff]
    %v60 = vld [vmem:[%s1] sm:$0x1]
    %v61 = vld [vmem:[%s2] sm:$0x1]
    %vm62 = vcmask 261120
    %v63 = vsel %vm62, %v58, 0.0
    %64 = vadd.xlane.f32.xlu0 %v63
    %v65 = vpop.xlane.xlu0 %64
    %v66 = vsel %vm62, %v59, 0.0
    %67 = vadd.xlane.f32.xlu0 %v66
    %v68 = vpop.xlane.xlu0 %67
    %v69 = vrcp.pop 32.0
    %v70 = vmul.f32 %v65, %v69
    %v71 = vmul.f32 %v68, %v69
    %v72 = vsub.f32 %v58, %v70
    %v73 = vsub.f32 %v59, %v71
    %v74 = vmul.f32 %v72, %v72
    %v75 = vmul.f32 %v73, %v73
    %v76 = vsel %vm62, %v74, 0.0
    %77 = vadd.xlane.f32.xlu0 %v76
    %v78 = vpop.xlane.xlu0 %77
    %v79 = vsel %vm62, %v75, 0.0
    %80 = vadd.xlane.f32.xlu0 %v79
    %v81 = vpop.xlane.xlu0 %80
    %v82 = vmul.f32 %v78, %v69
    %v83 = vmul.f32 %v81, %v69
    %v84 = vadd.f32 %v82, 1e-05
    %v85 = vadd.f32 %v83, 1e-05
    %v86 = vrsqrt.pop %v84
    %v87 = vrsqrt.pop %v85
    %v88 = vmul.f32 %v72, %v86
    %v89 = vmul.f32 %v73, %v87
    %v91 = vlaneseq
    %v92 = vshrl.u32 %v91, 7
    %v93 = vsub.s32 0, %v92
    %v94 = vrot.slane %v60, %v93
    %v96 = vmul.f32 %v88, %v94
    %v97 = vmul.f32 %v89, %v94
    %v99 = vlaneseq
    %v100 = vshrl.u32 %v99, 7
    %v101 = vsub.s32 0, %v100
    %v102 = vrot.slane %v61, %v101
    %v104 = vadd.f32 %v96, %v102
    %v105 = vadd.f32 %v97, %v102
    %v106 = vpack.c.bf16 %v105, %v104
    %v107 = vld [vmem:[%s3] sm:$0xff]
    %v108 = vld [vmem:[%s3 + $0x8] sm:$0xff]
    %v109 = vld [vmem:[%s3 + $0x10] sm:$0xff]
    %v110 = vld [vmem:[%s3 + $0x18] sm:$0xff]
    %v111 = vld [vmem:[%s4] sm:$0x3]
    %v113 = vlaneseq
    %v114 = vshrl.u32 %v113, 7
    %v115 = vsub.s32 0, %v114
    %v116 = vrot.slane %v111, %v115
    %v117 = vlaneseq
    %v118 = vshrl.u32 %v117, 7
    %v119 = vsub.s32 1, %v118
    %v120 = vrot.slane %v111, %v119
    %v127 = vunpack.c.l.b16 %v107
    %v128 = vunpack.c.h.b16 %v107
    %v129 = vunpack.c.l.b16 %v108
    %v130 = vunpack.c.h.b16 %v108
    %v131 = vunpack.c.l.b16 %v109
    %v132 = vunpack.c.h.b16 %v109
    %v133 = vunpack.c.l.b16 %v110
    %v134 = vunpack.c.h.b16 %v110
    %v135 = vpack.c.b16 %v129, %v127
    %v136 = vpack.c.b16 %v130, %v128
    %v137 = vpack.c.b16 %v133, %v131
    %v138 = vpack.c.b16 %v134, %v132
    %v144 = vsel %vm62, %v106, 0
    %146 = vmatprep.subr.bf16.mxu0 %v136
    %147 = vmatpush1.bf16.msra.mxu0 %v135
    %148 = vmatprep.subr.bf16.mxu0 %v138
    %149 = vmatpush1.bf16.msra.mxu0 %v137
    %150 = vmatprep.subr.bf16.mxu0 0
    %151 = vmatpush1.bf16.msra.mxu0 0
    %152 = vmatprep.subr.bf16.mxu0 0
    %153 = vmatpush1.bf16.msra.mxu0 0
    %154 = vmatprep.subr.bf16.mxu0 0
    %155 = vmatpush1.bf16.msra.mxu0 0
    %156 = vmatprep.subr.bf16.mxu0 0
    %157 = vmatpush1.bf16.msra.mxu0 0
    %158 = vmatprep.subr.bf16.mxu0 0
    %159 = vmatpush1.bf16.msra.mxu0 0
    %160 = vmatprep.subr.bf16.mxu0 0
    %161 = vmatpush1.bf16.msra.mxu0 0
    %162 = vmatprep.subr.bf16.mxu0 0
    %163 = vmatpush1.bf16.msra.mxu0 0
    %164 = vmatprep.subr.bf16.mxu0 0
    %165 = vmatpush1.bf16.msra.mxu0 0
    %166 = vmatprep.subr.bf16.mxu0 0
    %167 = vmatpush1.bf16.msra.mxu0 0
    %168 = vmatprep.subr.bf16.mxu0 0
    %169 = vmatpush1.bf16.msra.mxu0 0
    %170 = vmatprep.subr.bf16.mxu0 0
    %171 = vmatpush1.bf16.msra.mxu0 0
    %172 = vmatprep.subr.bf16.mxu0 0
    %173 = vmatpush1.bf16.msra.mxu0 0
    %174 = vmatprep.subr.bf16.mxu0 0
    %175 = vmatpush1.bf16.msra.mxu0 0
    %176 = vmatprep.subr.bf16.mxu0 0
    %177 = vmatpush1.bf16.msra.mxu0 0
    %178 = vmatprep.mubr.bf16.mxu0 0
    %179 = vmatmul.mubr.bf16.gmra.mrb[0].mxu0 %v144
    %v180 = vpop.f32.mrb[0].mxu0
    %v181 = vadd.f32 %v116, %v180
    %v182 = vpop.f32.mrb[0].mxu0
    %v183 = vadd.f32 %v120, %v182
    %v184 = vpop.f32.mrb[0].mxu0
    %v185 = vadd.f32 %v116, %v184
    %v186 = vpop.f32.mrb[0].mxu0
    %v187 = vadd.f32 %v120, %v186
    %188 = vdwg.mxu0
    %v189 = vpack.c.bf16 %v185, %v181
    %v190 = vpack.c.bf16 %v187, %v183
    %v191 = vld [vmem:[%s5] sm:$0xff]
    %v192 = vld [vmem:[%s5 + $0x8] sm:$0xff]
    %v193 = vld [vmem:[%s5 + $0x10] sm:$0xff]
    %v194 = vld [vmem:[%s5 + $0x18] sm:$0xff]
    %v195 = vld [vmem:[%s6] sm:$0x3]
    %v197 = vlaneseq
    %v198 = vshrl.u32 %v197, 7
    %v199 = vsub.s32 0, %v198
    %v200 = vrot.slane %v195, %v199
    %v201 = vlaneseq
    %v202 = vshrl.u32 %v201, 7
    %v203 = vsub.s32 1, %v202
    %v204 = vrot.slane %v195, %v203
    %v211 = vunpack.c.l.b16 %v191
    %v212 = vunpack.c.h.b16 %v191
    %v213 = vunpack.c.l.b16 %v192
    %v214 = vunpack.c.h.b16 %v192
    %v215 = vunpack.c.l.b16 %v193
    %v216 = vunpack.c.h.b16 %v193
    %v217 = vunpack.c.l.b16 %v194
    %v218 = vunpack.c.h.b16 %v194
    %v219 = vpack.c.b16 %v213, %v211
    %v220 = vpack.c.b16 %v214, %v212
    %v221 = vpack.c.b16 %v217, %v215
    %v222 = vpack.c.b16 %v218, %v216
    %227 = vmatprep.subr.bf16.mxu0 %v220
    %228 = vmatpush1.bf16.msra.mxu0 %v219
    %229 = vmatprep.subr.bf16.mxu0 %v222
    %230 = vmatpush1.bf16.msra.mxu0 %v221
    %231 = vmatprep.subr.bf16.mxu0 0
    %232 = vmatpush1.bf16.msra.mxu0 0
    %233 = vmatprep.subr.bf16.mxu0 0
    %234 = vmatpush1.bf16.msra.mxu0 0
    %235 = vmatprep.subr.bf16.mxu0 0
    %236 = vmatpush1.bf16.msra.mxu0 0
    %237 = vmatprep.subr.bf16.mxu0 0
    %238 = vmatpush1.bf16.msra.mxu0 0
    %239 = vmatprep.subr.bf16.mxu0 0
    %240 = vmatpush1.bf16.msra.mxu0 0
    %241 = vmatprep.subr.bf16.mxu0 0
    %242 = vmatpush1.bf16.msra.mxu0 0
    %243 = vmatprep.subr.bf16.mxu0 0
    %244 = vmatpush1.bf16.msra.mxu0 0
    %245 = vmatprep.subr.bf16.mxu0 0
    %246 = vmatpush1.bf16.msra.mxu0 0
    %247 = vmatprep.subr.bf16.mxu0 0
    %248 = vmatpush1.bf16.msra.mxu0 0
    %249 = vmatprep.subr.bf16.mxu0 0
    %250 = vmatpush1.bf16.msra.mxu0 0
    %251 = vmatprep.subr.bf16.mxu0 0
    %252 = vmatpush1.bf16.msra.mxu0 0
    %253 = vmatprep.subr.bf16.mxu0 0
    %254 = vmatpush1.bf16.msra.mxu0 0
    %255 = vmatprep.subr.bf16.mxu0 0
    %256 = vmatpush1.bf16.msra.mxu0 0
    %257 = vmatprep.subr.bf16.mxu0 0
    %258 = vmatpush1.bf16.msra.mxu0 0
    %259 = vmatprep.mubr.bf16.mxu0 0
    %260 = vmatmul.mubr.bf16.gmra.mrb[0].mxu0 %v144
    %v261 = vpop.f32.mrb[0].mxu0
    %v262 = vadd.f32 %v200, %v261
    %v263 = vpop.f32.mrb[0].mxu0
    %v264 = vadd.f32 %v204, %v263
    %v265 = vpop.f32.mrb[0].mxu0
    %v266 = vadd.f32 %v200, %v265
    %v267 = vpop.f32.mrb[0].mxu0
    %v268 = vadd.f32 %v204, %v267
    %269 = vdwg.mxu0
    %v270 = vpack.c.bf16 %v266, %v262
    %v271 = vpack.c.bf16 %v268, %v264
    %v272 = vld [vmem:[%s7] sm:$0xff]
    %v273 = vld [vmem:[%s7 + $0x8] sm:$0xff]
    %v274 = vld [vmem:[%s7 + $0x10] sm:$0xff]
    %v275 = vld [vmem:[%s7 + $0x18] sm:$0xff]
    %v276 = vld [vmem:[%s8] sm:$0x3]
    %v278 = vlaneseq
    %v279 = vshrl.u32 %v278, 7
    %v280 = vsub.s32 0, %v279
    %v281 = vrot.slane %v276, %v280
    %v282 = vlaneseq
    %v283 = vshrl.u32 %v282, 7
    %v284 = vsub.s32 1, %v283
    %v285 = vrot.slane %v276, %v284
    %v292 = vunpack.c.l.b16 %v272
    %v293 = vunpack.c.h.b16 %v272
    %v294 = vunpack.c.l.b16 %v273
    %v295 = vunpack.c.h.b16 %v273
    %v296 = vunpack.c.l.b16 %v274
    %v297 = vunpack.c.h.b16 %v274
    %v298 = vunpack.c.l.b16 %v275
    %v299 = vunpack.c.h.b16 %v275
    %v300 = vpack.c.b16 %v294, %v292
    %v301 = vpack.c.b16 %v295, %v293
    %v302 = vpack.c.b16 %v298, %v296
    %v303 = vpack.c.b16 %v299, %v297
    %308 = vmatprep.subr.bf16.mxu0 %v301
    %309 = vmatpush1.bf16.msra.mxu0 %v300
    %310 = vmatprep.subr.bf16.mxu0 %v303
    %311 = vmatpush1.bf16.msra.mxu0 %v302
    %312 = vmatprep.subr.bf16.mxu0 0
    %313 = vmatpush1.bf16.msra.mxu0 0
    %314 = vmatprep.subr.bf16.mxu0 0
    %315 = vmatpush1.bf16.msra.mxu0 0
    %316 = vmatprep.subr.bf16.mxu0 0
    %317 = vmatpush1.bf16.msra.mxu0 0
    %318 = vmatprep.subr.bf16.mxu0 0
    %319 = vmatpush1.bf16.msra.mxu0 0
    %320 = vmatprep.subr.bf16.mxu0 0
    %321 = vmatpush1.bf16.msra.mxu0 0
    %322 = vmatprep.subr.bf16.mxu0 0
    %323 = vmatpush1.bf16.msra.mxu0 0
    %324 = vmatprep.subr.bf16.mxu0 0
    %325 = vmatpush1.bf16.msra.mxu0 0
    %326 = vmatprep.subr.bf16.mxu0 0
    %327 = vmatpush1.bf16.msra.mxu0 0
    %328 = vmatprep.subr.bf16.mxu0 0
    %329 = vmatpush1.bf16.msra.mxu0 0
    %330 = vmatprep.subr.bf16.mxu0 0
    %331 = vmatpush1.bf16.msra.mxu0 0
    %332 = vmatprep.subr.bf16.mxu0 0
    %333 = vmatpush1.bf16.msra.mxu0 0
    %334 = vmatprep.subr.bf16.mxu0 0
    %335 = vmatpush1.bf16.msra.mxu0 0
    %336 = vmatprep.subr.bf16.mxu0 0
    %337 = vmatpush1.bf16.msra.mxu0 0
    %338 = vmatprep.subr.bf16.mxu0 0
    %339 = vmatpush1.bf16.msra.mxu0 0
    %340 = vmatprep.mubr.bf16.mxu0 0
    %341 = vmatmul.mubr.bf16.gmra.mrb[0].mxu0 %v144
    %v342 = vpop.f32.mrb[0].mxu0
    %v343 = vadd.f32 %v281, %v342
    %v344 = vpop.f32.mrb[0].mxu0
    %v345 = vadd.f32 %v285, %v344
    %v346 = vpop.f32.mrb[0].mxu0
    %v347 = vadd.f32 %v281, %v346
    %v348 = vpop.f32.mrb[0].mxu0
    %v349 = vadd.f32 %v285, %v348
    %350 = vdwg.mxu0
    %v351 = vpack.c.bf16 %v347, %v343
    %v352 = vpack.c.bf16 %v349, %v345
    %v355 = vunpack.c.l.b16 %v189
    %v356 = vunpack.c.l.b16 %v190
    %v357 = vunpack.c.h.b16 %v189
    %v358 = vunpack.c.h.b16 %v190
    %v359 = vpack.c.b16 %v356, %v355
    %v360 = vpack.c.b16 %v358, %v357
    %v365 = vunpack.c.l.b16 %v270
    %v366 = vunpack.c.l.b16 %v271
    %v367 = vunpack.c.h.b16 %v270
    %v368 = vunpack.c.h.b16 %v271
    %v369 = vpack.c.b16 %v366, %v365
    %v370 = vpack.c.b16 %v368, %v367
    %v375 = vunpack.c.l.b16 %v351
    %v376 = vunpack.c.l.b16 %v352
    %v377 = vunpack.c.h.b16 %v351
    %v378 = vunpack.c.h.b16 %v352
    %v379 = vpack.c.b16 %v376, %v375
    %v380 = vpack.c.b16 %v378, %v377
    %381 = vmatprep.subr.bf16.mxu0 0
    %382 = vmatpush1.bf16.xpose.msra.mxu0 %v369
    %383 = vmatprep.subr.bf16.mxu0 0
    %384 = vmatpush1.bf16.xpose.msra.mxu0 0
    %385 = vmatprep.subr.bf16.mxu0 0
    %386 = vmatpush1.bf16.xpose.msra.mxu0 0
    %387 = vmatprep.subr.bf16.mxu0 0
    %388 = vmatpush1.bf16.xpose.msra.mxu0 0
    %389 = vmatprep.subr.bf16.mxu0 0
    %390 = vmatpush1.bf16.xpose.msra.mxu0 0
    %391 = vmatprep.subr.bf16.mxu0 0
    %392 = vmatpush1.bf16.xpose.msra.mxu0 0
    %393 = vmatprep.subr.bf16.mxu0 0
    %394 = vmatpush1.bf16.xpose.msra.mxu0 0
    %395 = vmatprep.subr.bf16.mxu0 0
    %396 = vmatpush1.bf16.xpose.msra.mxu0 0
    %397 = vmatprep.subr.bf16.mxu0 0
    %398 = vmatpush1.bf16.xpose.msra.mxu0 0
    %399 = vmatprep.subr.bf16.mxu0 0
    %400 = vmatpush1.bf16.xpose.msra.mxu0 0
    %401 = vmatprep.subr.bf16.mxu0 0
    %402 = vmatpush1.bf16.xpose.msra.mxu0 0
    %403 = vmatprep.subr.bf16.mxu0 0
    %404 = vmatpush1.bf16.xpose.msra.mxu0 0
    %405 = vmatprep.subr.bf16.mxu0 0
    %406 = vmatpush1.bf16.xpose.msra.mxu0 0
    %407 = vmatprep.subr.bf16.mxu0 0
    %408 = vmatpush1.bf16.xpose.msra.mxu0 0
    %409 = vmatprep.subr.bf16.mxu0 0
    %410 = vmatpush1.bf16.xpose.msra.mxu0 0
    %411 = vmatprep.subr.bf16.mxu0 0
    %412 = vmatpush1.bf16.xpose.msra.mxu0 0
    %413 = vmatprep.mubr.bf16.mxu0 0
    %414 = vmatmul.mubr.bf16.gmra.mrb[0].mxu0 %v359
    %v415 = vpop.f32.mrb[0].mxu0
    %v416 = vadd.f32 0.0, %v415
    %v417 = vpop.f32.mrb[0].mxu0
    %v418 = vpop.f32.mrb[0].mxu0
    %v419 = vpop.f32.mrb[0].mxu0
    %420 = vdwg.mxu0
    %421 = vmatprep.subr.bf16.mxu0 0
    %422 = vmatpush1.bf16.xpose.msra.mxu0 %v370
    %423 = vmatprep.subr.bf16.mxu0 0
    %424 = vmatpush1.bf16.xpose.msra.mxu0 0
    %425 = vmatprep.subr.bf16.mxu0 0
    %426 = vmatpush1.bf16.xpose.msra.mxu0 0
    %427 = vmatprep.subr.bf16.mxu0 0
    %428 = vmatpush1.bf16.xpose.msra.mxu0 0
    %429 = vmatprep.subr.bf16.mxu0 0
    %430 = vmatpush1.bf16.xpose.msra.mxu0 0
    %431 = vmatprep.subr.bf16.mxu0 0
    %432 = vmatpush1.bf16.xpose.msra.mxu0 0
    %433 = vmatprep.subr.bf16.mxu0 0
    %434 = vmatpush1.bf16.xpose.msra.mxu0 0
    %435 = vmatprep.subr.bf16.mxu0 0
    %436 = vmatpush1.bf16.xpose.msra.mxu0 0
    %437 = vmatprep.subr.bf16.mxu0 0
    %438 = vmatpush1.bf16.xpose.msra.mxu0 0
    %439 = vmatprep.subr.bf16.mxu0 0
    %440 = vmatpush1.bf16.xpose.msra.mxu0 0
    %441 = vmatprep.subr.bf16.mxu0 0
    %442 = vmatpush1.bf16.xpose.msra.mxu0 0
    %443 = vmatprep.subr.bf16.mxu0 0
    %444 = vmatpush1.bf16.xpose.msra.mxu0 0
    %445 = vmatprep.subr.bf16.mxu0 0
    %446 = vmatpush1.bf16.xpose.msra.mxu0 0
    %447 = vmatprep.subr.bf16.mxu0 0
    %448 = vmatpush1.bf16.xpose.msra.mxu0 0
    %449 = vmatprep.subr.bf16.mxu0 0
    %450 = vmatpush1.bf16.xpose.msra.mxu0 0
    %451 = vmatprep.subr.bf16.mxu0 0
    %452 = vmatpush1.bf16.xpose.msra.mxu0 0
    %453 = vmatprep.mubr.bf16.mxu0 0
    %454 = vmatmul.mubr.bf16.gmra.mrb[0].mxu0 %v360
    %v455 = vpop.f32.mrb[0].mxu0
    %v456 = vadd.f32 0.0, %v455
    %v457 = vpop.f32.mrb[0].mxu0
    %v458 = vpop.f32.mrb[0].mxu0
    %v459 = vpop.f32.mrb[0].mxu0
    %460 = vdwg.mxu0
    %vm461 = vcmask 64512
    %v462 = vsel %vm461, %v416, -inf
    %463 = vmax.xlane.f32.xlu0 %v462
    %v464 = vpop.xlane.xlu0 %463
    %v465 = vsel %vm461, %v456, -inf
    %466 = vmax.xlane.f32.xlu0 %v465
    %v467 = vpop.xlane.xlu0 %466
    %v468 = vsub.f32 %v416, %v464
    %v469 = vsub.f32 %v456, %v467
    %v470 = vmul.f32 %v468, 1.442695
    %v471 = vpow.pop %v470
    %v472 = vmul.f32 %v469, 1.442695
    %v473 = vpow.pop %v472
    %v474 = vsel %vm461, %v471, 0.0
    %475 = vadd.xlane.f32.xlu0 %v474
    %v476 = vpop.xlane.xlu0 %475
    %v477 = vsel %vm461, %v473, 0.0
    %478 = vadd.xlane.f32.xlu0 %v477
    %v479 = vpop.xlane.xlu0 %478
    %v480 = vrcp.pop %v476
    %v481 = vrcp.pop %v479
    %v482 = vpack.c.bf16 %v471, %v471
    %v483 = vpack.c.bf16 %v473, %v473
    %v485 = vsel %vm461, %v482, 0
    %vm487 = vcmask 1043456
    %v489 = vsel %vm487, %v379, 0
    %491 = vmatprep.subr.bf16.mxu0 0
    %492 = vmatpush1.bf16.msra.mxu0 %v489
    %493 = vmatprep.subr.bf16.mxu0 0
    %494 = vmatpush1.bf16.msra.mxu0 0
    %495 = vmatprep.subr.bf16.mxu0 0
    %496 = vmatpush1.bf16.msra.mxu0 0
    %497 = vmatprep.subr.bf16.mxu0 0
    %498 = vmatpush1.bf16.msra.mxu0 0
    %499 = vmatprep.subr.bf16.mxu0 0
    %500 = vmatpush1.bf16.msra.mxu0 0
    %501 = vmatprep.subr.bf16.mxu0 0
    %502 = vmatpush1.bf16.msra.mxu0 0
    %503 = vmatprep.subr.bf16.mxu0 0
    %504 = vmatpush1.bf16.msra.mxu0 0
    %505 = vmatprep.subr.bf16.mxu0 0
    %506 = vmatpush1.bf16.msra.mxu0 0
    %507 = vmatprep.subr.bf16.mxu0 0
    %508 = vmatpush1.bf16.msra.mxu0 0
    %509 = vmatprep.subr.bf16.mxu0 0
    %510 = vmatpush1.bf16.msra.mxu0 0
    %511 = vmatprep.subr.bf16.mxu0 0
    %512 = vmatpush1.bf16.msra.mxu0 0
    %513 = vmatprep.subr.bf16.mxu0 0
    %514 = vmatpush1.bf16.msra.mxu0 0
    %515 = vmatprep.subr.bf16.mxu0 0
    %516 = vmatpush1.bf16.msra.mxu0 0
    %517 = vmatprep.subr.bf16.mxu0 0
    %518 = vmatpush1.bf16.msra.mxu0 0
    %519 = vmatprep.subr.bf16.mxu0 0
    %520 = vmatpush1.bf16.msra.mxu0 0
    %521 = vmatprep.subr.bf16.mxu0 0
    %522 = vmatpush1.bf16.msra.mxu0 0
    %523 = vmatprep.mubr.bf16.mxu0 0
    %524 = vmatmul.mubr.bf16.gmra.mrb[0].mxu0 %v485
    %v525 = vpop.f32.mrb[0].mxu0
    %v526 = vadd.f32 0.0, %v525
    %v527 = vpop.f32.mrb[0].mxu0
    %v528 = vpop.f32.mrb[0].mxu0
    %v529 = vpop.f32.mrb[0].mxu0
    %530 = vdwg.mxu0
    %v532 = vsel %vm461, %v483, 0
    %v535 = vsel %vm487, %v380, 0
    %537 = vmatprep.subr.bf16.mxu0 0
    %538 = vmatpush1.bf16.msra.mxu0 %v535
    %539 = vmatprep.subr.bf16.mxu0 0
    %540 = vmatpush1.bf16.msra.mxu0 0
    %541 = vmatprep.subr.bf16.mxu0 0
    %542 = vmatpush1.bf16.msra.mxu0 0
    %543 = vmatprep.subr.bf16.mxu0 0
    %544 = vmatpush1.bf16.msra.mxu0 0
    %545 = vmatprep.subr.bf16.mxu0 0
    %546 = vmatpush1.bf16.msra.mxu0 0
    %547 = vmatprep.subr.bf16.mxu0 0
    %548 = vmatpush1.bf16.msra.mxu0 0
    %549 = vmatprep.subr.bf16.mxu0 0
    %550 = vmatpush1.bf16.msra.mxu0 0
    %551 = vmatprep.subr.bf16.mxu0 0
    %552 = vmatpush1.bf16.msra.mxu0 0
    %553 = vmatprep.subr.bf16.mxu0 0
    %554 = vmatpush1.bf16.msra.mxu0 0
    %555 = vmatprep.subr.bf16.mxu0 0
    %556 = vmatpush1.bf16.msra.mxu0 0
    %557 = vmatprep.subr.bf16.mxu0 0
    %558 = vmatpush1.bf16.msra.mxu0 0
    %559 = vmatprep.subr.bf16.mxu0 0
    %560 = vmatpush1.bf16.msra.mxu0 0
    %561 = vmatprep.subr.bf16.mxu0 0
    %562 = vmatpush1.bf16.msra.mxu0 0
    %563 = vmatprep.subr.bf16.mxu0 0
    %564 = vmatpush1.bf16.msra.mxu0 0
    %565 = vmatprep.subr.bf16.mxu0 0
    %566 = vmatpush1.bf16.msra.mxu0 0
    %567 = vmatprep.subr.bf16.mxu0 0
    %568 = vmatpush1.bf16.msra.mxu0 0
    %569 = vmatprep.mubr.bf16.mxu0 0
    %570 = vmatmul.mubr.bf16.gmra.mrb[0].mxu0 %v532
    %v571 = vpop.f32.mrb[0].mxu0
    %v572 = vadd.f32 0.0, %v571
    %v573 = vpop.f32.mrb[0].mxu0
    %v574 = vpop.f32.mrb[0].mxu0
    %v575 = vpop.f32.mrb[0].mxu0
    %576 = vdwg.mxu0
    %v577 = vmul.f32 %v526, %v480
    %v578 = vmul.f32 %v572, %v481
    %v579 = vpack.c.bf16 %v578, %v577
    %v580 = vld [vmem:[%s9] sm:$0xf]
    %v581 = vld [vmem:[%s9 + $0x4] sm:$0xf]
    %v582 = vld [vmem:[%s9 + $0x8] sm:$0xf]
    %v583 = vld [vmem:[%s9 + $0xc] sm:$0xf]
    %v584 = vld [vmem:[%s9 + $0x10] sm:$0xf]
    %v585 = vld [vmem:[%s9 + $0x14] sm:$0xf]
    %v586 = vld [vmem:[%s9 + $0x18] sm:$0xf]
    %v587 = vld [vmem:[%s9 + $0x1c] sm:$0xf]
    %v588 = vld [vmem:[%s9 + $0x20] sm:$0xf]
    %v589 = vld [vmem:[%s9 + $0x24] sm:$0xf]
    %v590 = vld [vmem:[%s9 + $0x28] sm:$0xf]
    %v591 = vld [vmem:[%s9 + $0x2c] sm:$0xf]
    %v592 = vld [vmem:[%s9 + $0x30] sm:$0xf]
    %v593 = vld [vmem:[%s9 + $0x34] sm:$0xf]
    %v594 = vld [vmem:[%s9 + $0x38] sm:$0xf]
    %v595 = vld [vmem:[%s9 + $0x3c] sm:$0xf]
    %v596 = vrot.slane %v359, 4
    %v598 = vrot.slane %v369, 4
    %600 = vmatprep.subr.bf16.mxu0 0
    %601 = vmatpush1.bf16.xpose.msra.mxu0 %v598
    %602 = vmatprep.subr.bf16.mxu0 0
    %603 = vmatpush1.bf16.xpose.msra.mxu0 0
    %604 = vmatprep.subr.bf16.mxu0 0
    %605 = vmatpush1.bf16.xpose.msra.mxu0 0
    %606 = vmatprep.subr.bf16.mxu0 0
    %607 = vmatpush1.bf16.xpose.msra.mxu0 0
    %608 = vmatprep.subr.bf16.mxu0 0
    %609 = vmatpush1.bf16.xpose.msra.mxu0 0
    %610 = vmatprep.subr.bf16.mxu0 0
    %611 = vmatpush1.bf16.xpose.msra.mxu0 0
    %612 = vmatprep.subr.bf16.mxu0 0
    %613 = vmatpush1.bf16.xpose.msra.mxu0 0
    %614 = vmatprep.subr.bf16.mxu0 0
    %615 = vmatpush1.bf16.xpose.msra.mxu0 0
    %616 = vmatprep.subr.bf16.mxu0 0
    %617 = vmatpush1.bf16.xpose.msra.mxu0 0
    %618 = vmatprep.subr.bf16.mxu0 0
    %619 = vmatpush1.bf16.xpose.msra.mxu0 0
    %620 = vmatprep.subr.bf16.mxu0 0
    %621 = vmatpush1.bf16.xpose.msra.mxu0 0
    %622 = vmatprep.subr.bf16.mxu0 0
    %623 = vmatpush1.bf16.xpose.msra.mxu0 0
    %624 = vmatprep.subr.bf16.mxu0 0
    %625 = vmatpush1.bf16.xpose.msra.mxu0 0
    %626 = vmatprep.subr.bf16.mxu0 0
    %627 = vmatpush1.bf16.xpose.msra.mxu0 0
    %628 = vmatprep.subr.bf16.mxu0 0
    %629 = vmatpush1.bf16.xpose.msra.mxu0 0
    %630 = vmatprep.subr.bf16.mxu0 0
    %631 = vmatpush1.bf16.xpose.msra.mxu0 0
    %632 = vmatprep.mubr.bf16.mxu0 0
    %633 = vmatmul.mubr.bf16.gmra.mrb[0].mxu0 %v596
    %v634 = vpop.f32.mrb[0].mxu0
    %v635 = vadd.f32 0.0, %v634
    %v636 = vpop.f32.mrb[0].mxu0
    %v637 = vpop.f32.mrb[0].mxu0
    %v638 = vpop.f32.mrb[0].mxu0
    %639 = vdwg.mxu0
    %v640 = vrot.slane %v360, 4
    %v642 = vrot.slane %v370, 4
    %644 = vmatprep.subr.bf16.mxu0 0
    %645 = vmatpush1.bf16.xpose.msra.mxu0 %v642
    %646 = vmatprep.subr.bf16.mxu0 0
    %647 = vmatpush1.bf16.xpose.msra.mxu0 0
    %648 = vmatprep.subr.bf16.mxu0 0
    %649 = vmatpush1.bf16.xpose.msra.mxu0 0
    %650 = vmatprep.subr.bf16.mxu0 0
    %651 = vmatpush1.bf16.xpose.msra.mxu0 0
    %652 = vmatprep.subr.bf16.mxu0 0
    %653 = vmatpush1.bf16.xpose.msra.mxu0 0
    %654 = vmatprep.subr.bf16.mxu0 0
    %655 = vmatpush1.bf16.xpose.msra.mxu0 0
    %656 = vmatprep.subr.bf16.mxu0 0
    %657 = vmatpush1.bf16.xpose.msra.mxu0 0
    %658 = vmatprep.subr.bf16.mxu0 0
    %659 = vmatpush1.bf16.xpose.msra.mxu0 0
    %660 = vmatprep.subr.bf16.mxu0 0
    %661 = vmatpush1.bf16.xpose.msra.mxu0 0
    %662 = vmatprep.subr.bf16.mxu0 0
    %663 = vmatpush1.bf16.xpose.msra.mxu0 0
    %664 = vmatprep.subr.bf16.mxu0 0
    %665 = vmatpush1.bf16.xpose.msra.mxu0 0
    %666 = vmatprep.subr.bf16.mxu0 0
    %667 = vmatpush1.bf16.xpose.msra.mxu0 0
    %668 = vmatprep.subr.bf16.mxu0 0
    %669 = vmatpush1.bf16.xpose.msra.mxu0 0
    %670 = vmatprep.subr.bf16.mxu0 0
    %671 = vmatpush1.bf16.xpose.msra.mxu0 0
    %672 = vmatprep.subr.bf16.mxu0 0
    %673 = vmatpush1.bf16.xpose.msra.mxu0 0
    %674 = vmatprep.subr.bf16.mxu0 0
    %675 = vmatpush1.bf16.xpose.msra.mxu0 0
    %676 = vmatprep.mubr.bf16.mxu0 0
    %677 = vmatmul.mubr.bf16.gmra.mrb[0].mxu0 %v640
    %v678 = vpop.f32.mrb[0].mxu0
    %v679 = vadd.f32 0.0, %v678
    %v680 = vpop.f32.mrb[0].mxu0
    %v681 = vpop.f32.mrb[0].mxu0
    %v682 = vpop.f32.mrb[0].mxu0
    %683 = vdwg.mxu0
    %v684 = vsel %vm461, %v635, -inf
    %685 = vmax.xlane.f32.xlu0 %v684
    %v686 = vpop.xlane.xlu0 %685
    %v687 = vsel %vm461, %v679, -inf
    %688 = vmax.xlane.f32.xlu0 %v687
    %v689 = vpop.xlane.xlu0 %688
    %v690 = vsub.f32 %v635, %v686
    %v691 = vsub.f32 %v679, %v689
    %v692 = vmul.f32 %v690, 1.442695
    %v693 = vpow.pop %v692
    %v694 = vmul.f32 %v691, 1.442695
    %v695 = vpow.pop %v694
    %v696 = vsel %vm461, %v693, 0.0
    %697 = vadd.xlane.f32.xlu0 %v696
    %v698 = vpop.xlane.xlu0 %697
    %v699 = vsel %vm461, %v695, 0.0
    %700 = vadd.xlane.f32.xlu0 %v699
    %v701 = vpop.xlane.xlu0 %700
    %v702 = vrcp.pop %v698
    %v703 = vrcp.pop %v701
    %v704 = vpack.c.bf16 %v693, %v693
    %v705 = vpack.c.bf16 %v695, %v695
    %v706 = vrot.slane %v379, 4
    %v708 = vsel %vm461, %v704, 0
    %v711 = vsel %vm487, %v706, 0
    %713 = vmatprep.subr.bf16.mxu0 0
    %714 = vmatpush1.bf16.msra.mxu0 %v711
    %715 = vmatprep.subr.bf16.mxu0 0
    %716 = vmatpush1.bf16.msra.mxu0 0
    %717 = vmatprep.subr.bf16.mxu0 0
    %718 = vmatpush1.bf16.msra.mxu0 0
    %719 = vmatprep.subr.bf16.mxu0 0
    %720 = vmatpush1.bf16.msra.mxu0 0
    %721 = vmatprep.subr.bf16.mxu0 0
    %722 = vmatpush1.bf16.msra.mxu0 0
    %723 = vmatprep.subr.bf16.mxu0 0
    %724 = vmatpush1.bf16.msra.mxu0 0
    %725 = vmatprep.subr.bf16.mxu0 0
    %726 = vmatpush1.bf16.msra.mxu0 0
    %727 = vmatprep.subr.bf16.mxu0 0
    %728 = vmatpush1.bf16.msra.mxu0 0
    %729 = vmatprep.subr.bf16.mxu0 0
    %730 = vmatpush1.bf16.msra.mxu0 0
    %731 = vmatprep.subr.bf16.mxu0 0
    %732 = vmatpush1.bf16.msra.mxu0 0
    %733 = vmatprep.subr.bf16.mxu0 0
    %734 = vmatpush1.bf16.msra.mxu0 0
    %735 = vmatprep.subr.bf16.mxu0 0
    %736 = vmatpush1.bf16.msra.mxu0 0
    %737 = vmatprep.subr.bf16.mxu0 0
    %738 = vmatpush1.bf16.msra.mxu0 0
    %739 = vmatprep.subr.bf16.mxu0 0
    %740 = vmatpush1.bf16.msra.mxu0 0
    %741 = vmatprep.subr.bf16.mxu0 0
    %742 = vmatpush1.bf16.msra.mxu0 0
    %743 = vmatprep.subr.bf16.mxu0 0
    %744 = vmatpush1.bf16.msra.mxu0 0
    %745 = vmatprep.mubr.bf16.mxu0 0
    %746 = vmatmul.mubr.bf16.gmra.mrb[0].mxu0 %v708
    %v747 = vpop.f32.mrb[0].mxu0
    %v748 = vadd.f32 0.0, %v747
    %v749 = vpop.f32.mrb[0].mxu0
    %v750 = vpop.f32.mrb[0].mxu0
    %v751 = vpop.f32.mrb[0].mxu0
    %752 = vdwg.mxu0
    %v753 = vrot.slane %v380, 4
    %v755 = vsel %vm461, %v705, 0
    %v758 = vsel %vm487, %v753, 0
    %760 = vmatprep.subr.bf16.mxu0 0
    %761 = vmatpush1.bf16.msra.mxu0 %v758
    %762 = vmatprep.subr.bf16.mxu0 0
    %763 = vmatpush1.bf16.msra.mxu0 0
    %764 = vmatprep.subr.bf16.mxu0 0
    %765 = vmatpush1.bf16.msra.mxu0 0
    %766 = vmatprep.subr.bf16.mxu0 0
    %767 = vmatpush1.bf16.msra.mxu0 0
    %768 = vmatprep.subr.bf16.mxu0 0
    %769 = vmatpush1.bf16.msra.mxu0 0
    %770 = vmatprep.subr.bf16.mxu0 0
    %771 = vmatpush1.bf16.msra.mxu0 0
    %772 = vmatprep.subr.bf16.mxu0 0
    %773 = vmatpush1.bf16.msra.mxu0 0
    %774 = vmatprep.subr.bf16.mxu0 0
    %775 = vmatpush1.bf16.msra.mxu0 0
    %776 = vmatprep.subr.bf16.mxu0 0
    %777 = vmatpush1.bf16.msra.mxu0 0
    %778 = vmatprep.subr.bf16.mxu0 0
    %779 = vmatpush1.bf16.msra.mxu0 0
    %780 = vmatprep.subr.bf16.mxu0 0
    %781 = vmatpush1.bf16.msra.mxu0 0
    %782 = vmatprep.subr.bf16.mxu0 0
    %783 = vmatpush1.bf16.msra.mxu0 0
    %784 = vmatprep.subr.bf16.mxu0 0
    %785 = vmatpush1.bf16.msra.mxu0 0
    %786 = vmatprep.subr.bf16.mxu0 0
    %787 = vmatpush1.bf16.msra.mxu0 0
    %788 = vmatprep.subr.bf16.mxu0 0
    %789 = vmatpush1.bf16.msra.mxu0 0
    %790 = vmatprep.subr.bf16.mxu0 0
    %791 = vmatpush1.bf16.msra.mxu0 0
    %792 = vmatprep.mubr.bf16.mxu0 0
    %793 = vmatmul.mubr.bf16.gmra.mrb[0].mxu0 %v755
    %v794 = vpop.f32.mrb[0].mxu0
    %v795 = vadd.f32 0.0, %v794
    %v796 = vpop.f32.mrb[0].mxu0
    %v797 = vpop.f32.mrb[0].mxu0
    %v798 = vpop.f32.mrb[0].mxu0
    %799 = vdwg.mxu0
    %v800 = vmul.f32 %v748, %v702
    %v801 = vmul.f32 %v795, %v703
    %v802 = vpack.c.bf16 %v801, %v800
    %v803 = vld [vmem:[%s9 + $0x40] sm:$0xf]
    %v804 = vld [vmem:[%s9 + $0x44] sm:$0xf]
    %v805 = vld [vmem:[%s9 + $0x48] sm:$0xf]
    %v806 = vld [vmem:[%s9 + $0x4c] sm:$0xf]
    %v807 = vld [vmem:[%s9 + $0x50] sm:$0xf]
    %v808 = vld [vmem:[%s9 + $0x54] sm:$0xf]
    %v809 = vld [vmem:[%s9 + $0x58] sm:$0xf]
    %v810 = vld [vmem:[%s9 + $0x5c] sm:$0xf]
    %v811 = vld [vmem:[%s9 + $0x60] sm:$0xf]
    %v812 = vld [vmem:[%s9 + $0x64] sm:$0xf]
    %v813 = vld [vmem:[%s9 + $0x68] sm:$0xf]
    %v814 = vld [vmem:[%s9 + $0x6c] sm:$0xf]
    %v815 = vld [vmem:[%s9 + $0x70] sm:$0xf]
    %v816 = vld [vmem:[%s9 + $0x74] sm:$0xf]
    %v817 = vld [vmem:[%s9 + $0x78] sm:$0xf]
    %v818 = vld [vmem:[%s9 + $0x7c] sm:$0xf]
    %v835 = vunpack.c.l.b16 %v803
    %v836 = vunpack.c.l.b16 %v804
    %v837 = vunpack.c.l.b16 %v805
    %v838 = vunpack.c.l.b16 %v806
    %v839 = vunpack.c.l.b16 %v807
    %v840 = vunpack.c.l.b16 %v808
    %v841 = vunpack.c.l.b16 %v809
    %v842 = vunpack.c.l.b16 %v810
    %v843 = vunpack.c.l.b16 %v811
    %v844 = vunpack.c.l.b16 %v812
    %v845 = vunpack.c.l.b16 %v813
    %v846 = vunpack.c.l.b16 %v814
    %v847 = vunpack.c.l.b16 %v815
    %v848 = vunpack.c.l.b16 %v816
    %v849 = vunpack.c.l.b16 %v817
    %v850 = vunpack.c.l.b16 %v818
    %v851 = vpack.c.b16 %v836, %v835
    %v852 = vpack.c.b16 %v838, %v837
    %v853 = vpack.c.b16 %v840, %v839
    %v854 = vpack.c.b16 %v842, %v841
    %v855 = vpack.c.b16 %v844, %v843
    %v856 = vpack.c.b16 %v846, %v845
    %v857 = vpack.c.b16 %v848, %v847
    %v858 = vpack.c.b16 %v850, %v849
    %867 = vmatprep.subr.bf16.mxu0 0
    %868 = vmatpush1.bf16.msra.mxu0 %v851
    %869 = vmatprep.subr.bf16.mxu0 0
    %870 = vmatpush1.bf16.msra.mxu0 %v852
    %871 = vmatprep.subr.bf16.mxu0 0
    %872 = vmatpush1.bf16.msra.mxu0 %v853
    %873 = vmatprep.subr.bf16.mxu0 0
    %874 = vmatpush1.bf16.msra.mxu0 %v854
    %875 = vmatprep.subr.bf16.mxu0 0
    %876 = vmatpush1.bf16.msra.mxu0 %v855
    %877 = vmatprep.subr.bf16.mxu0 0
    %878 = vmatpush1.bf16.msra.mxu0 %v856
    %879 = vmatprep.subr.bf16.mxu0 0
    %880 = vmatpush1.bf16.msra.mxu0 %v857
    %881 = vmatprep.subr.bf16.mxu0 0
    %882 = vmatpush1.bf16.msra.mxu0 %v858
    %883 = vmatprep.subr.bf16.mxu0 0
    %884 = vmatpush1.bf16.msra.mxu0 0
    %885 = vmatprep.subr.bf16.mxu0 0
    %886 = vmatpush1.bf16.msra.mxu0 0
    %887 = vmatprep.subr.bf16.mxu0 0
    %888 = vmatpush1.bf16.msra.mxu0 0
    %889 = vmatprep.subr.bf16.mxu0 0
    %890 = vmatpush1.bf16.msra.mxu0 0
    %891 = vmatprep.subr.bf16.mxu0 0
    %892 = vmatpush1.bf16.msra.mxu0 0
    %893 = vmatprep.subr.bf16.mxu0 0
    %894 = vmatpush1.bf16.msra.mxu0 0
    %895 = vmatprep.subr.bf16.mxu0 0
    %896 = vmatpush1.bf16.msra.mxu0 0
    %897 = vmatprep.subr.bf16.mxu0 0
    %898 = vmatpush1.bf16.msra.mxu0 0
    %899 = vmatprep.mubr.bf16.mxu0 0
    %900 = vmatmul.mubr.bf16.gmra.mrb[0].mxu0 %v802
    %v901 = vpop.f32.mrb[0].mxu0
    %v902 = vadd.f32 0.0, %v901
    %v903 = vpop.f32.mrb[0].mxu0
    %v904 = vpop.f32.mrb[0].mxu0
    %v905 = vadd.f32 0.0, %v904
    %v906 = vpop.f32.mrb[0].mxu0
    %907 = vdwg.mxu0
    %v924 = vunpack.c.l.b16 %v580
    %v925 = vunpack.c.l.b16 %v581
    %v926 = vunpack.c.l.b16 %v582
    %v927 = vunpack.c.l.b16 %v583
    %v928 = vunpack.c.l.b16 %v584
    %v929 = vunpack.c.l.b16 %v585
    %v930 = vunpack.c.l.b16 %v586
    %v931 = vunpack.c.l.b16 %v587
    %v932 = vunpack.c.l.b16 %v588
    %v933 = vunpack.c.l.b16 %v589
    %v934 = vunpack.c.l.b16 %v590
    %v935 = vunpack.c.l.b16 %v591
    %v936 = vunpack.c.l.b16 %v592
    %v937 = vunpack.c.l.b16 %v593
    %v938 = vunpack.c.l.b16 %v594
    %v939 = vunpack.c.l.b16 %v595
    %v940 = vpack.c.b16 %v925, %v924
    %v941 = vpack.c.b16 %v927, %v926
    %v942 = vpack.c.b16 %v929, %v928
    %v943 = vpack.c.b16 %v931, %v930
    %v944 = vpack.c.b16 %v933, %v932
    %v945 = vpack.c.b16 %v935, %v934
    %v946 = vpack.c.b16 %v937, %v936
    %v947 = vpack.c.b16 %v939, %v938
    %956 = vmatprep.subr.bf16.mxu0 0
    %957 = vmatpush1.bf16.msra.mxu0 %v940
    %958 = vmatprep.subr.bf16.mxu0 0
    %959 = vmatpush1.bf16.msra.mxu0 %v941
    %960 = vmatprep.subr.bf16.mxu0 0
    %961 = vmatpush1.bf16.msra.mxu0 %v942
    %962 = vmatprep.subr.bf16.mxu0 0
    %963 = vmatpush1.bf16.msra.mxu0 %v943
    %964 = vmatprep.subr.bf16.mxu0 0
    %965 = vmatpush1.bf16.msra.mxu0 %v944
    %966 = vmatprep.subr.bf16.mxu0 0
    %967 = vmatpush1.bf16.msra.mxu0 %v945
    %968 = vmatprep.subr.bf16.mxu0 0
    %969 = vmatpush1.bf16.msra.mxu0 %v946
    %970 = vmatprep.subr.bf16.mxu0 0
    %971 = vmatpush1.bf16.msra.mxu0 %v947
    %972 = vmatprep.subr.bf16.mxu0 0
    %973 = vmatpush1.bf16.msra.mxu0 0
    %974 = vmatprep.subr.bf16.mxu0 0
    %975 = vmatpush1.bf16.msra.mxu0 0
    %976 = vmatprep.subr.bf16.mxu0 0
    %977 = vmatpush1.bf16.msra.mxu0 0
    %978 = vmatprep.subr.bf16.mxu0 0
    %979 = vmatpush1.bf16.msra.mxu0 0
    %980 = vmatprep.subr.bf16.mxu0 0
    %981 = vmatpush1.bf16.msra.mxu0 0
    %982 = vmatprep.subr.bf16.mxu0 0
    %983 = vmatpush1.bf16.msra.mxu0 0
    %984 = vmatprep.subr.bf16.mxu0 0
    %985 = vmatpush1.bf16.msra.mxu0 0
    %986 = vmatprep.subr.bf16.mxu0 0
    %987 = vmatpush1.bf16.msra.mxu0 0
    %988 = vmatprep.mubr.bf16.mxu0 0
    %989 = vmatmul.mubr.bf16.gmra.mrb[0].mxu0 %v579
    %v990 = vpop.f32.mrb[0].mxu0
    %v991 = vadd.f32 %v902, %v990
    %v992 = vpop.f32.mrb[0].mxu0
    %v993 = vpop.f32.mrb[0].mxu0
    %v994 = vadd.f32 %v905, %v993
    %v995 = vpop.f32.mrb[0].mxu0
    %996 = vdwg.mxu0
    %v997 = vadd.f32 %v58, %v991
    %v998 = vadd.f32 %v59, %v994
    %v999 = vld [vmem:[%s10] sm:$0x1]
    %v1001 = vlaneseq
    %v1002 = vshrl.u32 %v1001, 7
    %v1003 = vsub.s32 0, %v1002
    %v1004 = vrot.slane %v999, %v1003
    %v1006 = vadd.f32 %v997, %v1004
    %v1007 = vadd.f32 %v998, %v1004
    %v1008 = vld [vmem:[%s11] sm:$0x1]
    %v1009 = vld [vmem:[%s12] sm:$0x1]
    %v1010 = vsel %vm62, %v1006, 0.0
    %1011 = vadd.xlane.f32.xlu0 %v1010
    %v1012 = vpop.xlane.xlu0 %1011
    %v1013 = vsel %vm62, %v1007, 0.0
    %1014 = vadd.xlane.f32.xlu0 %v1013
    %v1015 = vpop.xlane.xlu0 %1014
    %v1016 = vmul.f32 %v1012, %v69
    %v1017 = vmul.f32 %v1015, %v69
    %v1018 = vsub.f32 %v1006, %v1016
    %v1019 = vsub.f32 %v1007, %v1017
    %v1020 = vmul.f32 %v1018, %v1018
    %v1021 = vmul.f32 %v1019, %v1019
    %v1022 = vsel %vm62, %v1020, 0.0
    %1023 = vadd.xlane.f32.xlu0 %v1022
    %v1024 = vpop.xlane.xlu0 %1023
    %v1025 = vsel %vm62, %v1021, 0.0
    %1026 = vadd.xlane.f32.xlu0 %v1025
    %v1027 = vpop.xlane.xlu0 %1026
    %v1028 = vmul.f32 %v1024, %v69
    %v1029 = vmul.f32 %v1027, %v69
    %v1030 = vadd.f32 %v1028, 1e-05
    %v1031 = vadd.f32 %v1029, 1e-05
    %v1032 = vrsqrt.pop %v1030
    %v1033 = vrsqrt.pop %v1031
    %v1034 = vmul.f32 %v1018, %v1032
    %v1035 = vmul.f32 %v1019, %v1033
    %v1037 = vlaneseq
    %v1038 = vshrl.u32 %v1037, 7
    %v1039 = vsub.s32 0, %v1038
    %v1040 = vrot.slane %v1008, %v1039
    %v1042 = vmul.f32 %v1034, %v1040
    %v1043 = vmul.f32 %v1035, %v1040
    %v1045 = vlaneseq
    %v1046 = vshrl.u32 %v1045, 7
    %v1047 = vsub.s32 0, %v1046
    %v1048 = vrot.slane %v1009, %v1047
    %v1050 = vadd.f32 %v1042, %v1048
    %v1051 = vadd.f32 %v1043, %v1048
    %v1052 = vpack.c.bf16 %v1051, %v1050
    %v1053 = vld [vmem:[%s13] sm:$0xf]
    %v1054 = vld [vmem:[%s13 + $0x4] sm:$0xf]
    %v1055 = vld [vmem:[%s13 + $0x8] sm:$0xf]
    %v1056 = vld [vmem:[%s13 + $0xc] sm:$0xf]
    %v1057 = vld [vmem:[%s14] sm:$0x1]
    %v1059 = vlaneseq
    %v1060 = vshrl.u32 %v1059, 7
    %v1061 = vsub.s32 0, %v1060
    %v1062 = vrot.slane %v1057, %v1061
    %v1068 = vunpack.c.l.b16 %v1053
    %v1069 = vunpack.c.l.b16 %v1054
    %v1070 = vunpack.c.l.b16 %v1055
    %v1071 = vunpack.c.l.b16 %v1056
    %v1072 = vpack.c.b16 %v1069, %v1068
    %v1073 = vpack.c.b16 %v1071, %v1070
    %v1077 = vsel %vm62, %v1052, 0
    %1079 = vmatprep.subr.bf16.mxu0 0
    %1080 = vmatpush1.bf16.msra.mxu0 %v1072
    %1081 = vmatprep.subr.bf16.mxu0 0
    %1082 = vmatpush1.bf16.msra.mxu0 %v1073
    %1083 = vmatprep.subr.bf16.mxu0 0
    %1084 = vmatpush1.bf16.msra.mxu0 0
    %1085 = vmatprep.subr.bf16.mxu0 0
    %1086 = vmatpush1.bf16.msra.mxu0 0
    %1087 = vmatprep.subr.bf16.mxu0 0
    %1088 = vmatpush1.bf16.msra.mxu0 0
    %1089 = vmatprep.subr.bf16.mxu0 0
    %1090 = vmatpush1.bf16.msra.mxu0 0
    %1091 = vmatprep.subr.bf16.mxu0 0
    %1092 = vmatpush1.bf16.msra.mxu0 0
    %1093 = vmatprep.subr.bf16.mxu0 0
    %1094 = vmatpush1.bf16.msra.mxu0 0
    %1095 = vmatprep.subr.bf16.mxu0 0
    %1096 = vmatpush1.bf16.msra.mxu0 0
    %1097 = vmatprep.subr.bf16.mxu0 0
    %1098 = vmatpush1.bf16.msra.mxu0 0
    %1099 = vmatprep.subr.bf16.mxu0 0
    %1100 = vmatpush1.bf16.msra.mxu0 0
    %1101 = vmatprep.subr.bf16.mxu0 0
    %1102 = vmatpush1.bf16.msra.mxu0 0
    %1103 = vmatprep.subr.bf16.mxu0 0
    %1104 = vmatpush1.bf16.msra.mxu0 0
    %1105 = vmatprep.subr.bf16.mxu0 0
    %1106 = vmatpush1.bf16.msra.mxu0 0
    %1107 = vmatprep.subr.bf16.mxu0 0
    %1108 = vmatpush1.bf16.msra.mxu0 0
    %1109 = vmatprep.subr.bf16.mxu0 0
    %1110 = vmatpush1.bf16.msra.mxu0 0
    %1111 = vmatprep.mubr.bf16.mxu0 0
    %1112 = vmatmul.mubr.bf16.gmra.mrb[0].mxu0 %v1077
    %v1113 = vpop.f32.mrb[0].mxu0
    %v1114 = vadd.f32 %v1062, %v1113
    %v1115 = vpop.f32.mrb[0].mxu0
    %v1116 = vpop.f32.mrb[0].mxu0
    %v1117 = vadd.f32 %v1062, %v1116
    %v1118 = vpop.f32.mrb[0].mxu0
    %1119 = vdwg.mxu0
    %v1120 = vxor.u32 %v1114, 2147483648
    %v1121 = vxor.u32 %v1117, 2147483648
    %v1122 = vmul.f32 %v1120, 1.442695
    %v1123 = vpow.pop %v1122
    %v1124 = vmul.f32 %v1121, 1.442695
    %v1125 = vpow.pop %v1124
    %v1126 = vadd.f32 %v1123, 1.0
    %v1127 = vadd.f32 %v1125, 1.0
    %v1128 = vrcp.pop %v1126
    %v1129 = vmul.f32 1.0, %v1128
    %v1130 = vrcp.pop %v1127
    %v1131 = vmul.f32 1.0, %v1130
    %v1132 = vmul.f32 %v1114, %v1129
    %v1133 = vmul.f32 %v1117, %v1131
    %v1134 = vpack.c.bf16 %v1133, %v1132
    %v1135 = vld [vmem:[%s15] sm:$0xf]
    %v1136 = vld [vmem:[%s15 + $0x4] sm:$0xf]
    %v1137 = vld [vmem:[%s15 + $0x8] sm:$0xf]
    %v1138 = vld [vmem:[%s15 + $0xc] sm:$0xf]
    %v1139 = vld [vmem:[%s15 + $0x10] sm:$0xf]
    %v1140 = vld [vmem:[%s15 + $0x14] sm:$0xf]
    %v1141 = vld [vmem:[%s15 + $0x18] sm:$0xf]
    %v1142 = vld [vmem:[%s15 + $0x1c] sm:$0xf]
    %v1143 = vld [vmem:[%s15 + $0x20] sm:$0xf]
    %v1144 = vld [vmem:[%s15 + $0x24] sm:$0xf]
    %v1145 = vld [vmem:[%s15 + $0x28] sm:$0xf]
    %v1146 = vld [vmem:[%s15 + $0x2c] sm:$0xf]
    %v1147 = vld [vmem:[%s15 + $0x30] sm:$0xf]
    %v1148 = vld [vmem:[%s15 + $0x34] sm:$0xf]
    %v1149 = vld [vmem:[%s15 + $0x38] sm:$0xf]
    %v1150 = vld [vmem:[%s15 + $0x3c] sm:$0xf]
    %v1167 = vunpack.c.l.b16 %v1135
    %v1168 = vunpack.c.l.b16 %v1136
    %v1169 = vunpack.c.l.b16 %v1137
    %v1170 = vunpack.c.l.b16 %v1138
    %v1171 = vunpack.c.l.b16 %v1139
    %v1172 = vunpack.c.l.b16 %v1140
    %v1173 = vunpack.c.l.b16 %v1141
    %v1174 = vunpack.c.l.b16 %v1142
    %v1175 = vunpack.c.l.b16 %v1143
    %v1176 = vunpack.c.l.b16 %v1144
    %v1177 = vunpack.c.l.b16 %v1145
    %v1178 = vunpack.c.l.b16 %v1146
    %v1179 = vunpack.c.l.b16 %v1147
    %v1180 = vunpack.c.l.b16 %v1148
    %v1181 = vunpack.c.l.b16 %v1149
    %v1182 = vunpack.c.l.b16 %v1150
    %v1183 = vpack.c.b16 %v1168, %v1167
    %v1184 = vpack.c.b16 %v1170, %v1169
    %v1185 = vpack.c.b16 %v1172, %v1171
    %v1186 = vpack.c.b16 %v1174, %v1173
    %v1187 = vpack.c.b16 %v1176, %v1175
    %v1188 = vpack.c.b16 %v1178, %v1177
    %v1189 = vpack.c.b16 %v1180, %v1179
    %v1190 = vpack.c.b16 %v1182, %v1181
    %1199 = vmatprep.subr.bf16.mxu0 0
    %1200 = vmatpush1.bf16.msra.mxu0 %v1183
    %1201 = vmatprep.subr.bf16.mxu0 0
    %1202 = vmatpush1.bf16.msra.mxu0 %v1184
    %1203 = vmatprep.subr.bf16.mxu0 0
    %1204 = vmatpush1.bf16.msra.mxu0 %v1185
    %1205 = vmatprep.subr.bf16.mxu0 0
    %1206 = vmatpush1.bf16.msra.mxu0 %v1186
    %1207 = vmatprep.subr.bf16.mxu0 0
    %1208 = vmatpush1.bf16.msra.mxu0 %v1187
    %1209 = vmatprep.subr.bf16.mxu0 0
    %1210 = vmatpush1.bf16.msra.mxu0 %v1188
    %1211 = vmatprep.subr.bf16.mxu0 0
    %1212 = vmatpush1.bf16.msra.mxu0 %v1189
    %1213 = vmatprep.subr.bf16.mxu0 0
    %1214 = vmatpush1.bf16.msra.mxu0 %v1190
    %1215 = vmatprep.subr.bf16.mxu0 0
    %1216 = vmatpush1.bf16.msra.mxu0 0
    %1217 = vmatprep.subr.bf16.mxu0 0
    %1218 = vmatpush1.bf16.msra.mxu0 0
    %1219 = vmatprep.subr.bf16.mxu0 0
    %1220 = vmatpush1.bf16.msra.mxu0 0
    %1221 = vmatprep.subr.bf16.mxu0 0
    %1222 = vmatpush1.bf16.msra.mxu0 0
    %1223 = vmatprep.subr.bf16.mxu0 0
    %1224 = vmatpush1.bf16.msra.mxu0 0
    %1225 = vmatprep.subr.bf16.mxu0 0
    %1226 = vmatpush1.bf16.msra.mxu0 0
    %1227 = vmatprep.subr.bf16.mxu0 0
    %1228 = vmatpush1.bf16.msra.mxu0 0
    %1229 = vmatprep.subr.bf16.mxu0 0
    %1230 = vmatpush1.bf16.msra.mxu0 0
    %1231 = vmatprep.mubr.bf16.mxu0 0
    %1232 = vmatmul.mubr.bf16.gmra.mrb[0].mxu0 %v1134
    %v1233 = vpop.f32.mrb[0].mxu0
    %v1234 = vadd.f32 0.0, %v1233
    %v1235 = vpop.f32.mrb[0].mxu0
    %v1236 = vpop.f32.mrb[0].mxu0
    %v1237 = vadd.f32 0.0, %v1236
    %v1238 = vpop.f32.mrb[0].mxu0
    %1239 = vdwg.mxu0
    %v1240 = vadd.f32 %v1006, %v1234
    %v1241 = vadd.f32 %v1007, %v1237
    %v1242 = vld [vmem:[%s16] sm:$0x1]
    %v1244 = vlaneseq
    %v1245 = vshrl.u32 %v1244, 7
    %v1246 = vsub.s32 0, %v1245
    %v1247 = vrot.slane %v1242, %v1246
    %v1249 = vadd.f32 %v1240, %v1247
    %v1250 = vadd.f32 %v1241, %v1247
    %1251 = vst.msk [vmem:[#allocation2] sm:$0xff] %vm62, %v1249
    %1252 = vst.msk [vmem:[#allocation2 + $0x8] sm:$0xff] %vm62, %v1250
    // Predicated region
    $region70: #{tpu_custom_call.1} parent=1 // pred_check
      _
    $region71: #{tpu_custom_call.1} parent=1 // pred_check_branch
      %1254 = sbr.rel (0) target = $region73
    $region72: #{tpu_custom_call.1} parent=1 // pred_region
      %s1256 = ssub.s32 256, 256
      %1257 = vsyncadd [#allocation3], %s1256
      %s1258 = sshll.u32 [#allocation2], 4
      %s1259 = int_to_ptr.vmem [resolvable:$true] %s1258
      %1264 = dma.vmem_to_hbm [thread:$0]  %s1259, 256, %s17, [#allocation3], 128, 128, 8
    $region73: #{tpu_custom_call.1} parent=1 // pred_fallthru
      _
    // Predicated region
    $region74: #{tpu_custom_call.1} parent=1 // pred_check
      _
    $region75: #{tpu_custom_call.1} parent=1 // pred_check_branch
      %1266 = sbr.rel (0) target = $region77
    $region76: #{tpu_custom_call.1} parent=1 // pred_region
      %1267 = dma.done [#allocation3], 256
    $region77: #{tpu_custom_call.1} parent=1 // pred_fallthru
      _
    %1268 = vsyncpa [#allocation3], 1

</llo_original>
